<compile_context>
chip_gen: v7x
topology: tpu7x:2x2x1
jax: 0.10.0
libtpu: 0.0.40
codegen_flags: <defaults>
</compile_context>

<pallas_src>
import math

import jax
import jax.numpy as jnp
from jax.experimental import pallas as pl
from jax.experimental.pallas import tpu as pltpu

KSIZE = 7
PAD = 3            # padding for kernel_size == 7
SUB_ALIGN = 8      # sublane-aligned offset of the scratch interior
LANE_ALIGN = 128   # lane-aligned offset of the scratch interior
N_ACC = 4          # independent accumulators -> ILP across the 4 VALU slots


def _spatial_std_attn_kernel(w_ref, x_ref, o_ref, avg_buf, max_buf):
    # w_ref  : SMEM f32[2*49]; plane 0 = (w_avg + w_std), plane 1 = w_max,
    #          flat index = plane*49 + ki*7 + kj
    # x_ref  : VMEM (Bt, C, H, W)  unpadded input batch-tile
    # o_ref  : VMEM (Bt, H, W)
    # *_buf  : VMEM f32 (Bt, 8+H+3, 128+W+3) scratch holding the zero-padded
    #          reduced maps; the interior lives at tile-aligned offset (8, 128).
    Bt, C, H, W = x_ref.shape
    r0 = SUB_ALIGN - PAD    # padded-map row 0 inside the scratch buffer
    c0 = LANE_ALIGN - PAD   # padded-map col 0 inside the scratch buffer

    # ---- fused single-pass channel reduction: mean and max in one sweep ----
    x0 = x_ref[:, 0, :, :].astype(jnp.float32)
    s, m = x0, x0
    for c in range(1, C):
        xc = x_ref[:, c, :, :].astype(jnp.float32)
        s = s + xc
        m = jnp.maximum(m, xc)
    avg = s * (1.0 / C)

    # ---- zero-pad the *reduced* maps in VMEM (replaces the HBM-side pad). ----
    # Conv zero-padding semantics: the max map must also be padded with 0.0.
    avg_buf[...] = jnp.zeros_like(avg_buf)
    max_buf[...] = jnp.zeros_like(max_buf)
    avg_buf[:, SUB_ALIGN:SUB_ALIGN + H, LANE_ALIGN:LANE_ALIGN + W] = avg
    max_buf[:, SUB_ALIGN:SUB_ALIGN + H, LANE_ALIGN:LANE_ALIGN + W] = m
    avg_p = avg_buf[...]
    max_p = max_buf[...]

    # ---- hoist the 7 column (lane) shifts out of the 49-tap loop ----
    avg_cols = [avg_p[:, :, c0 + kj:c0 + kj + W] for kj in range(KSIZE)]
    max_cols = [max_p[:, :, c0 + kj:c0 + kj + W] for kj in range(KSIZE)]

    # ---- 49-tap shifted accumulate; only cheap row (sublane) slices inside ----
    accs = [jnp.zeros((Bt, H, W), jnp.float32) for _ in range(N_ACC)]
    tap = 0
    for kj in range(KSIZE):
        a_c = avg_cols[kj]
        m_c = max_cols[kj]
        for ki in range(KSIZE):
            w_a = w_ref[0 * KSIZE * KSIZE + ki * KSIZE + kj]   # avg (+std) weight
            w_m = w_ref[1 * KSIZE * KSIZE + ki * KSIZE + kj]   # max weight
            accs[tap % N_ACC] = (accs[tap % N_ACC]
                                 + w_a * a_c[:, r0 + ki:r0 + ki + H, :]
                                 + w_m * m_c[:, r0 + ki:r0 + ki + H, :])
            tap += 1
    acc = accs[0]
    for extra in accs[1:]:
        acc = acc + extra

    o_ref[...] = jax.nn.sigmoid(acc).astype(o_ref.dtype)


def _vmem_tile_bytes(h, w, itemsize=4):
    """f32 VMEM footprint of an (h, w) slab in the native (8, 128) tiling."""
    return (-(-h // 8) * 8) * (-(-w // 128) * 128) * itemsize


def _pick_batch_tile(B, C, H, W, budget_bytes):
    per_b = 2 * C * _vmem_tile_bytes(H, W)            # x block (double-buffered)
    per_b += 2 * _vmem_tile_bytes(H, W)               # output block (double-buffered)
    per_b += 2 * _vmem_tile_bytes(SUB_ALIGN + H + PAD, LANE_ALIGN + W + PAD)  # scratch
    return max(1, min(B, budget_bytes // max(per_b, 1)))


def spatial_std_attention(x, conv_w, *, vmem_budget_bytes=28 * 1024 * 1024):
    """x: (B, C, H, W), conv_w: (1, 3, 7, 7) -> (B, 1, H, W)."""
    B, C, H, W = x.shape

    # avg and "std" input channels of the conv are identical (both channel means)
    # -> fold their weight planes: 147 scalar weights -> 98.
    w_comb = jnp.stack([conv_w[0, 0] + conv_w[0, 1], conv_w[0, 2]], axis=0)
    w_flat = w_comb.astype(jnp.float32).reshape(-1)   # (98,)

    Bt = _pick_batch_tile(B, C, H, W, vmem_budget_bytes)
    nbt = pl.cdiv(B, Bt)
    # v7x has 2 TensorCores: keep >=2 parallel grid steps when each step still
    # has enough work to amortize the ~0.35us per-step overhead.
    if nbt == 1 and B > 1 and C * H * W >= (1 << 18):
        Bt = pl.cdiv(B, 2)
        nbt = pl.cdiv(B, Bt)

    flops = B * H * W * (2 * C + 4 * KSIZE * KSIZE + N_ACC)
    bytes_accessed = (B * C * H * W + B * H * W) * x.dtype.itemsize + w_flat.size * 4

    out = pl.pallas_call(
        _spatial_std_attn_kernel,
        out_shape=jax.ShapeDtypeStruct((B, H, W), x.dtype),
        grid=(nbt,),
        in_specs=[
            pl.BlockSpec(memory_space=pltpu.MemorySpace.SMEM),        # 98 weights
            pl.BlockSpec((Bt, C, H, W), lambda b: (b, 0, 0, 0)),      # unpadded x
        ],
        out_specs=pl.BlockSpec((Bt, H, W), lambda b: (b, 0, 0)),
        scratch_shapes=[
            pltpu.VMEM((Bt, SUB_ALIGN + H + PAD, LANE_ALIGN + W + PAD), jnp.float32),
            pltpu.VMEM((Bt, SUB_ALIGN + H + PAD, LANE_ALIGN + W + PAD), jnp.float32),
        ],
        compiler_params=pltpu.CompilerParams(
            dimension_semantics=("parallel",),
            vmem_limit_bytes=48 * 1024 * 1024,
        ),
        cost_estimate=pl.CostEstimate(
            flops=flops, transcendentals=B * H * W, bytes_accessed=bytes_accessed),
    )(w_flat, x)

    return out.reshape(B, 1, H, W)


def _reference_forward(x, conv_w):
    """Pure-JAX reference matching the PyTorch module semantics."""
    avg_out = jnp.mean(x, axis=1, keepdims=True)
    max_out = jnp.max(x, axis=1, keepdims=True)
    std_out = jnp.mean(x, axis=1, keepdims=True)   # yes: another mean in the source
    cat = jnp.concatenate([avg_out, std_out, max_out], axis=1)
    y = jax.lax.conv_general_dilated(
        cat, conv_w, window_strides=(1, 1), padding=[(PAD, PAD), (PAD, PAD)],
        dimension_numbers=("NCHW", "OIHW", "NCHW"))
    return jax.nn.sigmoid(y)


if __name__ == "__main__":
    key = jax.random.PRNGKey(0)
    kx, kw = jax.random.split(key)

    B, C, H, W = 2, 4, 16, 16
    x = jax.random.normal(kx, (B, C, H, W), dtype=jnp.float32)

    # Deterministic init matching nn.Conv2d default (kaiming_uniform, a=sqrt(5)):
    # U(-1/sqrt(fan_in), 1/sqrt(fan_in)) with fan_in = 3*7*7.
    fan_in = 3 * KSIZE * KSIZE
    bound = 1.0 / math.sqrt(fan_in)
    conv_w = jax.random.uniform(kw, (1, 3, KSIZE, KSIZE),
                                minval=-bound, maxval=bound, dtype=jnp.float32)

    out = spatial_std_attention(x, conv_w)
    out = jax.block_until_ready(out)

    ref = _reference_forward(x, conv_w)
    assert out.shape == (B, 1, H, W)
    assert jnp.allclose(out, ref, rtol=1e-5, atol=1e-5), (
        f"max abs err = {jnp.max(jnp.abs(out - ref))}")

    print("KERNEL_OK")
</pallas_src>

<mosaic_0001>
module attributes {stable_mosaic.version = 11 : i64} {
  func.func @_spatial_std_attn_kernel(%arg0: i32, %arg1: memref<98xf32, #tpu.memory_space<smem>>, %arg2: memref<2x4x16x16xf32, #tpu.memory_space<vmem>>, %arg3: memref<2x16x16xf32, #tpu.memory_space<vmem>>, %arg4: memref<2x27x147xf32, #tpu.memory_space<vmem>>, %arg5: memref<2x27x147xf32, #tpu.memory_space<vmem>>) attributes {dimension_semantics = [#tpu.dimension_semantics<parallel>], iteration_bounds = array<i64: 1>, scalar_prefetch = 0 : i64, scratch_operands = 2 : i64, tpu.core_type = #tpu.core_type<tc>, window_params = [{transform_indices = @transform_0, window_bounds = array<i64: 98>}, {transform_indices = @transform_1, window_bounds = array<i64: 2, 4, 16, 16>}, {transform_indices = @transform_2, window_bounds = array<i64: 2, 16, 16>}]} {
    %c0 = arith.constant 0 : index
    %c0_0 = arith.constant 0 : index
    %c0_1 = arith.constant 0 : index
    %c0_2 = arith.constant 0 : index
    %0 = vector.load %arg2[%c0, %c0_0, %c0_1, %c0_2] : memref<2x4x16x16xf32, #tpu.memory_space<vmem>>, vector<2x1x16x16xf32>
    %1 = vector.shape_cast %0 : vector<2x1x16x16xf32> to vector<2x16x16xf32>
    %c0_3 = arith.constant 0 : index
    %c1 = arith.constant 1 : index
    %c0_4 = arith.constant 0 : index
    %c0_5 = arith.constant 0 : index
    %2 = vector.load %arg2[%c0_3, %c1, %c0_4, %c0_5] : memref<2x4x16x16xf32, #tpu.memory_space<vmem>>, vector<2x1x16x16xf32>
    %3 = vector.shape_cast %2 : vector<2x1x16x16xf32> to vector<2x16x16xf32>
    %4 = arith.addf %1, %3 : vector<2x16x16xf32>
    %5 = arith.maximumf %1, %3 : vector<2x16x16xf32>
    %c0_6 = arith.constant 0 : index
    %c2 = arith.constant 2 : index
    %c0_7 = arith.constant 0 : index
    %c0_8 = arith.constant 0 : index
    %6 = vector.load %arg2[%c0_6, %c2, %c0_7, %c0_8] : memref<2x4x16x16xf32, #tpu.memory_space<vmem>>, vector<2x1x16x16xf32>
    %7 = vector.shape_cast %6 : vector<2x1x16x16xf32> to vector<2x16x16xf32>
    %8 = arith.addf %4, %7 : vector<2x16x16xf32>
    %9 = arith.maximumf %5, %7 : vector<2x16x16xf32>
    %c0_9 = arith.constant 0 : index
    %c3 = arith.constant 3 : index
    %c0_10 = arith.constant 0 : index
    %c0_11 = arith.constant 0 : index
    %10 = vector.load %arg2[%c0_9, %c3, %c0_10, %c0_11] : memref<2x4x16x16xf32, #tpu.memory_space<vmem>>, vector<2x1x16x16xf32>
    %11 = vector.shape_cast %10 : vector<2x1x16x16xf32> to vector<2x16x16xf32>
    %12 = arith.addf %8, %11 : vector<2x16x16xf32>
    %13 = arith.maximumf %9, %11 : vector<2x16x16xf32>
    %cst = arith.constant 2.500000e-01 : f32
    %14 = vector.broadcast %cst : f32 to vector<2x16x16xf32>
    %15 = arith.mulf %12, %14 : vector<2x16x16xf32>
    %cst_12 = arith.constant 0.000000e+00 : f32
    %16 = vector.broadcast %cst_12 : f32 to vector<2x27x147xf32>
    %c0_13 = arith.constant 0 : index
    %c0_14 = arith.constant 0 : index
    %c0_15 = arith.constant 0 : index
    %17 = vector.load %arg4[%c0_13, %c0_14, %c0_15] : memref<2x27x147xf32, #tpu.memory_space<vmem>>, vector<2x27x147xf32>
    tpu.vector_store %arg4[%c0_13, %c0_14, %c0_15], %16 {strides = array<i32>} : memref<2x27x147xf32, #tpu.memory_space<vmem>>, vector<2x27x147xf32>,
    %cst_16 = arith.constant 0.000000e+00 : f32
    %18 = vector.broadcast %cst_16 : f32 to vector<2x27x147xf32>
    %c0_17 = arith.constant 0 : index
    %c0_18 = arith.constant 0 : index
    %c0_19 = arith.constant 0 : index
    %19 = vector.load %arg5[%c0_17, %c0_18, %c0_19] : memref<2x27x147xf32, #tpu.memory_space<vmem>>, vector<2x27x147xf32>
    tpu.vector_store %arg5[%c0_17, %c0_18, %c0_19], %18 {strides = array<i32>} : memref<2x27x147xf32, #tpu.memory_space<vmem>>, vector<2x27x147xf32>,
    %c0_20 = arith.constant 0 : index
    %c8 = arith.constant 8 : index
    %c128 = arith.constant 128 : index
    %20 = vector.load %arg4[%c0_20, %c8, %c128] : memref<2x27x147xf32, #tpu.memory_space<vmem>>, vector<2x16x16xf32>
    tpu.vector_store %arg4[%c0_20, %c8, %c128], %15 {strides = array<i32>} : memref<2x27x147xf32, #tpu.memory_space<vmem>>, vector<2x16x16xf32>,
    %c0_21 = arith.constant 0 : index
    %c8_22 = arith.constant 8 : index
    %c128_23 = arith.constant 128 : index
    %21 = vector.load %arg5[%c0_21, %c8_22, %c128_23] : memref<2x27x147xf32, #tpu.memory_space<vmem>>, vector<2x16x16xf32>
    tpu.vector_store %arg5[%c0_21, %c8_22, %c128_23], %13 {strides = array<i32>} : memref<2x27x147xf32, #tpu.memory_space<vmem>>, vector<2x16x16xf32>,
    %c0_24 = arith.constant 0 : index
    %c0_25 = arith.constant 0 : index
    %c0_26 = arith.constant 0 : index
    %22 = vector.load %arg4[%c0_24, %c0_25, %c0_26] : memref<2x27x147xf32, #tpu.memory_space<vmem>>, vector<2x27x147xf32>
    %c0_27 = arith.constant 0 : index
    %c0_28 = arith.constant 0 : index
    %c0_29 = arith.constant 0 : index
    %23 = vector.load %arg5[%c0_27, %c0_28, %c0_29] : memref<2x27x147xf32, #tpu.memory_space<vmem>>, vector<2x27x147xf32>
    %24 = vector.extract_strided_slice %22 {offsets = [0, 0, 125], sizes = [2, 27, 16], strides = [1, 1, 1]} : vector<2x27x147xf32> to vector<2x27x16xf32>
    %25 = vector.extract_strided_slice %22 {offsets = [0, 0, 126], sizes = [2, 27, 16], strides = [1, 1, 1]} : vector<2x27x147xf32> to vector<2x27x16xf32>
    %26 = vector.extract_strided_slice %22 {offsets = [0, 0, 127], sizes = [2, 27, 16], strides = [1, 1, 1]} : vector<2x27x147xf32> to vector<2x27x16xf32>
    %27 = vector.extract_strided_slice %22 {offsets = [0, 0, 128], sizes = [2, 27, 16], strides = [1, 1, 1]} : vector<2x27x147xf32> to vector<2x27x16xf32>
    %28 = vector.extract_strided_slice %22 {offsets = [0, 0, 129], sizes = [2, 27, 16], strides = [1, 1, 1]} : vector<2x27x147xf32> to vector<2x27x16xf32>
    %29 = vector.extract_strided_slice %22 {offsets = [0, 0, 130], sizes = [2, 27, 16], strides = [1, 1, 1]} : vector<2x27x147xf32> to vector<2x27x16xf32>
    %30 = vector.extract_strided_slice %22 {offsets = [0, 0, 131], sizes = [2, 27, 16], strides = [1, 1, 1]} : vector<2x27x147xf32> to vector<2x27x16xf32>
    %31 = vector.extract_strided_slice %23 {offsets = [0, 0, 125], sizes = [2, 27, 16], strides = [1, 1, 1]} : vector<2x27x147xf32> to vector<2x27x16xf32>
    %32 = vector.extract_strided_slice %23 {offsets = [0, 0, 126], sizes = [2, 27, 16], strides = [1, 1, 1]} : vector<2x27x147xf32> to vector<2x27x16xf32>
    %33 = vector.extract_strided_slice %23 {offsets = [0, 0, 127], sizes = [2, 27, 16], strides = [1, 1, 1]} : vector<2x27x147xf32> to vector<2x27x16xf32>
    %34 = vector.extract_strided_slice %23 {offsets = [0, 0, 128], sizes = [2, 27, 16], strides = [1, 1, 1]} : vector<2x27x147xf32> to vector<2x27x16xf32>
    %35 = vector.extract_strided_slice %23 {offsets = [0, 0, 129], sizes = [2, 27, 16], strides = [1, 1, 1]} : vector<2x27x147xf32> to vector<2x27x16xf32>
    %36 = vector.extract_strided_slice %23 {offsets = [0, 0, 130], sizes = [2, 27, 16], strides = [1, 1, 1]} : vector<2x27x147xf32> to vector<2x27x16xf32>
    %37 = vector.extract_strided_slice %23 {offsets = [0, 0, 131], sizes = [2, 27, 16], strides = [1, 1, 1]} : vector<2x27x147xf32> to vector<2x27x16xf32>
    %cst_30 = arith.constant 0.000000e+00 : f32
    %38 = vector.broadcast %cst_30 : f32 to vector<2x16x16xf32>
    %cst_31 = arith.constant 0.000000e+00 : f32
    %39 = vector.broadcast %cst_31 : f32 to vector<2x16x16xf32>
    %cst_32 = arith.constant 0.000000e+00 : f32
    %40 = vector.broadcast %cst_32 : f32 to vector<2x16x16xf32>
    %cst_33 = arith.constant 0.000000e+00 : f32
    %41 = vector.broadcast %cst_33 : f32 to vector<2x16x16xf32>
    %c0_34 = arith.constant 0 : index
    %42 = memref.load %arg1[%c0_34] : memref<98xf32, #tpu.memory_space<smem>>
    %c49 = arith.constant 49 : index
    %43 = memref.load %arg1[%c49] : memref<98xf32, #tpu.memory_space<smem>>
    %44 = vector.extract_strided_slice %24 {offsets = [0, 5, 0], sizes = [2, 16, 16], strides = [1, 1, 1]} : vector<2x27x16xf32> to vector<2x16x16xf32>
    %45 = vector.broadcast %42 : f32 to vector<2x16x16xf32>
    %46 = arith.mulf %45, %44 : vector<2x16x16xf32>
    %47 = arith.addf %38, %46 : vector<2x16x16xf32>
    %48 = vector.extract_strided_slice %31 {offsets = [0, 5, 0], sizes = [2, 16, 16], strides = [1, 1, 1]} : vector<2x27x16xf32> to vector<2x16x16xf32>
    %49 = vector.broadcast %43 : f32 to vector<2x16x16xf32>
    %50 = arith.mulf %49, %48 : vector<2x16x16xf32>
    %51 = arith.addf %47, %50 : vector<2x16x16xf32>
    %c7 = arith.constant 7 : index
    %52 = memref.load %arg1[%c7] : memref<98xf32, #tpu.memory_space<smem>>
    %c56 = arith.constant 56 : index
    %53 = memref.load %arg1[%c56] : memref<98xf32, #tpu.memory_space<smem>>
    %54 = vector.extract_strided_slice %24 {offsets = [0, 6, 0], sizes = [2, 16, 16], strides = [1, 1, 1]} : vector<2x27x16xf32> to vector<2x16x16xf32>
    %55 = vector.broadcast %52 : f32 to vector<2x16x16xf32>
    %56 = arith.mulf %55, %54 : vector<2x16x16xf32>
    %57 = arith.addf %39, %56 : vector<2x16x16xf32>
    %58 = vector.extract_strided_slice %31 {offsets = [0, 6, 0], sizes = [2, 16, 16], strides = [1, 1, 1]} : vector<2x27x16xf32> to vector<2x16x16xf32>
    %59 = vector.broadcast %53 : f32 to vector<2x16x16xf32>
    %60 = arith.mulf %59, %58 : vector<2x16x16xf32>
    %61 = arith.addf %57, %60 : vector<2x16x16xf32>
    %c14 = arith.constant 14 : index
    %62 = memref.load %arg1[%c14] : memref<98xf32, #tpu.memory_space<smem>>
    %c63 = arith.constant 63 : index
    %63 = memref.load %arg1[%c63] : memref<98xf32, #tpu.memory_space<smem>>
    %64 = vector.extract_strided_slice %24 {offsets = [0, 7, 0], sizes = [2, 16, 16], strides = [1, 1, 1]} : vector<2x27x16xf32> to vector<2x16x16xf32>
    %65 = vector.broadcast %62 : f32 to vector<2x16x16xf32>
    %66 = arith.mulf %65, %64 : vector<2x16x16xf32>
    %67 = arith.addf %40, %66 : vector<2x16x16xf32>
    %68 = vector.extract_strided_slice %31 {offsets = [0, 7, 0], sizes = [2, 16, 16], strides = [1, 1, 1]} : vector<2x27x16xf32> to vector<2x16x16xf32>
    %69 = vector.broadcast %63 : f32 to vector<2x16x16xf32>
    %70 = arith.mulf %69, %68 : vector<2x16x16xf32>
    %71 = arith.addf %67, %70 : vector<2x16x16xf32>
    %c21 = arith.constant 21 : index
    %72 = memref.load %arg1[%c21] : memref<98xf32, #tpu.memory_space<smem>>
    %c70 = arith.constant 70 : index
    %73 = memref.load %arg1[%c70] : memref<98xf32, #tpu.memory_space<smem>>
    %74 = vector.extract_strided_slice %24 {offsets = [0, 8, 0], sizes = [2, 16, 16], strides = [1, 1, 1]} : vector<2x27x16xf32> to vector<2x16x16xf32>
    %75 = vector.broadcast %72 : f32 to vector<2x16x16xf32>
    %76 = arith.mulf %75, %74 : vector<2x16x16xf32>
    %77 = arith.addf %41, %76 : vector<2x16x16xf32>
    %78 = vector.extract_strided_slice %31 {offsets = [0, 8, 0], sizes = [2, 16, 16], strides = [1, 1, 1]} : vector<2x27x16xf32> to vector<2x16x16xf32>
    %79 = vector.broadcast %73 : f32 to vector<2x16x16xf32>
    %80 = arith.mulf %79, %78 : vector<2x16x16xf32>
    %81 = arith.addf %77, %80 : vector<2x16x16xf32>
    %c28 = arith.constant 28 : index
    %82 = memref.load %arg1[%c28] : memref<98xf32, #tpu.memory_space<smem>>
    %c77 = arith.constant 77 : index
    %83 = memref.load %arg1[%c77] : memref<98xf32, #tpu.memory_space<smem>>
    %84 = vector.extract_strided_slice %24 {offsets = [0, 9, 0], sizes = [2, 16, 16], strides = [1, 1, 1]} : vector<2x27x16xf32> to vector<2x16x16xf32>
    %85 = vector.broadcast %82 : f32 to vector<2x16x16xf32>
    %86 = arith.mulf %85, %84 : vector<2x16x16xf32>
    %87 = arith.addf %51, %86 : vector<2x16x16xf32>
    %88 = vector.extract_strided_slice %31 {offsets = [0, 9, 0], sizes = [2, 16, 16], strides = [1, 1, 1]} : vector<2x27x16xf32> to vector<2x16x16xf32>
    %89 = vector.broadcast %83 : f32 to vector<2x16x16xf32>
    %90 = arith.mulf %89, %88 : vector<2x16x16xf32>
    %91 = arith.addf %87, %90 : vector<2x16x16xf32>
    %c35 = arith.constant 35 : index
    %92 = memref.load %arg1[%c35] : memref<98xf32, #tpu.memory_space<smem>>
    %c84 = arith.constant 84 : index
    %93 = memref.load %arg1[%c84] : memref<98xf32, #tpu.memory_space<smem>>
    %94 = vector.extract_strided_slice %24 {offsets = [0, 10, 0], sizes = [2, 16, 16], strides = [1, 1, 1]} : vector<2x27x16xf32> to vector<2x16x16xf32>
    %95 = vector.broadcast %92 : f32 to vector<2x16x16xf32>
    %96 = arith.mulf %95, %94 : vector<2x16x16xf32>
    %97 = arith.addf %61, %96 : vector<2x16x16xf32>
    %98 = vector.extract_strided_slice %31 {offsets = [0, 10, 0], sizes = [2, 16, 16], strides = [1, 1, 1]} : vector<2x27x16xf32> to vector<2x16x16xf32>
    %99 = vector.broadcast %93 : f32 to vector<2x16x16xf32>
    %100 = arith.mulf %99, %98 : vector<2x16x16xf32>
    %101 = arith.addf %97, %100 : vector<2x16x16xf32>
    %c42 = arith.constant 42 : index
    %102 = memref.load %arg1[%c42] : memref<98xf32, #tpu.memory_space<smem>>
    %c91 = arith.constant 91 : index
    %103 = memref.load %arg1[%c91] : memref<98xf32, #tpu.memory_space<smem>>
    %104 = vector.extract_strided_slice %24 {offsets = [0, 11, 0], sizes = [2, 16, 16], strides = [1, 1, 1]} : vector<2x27x16xf32> to vector<2x16x16xf32>
    %105 = vector.broadcast %102 : f32 to vector<2x16x16xf32>
    %106 = arith.mulf %105, %104 : vector<2x16x16xf32>
    %107 = arith.addf %71, %106 : vector<2x16x16xf32>
    %108 = vector.extract_strided_slice %31 {offsets = [0, 11, 0], sizes = [2, 16, 16], strides = [1, 1, 1]} : vector<2x27x16xf32> to vector<2x16x16xf32>
    %109 = vector.broadcast %103 : f32 to vector<2x16x16xf32>
    %110 = arith.mulf %109, %108 : vector<2x16x16xf32>
    %111 = arith.addf %107, %110 : vector<2x16x16xf32>
    %c1_35 = arith.constant 1 : index
    %112 = memref.load %arg1[%c1_35] : memref<98xf32, #tpu.memory_space<smem>>
    %c50 = arith.constant 50 : index
    %113 = memref.load %arg1[%c50] : memref<98xf32, #tpu.memory_space<smem>>
    %114 = vector.extract_strided_slice %25 {offsets = [0, 5, 0], sizes = [2, 16, 16], strides = [1, 1, 1]} : vector<2x27x16xf32> to vector<2x16x16xf32>
    %115 = vector.broadcast %112 : f32 to vector<2x16x16xf32>
    %116 = arith.mulf %115, %114 : vector<2x16x16xf32>
    %117 = arith.addf %81, %116 : vector<2x16x16xf32>
    %118 = vector.extract_strided_slice %32 {offsets = [0, 5, 0], sizes = [2, 16, 16], strides = [1, 1, 1]} : vector<2x27x16xf32> to vector<2x16x16xf32>
    %119 = vector.broadcast %113 : f32 to vector<2x16x16xf32>
    %120 = arith.mulf %119, %118 : vector<2x16x16xf32>
    %121 = arith.addf %117, %120 : vector<2x16x16xf32>
    %c8_36 = arith.constant 8 : index
    %122 = memref.load %arg1[%c8_36] : memref<98xf32, #tpu.memory_space<smem>>
    %c57 = arith.constant 57 : index
    %123 = memref.load %arg1[%c57] : memref<98xf32, #tpu.memory_space<smem>>
    %124 = vector.extract_strided_slice %25 {offsets = [0, 6, 0], sizes = [2, 16, 16], strides = [1, 1, 1]} : vector<2x27x16xf32> to vector<2x16x16xf32>
    %125 = vector.broadcast %122 : f32 to vector<2x16x16xf32>
    %126 = arith.mulf %125, %124 : vector<2x16x16xf32>
    %127 = arith.addf %91, %126 : vector<2x16x16xf32>
    %128 = vector.extract_strided_slice %32 {offsets = [0, 6, 0], sizes = [2, 16, 16], strides = [1, 1, 1]} : vector<2x27x16xf32> to vector<2x16x16xf32>
    %129 = vector.broadcast %123 : f32 to vector<2x16x16xf32>
    %130 = arith.mulf %129, %128 : vector<2x16x16xf32>
    %131 = arith.addf %127, %130 : vector<2x16x16xf32>
    %c15 = arith.constant 15 : index
    %132 = memref.load %arg1[%c15] : memref<98xf32, #tpu.memory_space<smem>>
    %c64 = arith.constant 64 : index
    %133 = memref.load %arg1[%c64] : memref<98xf32, #tpu.memory_space<smem>>
    %134 = vector.extract_strided_slice %25 {offsets = [0, 7, 0], sizes = [2, 16, 16], strides = [1, 1, 1]} : vector<2x27x16xf32> to vector<2x16x16xf32>
    %135 = vector.broadcast %132 : f32 to vector<2x16x16xf32>
    %136 = arith.mulf %135, %134 : vector<2x16x16xf32>
    %137 = arith.addf %101, %136 : vector<2x16x16xf32>
    %138 = vector.extract_strided_slice %32 {offsets = [0, 7, 0], sizes = [2, 16, 16], strides = [1, 1, 1]} : vector<2x27x16xf32> to vector<2x16x16xf32>
    %139 = vector.broadcast %133 : f32 to vector<2x16x16xf32>
    %140 = arith.mulf %139, %138 : vector<2x16x16xf32>
    %141 = arith.addf %137, %140 : vector<2x16x16xf32>
    %c22 = arith.constant 22 : index
    %142 = memref.load %arg1[%c22] : memref<98xf32, #tpu.memory_space<smem>>
    %c71 = arith.constant 71 : index
    %143 = memref.load %arg1[%c71] : memref<98xf32, #tpu.memory_space<smem>>
    %144 = vector.extract_strided_slice %25 {offsets = [0, 8, 0], sizes = [2, 16, 16], strides = [1, 1, 1]} : vector<2x27x16xf32> to vector<2x16x16xf32>
    %145 = vector.broadcast %142 : f32 to vector<2x16x16xf32>
    %146 = arith.mulf %145, %144 : vector<2x16x16xf32>
    %147 = arith.addf %111, %146 : vector<2x16x16xf32>
    %148 = vector.extract_strided_slice %32 {offsets = [0, 8, 0], sizes = [2, 16, 16], strides = [1, 1, 1]} : vector<2x27x16xf32> to vector<2x16x16xf32>
    %149 = vector.broadcast %143 : f32 to vector<2x16x16xf32>
    %150 = arith.mulf %149, %148 : vector<2x16x16xf32>
    %151 = arith.addf %147, %150 : vector<2x16x16xf32>
    %c29 = arith.constant 29 : index
    %152 = memref.load %arg1[%c29] : memref<98xf32, #tpu.memory_space<smem>>
    %c78 = arith.constant 78 : index
    %153 = memref.load %arg1[%c78] : memref<98xf32, #tpu.memory_space<smem>>
    %154 = vector.extract_strided_slice %25 {offsets = [0, 9, 0], sizes = [2, 16, 16], strides = [1, 1, 1]} : vector<2x27x16xf32> to vector<2x16x16xf32>
    %155 = vector.broadcast %152 : f32 to vector<2x16x16xf32>
    %156 = arith.mulf %155, %154 : vector<2x16x16xf32>
    %157 = arith.addf %121, %156 : vector<2x16x16xf32>
    %158 = vector.extract_strided_slice %32 {offsets = [0, 9, 0], sizes = [2, 16, 16], strides = [1, 1, 1]} : vector<2x27x16xf32> to vector<2x16x16xf32>
    %159 = vector.broadcast %153 : f32 to vector<2x16x16xf32>
    %160 = arith.mulf %159, %158 : vector<2x16x16xf32>
    %161 = arith.addf %157, %160 : vector<2x16x16xf32>
    %c36 = arith.constant 36 : index
    %162 = memref.load %arg1[%c36] : memref<98xf32, #tpu.memory_space<smem>>
    %c85 = arith.constant 85 : index
    %163 = memref.load %arg1[%c85] : memref<98xf32, #tpu.memory_space<smem>>
    %164 = vector.extract_strided_slice %25 {offsets = [0, 10, 0], sizes = [2, 16, 16], strides = [1, 1, 1]} : vector<2x27x16xf32> to vector<2x16x16xf32>
    %165 = vector.broadcast %162 : f32 to vector<2x16x16xf32>
    %166 = arith.mulf %165, %164 : vector<2x16x16xf32>
    %167 = arith.addf %131, %166 : vector<2x16x16xf32>
    %168 = vector.extract_strided_slice %32 {offsets = [0, 10, 0], sizes = [2, 16, 16], strides = [1, 1, 1]} : vector<2x27x16xf32> to vector<2x16x16xf32>
    %169 = vector.broadcast %163 : f32 to vector<2x16x16xf32>
    %170 = arith.mulf %169, %168 : vector<2x16x16xf32>
    %171 = arith.addf %167, %170 : vector<2x16x16xf32>
    %c43 = arith.constant 43 : index
    %172 = memref.load %arg1[%c43] : memref<98xf32, #tpu.memory_space<smem>>
    %c92 = arith.constant 92 : index
    %173 = memref.load %arg1[%c92] : memref<98xf32, #tpu.memory_space<smem>>
    %174 = vector.extract_strided_slice %25 {offsets = [0, 11, 0], sizes = [2, 16, 16], strides = [1, 1, 1]} : vector<2x27x16xf32> to vector<2x16x16xf32>
    %175 = vector.broadcast %172 : f32 to vector<2x16x16xf32>
    %176 = arith.mulf %175, %174 : vector<2x16x16xf32>
    %177 = arith.addf %141, %176 : vector<2x16x16xf32>
    %178 = vector.extract_strided_slice %32 {offsets = [0, 11, 0], sizes = [2, 16, 16], strides = [1, 1, 1]} : vector<2x27x16xf32> to vector<2x16x16xf32>
    %179 = vector.broadcast %173 : f32 to vector<2x16x16xf32>
    %180 = arith.mulf %179, %178 : vector<2x16x16xf32>
    %181 = arith.addf %177, %180 : vector<2x16x16xf32>
    %c2_37 = arith.constant 2 : index
    %182 = memref.load %arg1[%c2_37] : memref<98xf32, #tpu.memory_space<smem>>
    %c51 = arith.constant 51 : index
    %183 = memref.load %arg1[%c51] : memref<98xf32, #tpu.memory_space<smem>>
    %184 = vector.extract_strided_slice %26 {offsets = [0, 5, 0], sizes = [2, 16, 16], strides = [1, 1, 1]} : vector<2x27x16xf32> to vector<2x16x16xf32>
    %185 = vector.broadcast %182 : f32 to vector<2x16x16xf32>
    %186 = arith.mulf %185, %184 : vector<2x16x16xf32>
    %187 = arith.addf %151, %186 : vector<2x16x16xf32>
    %188 = vector.extract_strided_slice %33 {offsets = [0, 5, 0], sizes = [2, 16, 16], strides = [1, 1, 1]} : vector<2x27x16xf32> to vector<2x16x16xf32>
    %189 = vector.broadcast %183 : f32 to vector<2x16x16xf32>
    %190 = arith.mulf %189, %188 : vector<2x16x16xf32>
    %191 = arith.addf %187, %190 : vector<2x16x16xf32>
    %c9 = arith.constant 9 : index
    %192 = memref.load %arg1[%c9] : memref<98xf32, #tpu.memory_space<smem>>
    %c58 = arith.constant 58 : index
    %193 = memref.load %arg1[%c58] : memref<98xf32, #tpu.memory_space<smem>>
    %194 = vector.extract_strided_slice %26 {offsets = [0, 6, 0], sizes = [2, 16, 16], strides = [1, 1, 1]} : vector<2x27x16xf32> to vector<2x16x16xf32>
    %195 = vector.broadcast %192 : f32 to vector<2x16x16xf32>
    %196 = arith.mulf %195, %194 : vector<2x16x16xf32>
    %197 = arith.addf %161, %196 : vector<2x16x16xf32>
    %198 = vector.extract_strided_slice %33 {offsets = [0, 6, 0], sizes = [2, 16, 16], strides = [1, 1, 1]} : vector<2x27x16xf32> to vector<2x16x16xf32>
    %199 = vector.broadcast %193 : f32 to vector<2x16x16xf32>
    %200 = arith.mulf %199, %198 : vector<2x16x16xf32>
    %201 = arith.addf %197, %200 : vector<2x16x16xf32>
    %c16 = arith.constant 16 : index
    %202 = memref.load %arg1[%c16] : memref<98xf32, #tpu.memory_space<smem>>
    %c65 = arith.constant 65 : index
    %203 = memref.load %arg1[%c65] : memref<98xf32, #tpu.memory_space<smem>>
    %204 = vector.extract_strided_slice %26 {offsets = [0, 7, 0], sizes = [2, 16, 16], strides = [1, 1, 1]} : vector<2x27x16xf32> to vector<2x16x16xf32>
    %205 = vector.broadcast %202 : f32 to vector<2x16x16xf32>
    %206 = arith.mulf %205, %204 : vector<2x16x16xf32>
    %207 = arith.addf %171, %206 : vector<2x16x16xf32>
    %208 = vector.extract_strided_slice %33 {offsets = [0, 7, 0], sizes = [2, 16, 16], strides = [1, 1, 1]} : vector<2x27x16xf32> to vector<2x16x16xf32>
    %209 = vector.broadcast %203 : f32 to vector<2x16x16xf32>
    %210 = arith.mulf %209, %208 : vector<2x16x16xf32>
    %211 = arith.addf %207, %210 : vector<2x16x16xf32>
    %c23 = arith.constant 23 : index
    %212 = memref.load %arg1[%c23] : memref<98xf32, #tpu.memory_space<smem>>
    %c72 = arith.constant 72 : index
    %213 = memref.load %arg1[%c72] : memref<98xf32, #tpu.memory_space<smem>>
    %214 = vector.extract_strided_slice %26 {offsets = [0, 8, 0], sizes = [2, 16, 16], strides = [1, 1, 1]} : vector<2x27x16xf32> to vector<2x16x16xf32>
    %215 = vector.broadcast %212 : f32 to vector<2x16x16xf32>
    %216 = arith.mulf %215, %214 : vector<2x16x16xf32>
    %217 = arith.addf %181, %216 : vector<2x16x16xf32>
    %218 = vector.extract_strided_slice %33 {offsets = [0, 8, 0], sizes = [2, 16, 16], strides = [1, 1, 1]} : vector<2x27x16xf32> to vector<2x16x16xf32>
    %219 = vector.broadcast %213 : f32 to vector<2x16x16xf32>
    %220 = arith.mulf %219, %218 : vector<2x16x16xf32>
    %221 = arith.addf %217, %220 : vector<2x16x16xf32>
    %c30 = arith.constant 30 : index
    %222 = memref.load %arg1[%c30] : memref<98xf32, #tpu.memory_space<smem>>
    %c79 = arith.constant 79 : index
    %223 = memref.load %arg1[%c79] : memref<98xf32, #tpu.memory_space<smem>>
    %224 = vector.extract_strided_slice %26 {offsets = [0, 9, 0], sizes = [2, 16, 16], strides = [1, 1, 1]} : vector<2x27x16xf32> to vector<2x16x16xf32>
    %225 = vector.broadcast %222 : f32 to vector<2x16x16xf32>
    %226 = arith.mulf %225, %224 : vector<2x16x16xf32>
    %227 = arith.addf %191, %226 : vector<2x16x16xf32>
    %228 = vector.extract_strided_slice %33 {offsets = [0, 9, 0], sizes = [2, 16, 16], strides = [1, 1, 1]} : vector<2x27x16xf32> to vector<2x16x16xf32>
    %229 = vector.broadcast %223 : f32 to vector<2x16x16xf32>
    %230 = arith.mulf %229, %228 : vector<2x16x16xf32>
    %231 = arith.addf %227, %230 : vector<2x16x16xf32>
    %c37 = arith.constant 37 : index
    %232 = memref.load %arg1[%c37] : memref<98xf32, #tpu.memory_space<smem>>
    %c86 = arith.constant 86 : index
    %233 = memref.load %arg1[%c86] : memref<98xf32, #tpu.memory_space<smem>>
    %234 = vector.extract_strided_slice %26 {offsets = [0, 10, 0], sizes = [2, 16, 16], strides = [1, 1, 1]} : vector<2x27x16xf32> to vector<2x16x16xf32>
    %235 = vector.broadcast %232 : f32 to vector<2x16x16xf32>
    %236 = arith.mulf %235, %234 : vector<2x16x16xf32>
    %237 = arith.addf %201, %236 : vector<2x16x16xf32>
    %238 = vector.extract_strided_slice %33 {offsets = [0, 10, 0], sizes = [2, 16, 16], strides = [1, 1, 1]} : vector<2x27x16xf32> to vector<2x16x16xf32>
    %239 = vector.broadcast %233 : f32 to vector<2x16x16xf32>
    %240 = arith.mulf %239, %238 : vector<2x16x16xf32>
    %241 = arith.addf %237, %240 : vector<2x16x16xf32>
    %c44 = arith.constant 44 : index
    %242 = memref.load %arg1[%c44] : memref<98xf32, #tpu.memory_space<smem>>
    %c93 = arith.constant 93 : index
    %243 = memref.load %arg1[%c93] : memref<98xf32, #tpu.memory_space<smem>>
    %244 = vector.extract_strided_slice %26 {offsets = [0, 11, 0], sizes = [2, 16, 16], strides = [1, 1, 1]} : vector<2x27x16xf32> to vector<2x16x16xf32>
    %245 = vector.broadcast %242 : f32 to vector<2x16x16xf32>
    %246 = arith.mulf %245, %244 : vector<2x16x16xf32>
    %247 = arith.addf %211, %246 : vector<2x16x16xf32>
    %248 = vector.extract_strided_slice %33 {offsets = [0, 11, 0], sizes = [2, 16, 16], strides = [1, 1, 1]} : vector<2x27x16xf32> to vector<2x16x16xf32>
    %249 = vector.broadcast %243 : f32 to vector<2x16x16xf32>
    %250 = arith.mulf %249, %248 : vector<2x16x16xf32>
    %251 = arith.addf %247, %250 : vector<2x16x16xf32>
    %c3_38 = arith.constant 3 : index
    %252 = memref.load %arg1[%c3_38] : memref<98xf32, #tpu.memory_space<smem>>
    %c52 = arith.constant 52 : index
    %253 = memref.load %arg1[%c52] : memref<98xf32, #tpu.memory_space<smem>>
    %254 = vector.extract_strided_slice %27 {offsets = [0, 5, 0], sizes = [2, 16, 16], strides = [1, 1, 1]} : vector<2x27x16xf32> to vector<2x16x16xf32>
    %255 = vector.broadcast %252 : f32 to vector<2x16x16xf32>
    %256 = arith.mulf %255, %254 : vector<2x16x16xf32>
    %257 = arith.addf %221, %256 : vector<2x16x16xf32>
    %258 = vector.extract_strided_slice %34 {offsets = [0, 5, 0], sizes = [2, 16, 16], strides = [1, 1, 1]} : vector<2x27x16xf32> to vector<2x16x16xf32>
    %259 = vector.broadcast %253 : f32 to vector<2x16x16xf32>
    %260 = arith.mulf %259, %258 : vector<2x16x16xf32>
    %261 = arith.addf %257, %260 : vector<2x16x16xf32>
    %c10 = arith.constant 10 : index
    %262 = memref.load %arg1[%c10] : memref<98xf32, #tpu.memory_space<smem>>
    %c59 = arith.constant 59 : index
    %263 = memref.load %arg1[%c59] : memref<98xf32, #tpu.memory_space<smem>>
    %264 = vector.extract_strided_slice %27 {offsets = [0, 6, 0], sizes = [2, 16, 16], strides = [1, 1, 1]} : vector<2x27x16xf32> to vector<2x16x16xf32>
    %265 = vector.broadcast %262 : f32 to vector<2x16x16xf32>
    %266 = arith.mulf %265, %264 : vector<2x16x16xf32>
    %267 = arith.addf %231, %266 : vector<2x16x16xf32>
    %268 = vector.extract_strided_slice %34 {offsets = [0, 6, 0], sizes = [2, 16, 16], strides = [1, 1, 1]} : vector<2x27x16xf32> to vector<2x16x16xf32>
    %269 = vector.broadcast %263 : f32 to vector<2x16x16xf32>
    %270 = arith.mulf %269, %268 : vector<2x16x16xf32>
    %271 = arith.addf %267, %270 : vector<2x16x16xf32>
    %c17 = arith.constant 17 : index
    %272 = memref.load %arg1[%c17] : memref<98xf32, #tpu.memory_space<smem>>
    %c66 = arith.constant 66 : index
    %273 = memref.load %arg1[%c66] : memref<98xf32, #tpu.memory_space<smem>>
    %274 = vector.extract_strided_slice %27 {offsets = [0, 7, 0], sizes = [2, 16, 16], strides = [1, 1, 1]} : vector<2x27x16xf32> to vector<2x16x16xf32>
    %275 = vector.broadcast %272 : f32 to vector<2x16x16xf32>
    %276 = arith.mulf %275, %274 : vector<2x16x16xf32>
    %277 = arith.addf %241, %276 : vector<2x16x16xf32>
    %278 = vector.extract_strided_slice %34 {offsets = [0, 7, 0], sizes = [2, 16, 16], strides = [1, 1, 1]} : vector<2x27x16xf32> to vector<2x16x16xf32>
    %279 = vector.broadcast %273 : f32 to vector<2x16x16xf32>
    %280 = arith.mulf %279, %278 : vector<2x16x16xf32>
    %281 = arith.addf %277, %280 : vector<2x16x16xf32>
    %c24 = arith.constant 24 : index
    %282 = memref.load %arg1[%c24] : memref<98xf32, #tpu.memory_space<smem>>
    %c73 = arith.constant 73 : index
    %283 = memref.load %arg1[%c73] : memref<98xf32, #tpu.memory_space<smem>>
    %284 = vector.extract_strided_slice %27 {offsets = [0, 8, 0], sizes = [2, 16, 16], strides = [1, 1, 1]} : vector<2x27x16xf32> to vector<2x16x16xf32>
    %285 = vector.broadcast %282 : f32 to vector<2x16x16xf32>
    %286 = arith.mulf %285, %284 : vector<2x16x16xf32>
    %287 = arith.addf %251, %286 : vector<2x16x16xf32>
    %288 = vector.extract_strided_slice %34 {offsets = [0, 8, 0], sizes = [2, 16, 16], strides = [1, 1, 1]} : vector<2x27x16xf32> to vector<2x16x16xf32>
    %289 = vector.broadcast %283 : f32 to vector<2x16x16xf32>
    %290 = arith.mulf %289, %288 : vector<2x16x16xf32>
    %291 = arith.addf %287, %290 : vector<2x16x16xf32>
    %c31 = arith.constant 31 : index
    %292 = memref.load %arg1[%c31] : memref<98xf32, #tpu.memory_space<smem>>
    %c80 = arith.constant 80 : index
    %293 = memref.load %arg1[%c80] : memref<98xf32, #tpu.memory_space<smem>>
    %294 = vector.extract_strided_slice %27 {offsets = [0, 9, 0], sizes = [2, 16, 16], strides = [1, 1, 1]} : vector<2x27x16xf32> to vector<2x16x16xf32>
    %295 = vector.broadcast %292 : f32 to vector<2x16x16xf32>
    %296 = arith.mulf %295, %294 : vector<2x16x16xf32>
    %297 = arith.addf %261, %296 : vector<2x16x16xf32>
    %298 = vector.extract_strided_slice %34 {offsets = [0, 9, 0], sizes = [2, 16, 16], strides = [1, 1, 1]} : vector<2x27x16xf32> to vector<2x16x16xf32>
    %299 = vector.broadcast %293 : f32 to vector<2x16x16xf32>
    %300 = arith.mulf %299, %298 : vector<2x16x16xf32>
    %301 = arith.addf %297, %300 : vector<2x16x16xf32>
    %c38 = arith.constant 38 : index
    %302 = memref.load %arg1[%c38] : memref<98xf32, #tpu.memory_space<smem>>
    %c87 = arith.constant 87 : index
    %303 = memref.load %arg1[%c87] : memref<98xf32, #tpu.memory_space<smem>>
    %304 = vector.extract_strided_slice %27 {offsets = [0, 10, 0], sizes = [2, 16, 16], strides = [1, 1, 1]} : vector<2x27x16xf32> to vector<2x16x16xf32>
    %305 = vector.broadcast %302 : f32 to vector<2x16x16xf32>
    %306 = arith.mulf %305, %304 : vector<2x16x16xf32>
    %307 = arith.addf %271, %306 : vector<2x16x16xf32>
    %308 = vector.extract_strided_slice %34 {offsets = [0, 10, 0], sizes = [2, 16, 16], strides = [1, 1, 1]} : vector<2x27x16xf32> to vector<2x16x16xf32>
    %309 = vector.broadcast %303 : f32 to vector<2x16x16xf32>
    %310 = arith.mulf %309, %308 : vector<2x16x16xf32>
    %311 = arith.addf %307, %310 : vector<2x16x16xf32>
    %c45 = arith.constant 45 : index
    %312 = memref.load %arg1[%c45] : memref<98xf32, #tpu.memory_space<smem>>
    %c94 = arith.constant 94 : index
    %313 = memref.load %arg1[%c94] : memref<98xf32, #tpu.memory_space<smem>>
    %314 = vector.extract_strided_slice %27 {offsets = [0, 11, 0], sizes = [2, 16, 16], strides = [1, 1, 1]} : vector<2x27x16xf32> to vector<2x16x16xf32>
    %315 = vector.broadcast %312 : f32 to vector<2x16x16xf32>
    %316 = arith.mulf %315, %314 : vector<2x16x16xf32>
    %317 = arith.addf %281, %316 : vector<2x16x16xf32>
    %318 = vector.extract_strided_slice %34 {offsets = [0, 11, 0], sizes = [2, 16, 16], strides = [1, 1, 1]} : vector<2x27x16xf32> to vector<2x16x16xf32>
    %319 = vector.broadcast %313 : f32 to vector<2x16x16xf32>
    %320 = arith.mulf %319, %318 : vector<2x16x16xf32>
    %321 = arith.addf %317, %320 : vector<2x16x16xf32>
    %c4 = arith.constant 4 : index
    %322 = memref.load %arg1[%c4] : memref<98xf32, #tpu.memory_space<smem>>
    %c53 = arith.constant 53 : index
    %323 = memref.load %arg1[%c53] : memref<98xf32, #tpu.memory_space<smem>>
    %324 = vector.extract_strided_slice %28 {offsets = [0, 5, 0], sizes = [2, 16, 16], strides = [1, 1, 1]} : vector<2x27x16xf32> to vector<2x16x16xf32>
    %325 = vector.broadcast %322 : f32 to vector<2x16x16xf32>
    %326 = arith.mulf %325, %324 : vector<2x16x16xf32>
    %327 = arith.addf %291, %326 : vector<2x16x16xf32>
    %328 = vector.extract_strided_slice %35 {offsets = [0, 5, 0], sizes = [2, 16, 16], strides = [1, 1, 1]} : vector<2x27x16xf32> to vector<2x16x16xf32>
    %329 = vector.broadcast %323 : f32 to vector<2x16x16xf32>
    %330 = arith.mulf %329, %328 : vector<2x16x16xf32>
    %331 = arith.addf %327, %330 : vector<2x16x16xf32>
    %c11 = arith.constant 11 : index
    %332 = memref.load %arg1[%c11] : memref<98xf32, #tpu.memory_space<smem>>
    %c60 = arith.constant 60 : index
    %333 = memref.load %arg1[%c60] : memref<98xf32, #tpu.memory_space<smem>>
    %334 = vector.extract_strided_slice %28 {offsets = [0, 6, 0], sizes = [2, 16, 16], strides = [1, 1, 1]} : vector<2x27x16xf32> to vector<2x16x16xf32>
    %335 = vector.broadcast %332 : f32 to vector<2x16x16xf32>
    %336 = arith.mulf %335, %334 : vector<2x16x16xf32>
    %337 = arith.addf %301, %336 : vector<2x16x16xf32>
    %338 = vector.extract_strided_slice %35 {offsets = [0, 6, 0], sizes = [2, 16, 16], strides = [1, 1, 1]} : vector<2x27x16xf32> to vector<2x16x16xf32>
    %339 = vector.broadcast %333 : f32 to vector<2x16x16xf32>
    %340 = arith.mulf %339, %338 : vector<2x16x16xf32>
    %341 = arith.addf %337, %340 : vector<2x16x16xf32>
    %c18 = arith.constant 18 : index
    %342 = memref.load %arg1[%c18] : memref<98xf32, #tpu.memory_space<smem>>
    %c67 = arith.constant 67 : index
    %343 = memref.load %arg1[%c67] : memref<98xf32, #tpu.memory_space<smem>>
    %344 = vector.extract_strided_slice %28 {offsets = [0, 7, 0], sizes = [2, 16, 16], strides = [1, 1, 1]} : vector<2x27x16xf32> to vector<2x16x16xf32>
    %345 = vector.broadcast %342 : f32 to vector<2x16x16xf32>
    %346 = arith.mulf %345, %344 : vector<2x16x16xf32>
    %347 = arith.addf %311, %346 : vector<2x16x16xf32>
    %348 = vector.extract_strided_slice %35 {offsets = [0, 7, 0], sizes = [2, 16, 16], strides = [1, 1, 1]} : vector<2x27x16xf32> to vector<2x16x16xf32>
    %349 = vector.broadcast %343 : f32 to vector<2x16x16xf32>
    %350 = arith.mulf %349, %348 : vector<2x16x16xf32>
    %351 = arith.addf %347, %350 : vector<2x16x16xf32>
    %c25 = arith.constant 25 : index
    %352 = memref.load %arg1[%c25] : memref<98xf32, #tpu.memory_space<smem>>
    %c74 = arith.constant 74 : index
    %353 = memref.load %arg1[%c74] : memref<98xf32, #tpu.memory_space<smem>>
    %354 = vector.extract_strided_slice %28 {offsets = [0, 8, 0], sizes = [2, 16, 16], strides = [1, 1, 1]} : vector<2x27x16xf32> to vector<2x16x16xf32>
    %355 = vector.broadcast %352 : f32 to vector<2x16x16xf32>
    %356 = arith.mulf %355, %354 : vector<2x16x16xf32>
    %357 = arith.addf %321, %356 : vector<2x16x16xf32>
    %358 = vector.extract_strided_slice %35 {offsets = [0, 8, 0], sizes = [2, 16, 16], strides = [1, 1, 1]} : vector<2x27x16xf32> to vector<2x16x16xf32>
    %359 = vector.broadcast %353 : f32 to vector<2x16x16xf32>
    %360 = arith.mulf %359, %358 : vector<2x16x16xf32>
    %361 = arith.addf %357, %360 : vector<2x16x16xf32>
    %c32 = arith.constant 32 : index
    %362 = memref.load %arg1[%c32] : memref<98xf32, #tpu.memory_space<smem>>
    %c81 = arith.constant 81 : index
    %363 = memref.load %arg1[%c81] : memref<98xf32, #tpu.memory_space<smem>>
    %364 = vector.extract_strided_slice %28 {offsets = [0, 9, 0], sizes = [2, 16, 16], strides = [1, 1, 1]} : vector<2x27x16xf32> to vector<2x16x16xf32>
    %365 = vector.broadcast %362 : f32 to vector<2x16x16xf32>
    %366 = arith.mulf %365, %364 : vector<2x16x16xf32>
    %367 = arith.addf %331, %366 : vector<2x16x16xf32>
    %368 = vector.extract_strided_slice %35 {offsets = [0, 9, 0], sizes = [2, 16, 16], strides = [1, 1, 1]} : vector<2x27x16xf32> to vector<2x16x16xf32>
    %369 = vector.broadcast %363 : f32 to vector<2x16x16xf32>
    %370 = arith.mulf %369, %368 : vector<2x16x16xf32>
    %371 = arith.addf %367, %370 : vector<2x16x16xf32>
    %c39 = arith.constant 39 : index
    %372 = memref.load %arg1[%c39] : memref<98xf32, #tpu.memory_space<smem>>
    %c88 = arith.constant 88 : index
    %373 = memref.load %arg1[%c88] : memref<98xf32, #tpu.memory_space<smem>>
    %374 = vector.extract_strided_slice %28 {offsets = [0, 10, 0], sizes = [2, 16, 16], strides = [1, 1, 1]} : vector<2x27x16xf32> to vector<2x16x16xf32>
    %375 = vector.broadcast %372 : f32 to vector<2x16x16xf32>
    %376 = arith.mulf %375, %374 : vector<2x16x16xf32>
    %377 = arith.addf %341, %376 : vector<2x16x16xf32>
    %378 = vector.extract_strided_slice %35 {offsets = [0, 10, 0], sizes = [2, 16, 16], strides = [1, 1, 1]} : vector<2x27x16xf32> to vector<2x16x16xf32>
    %379 = vector.broadcast %373 : f32 to vector<2x16x16xf32>
    %380 = arith.mulf %379, %378 : vector<2x16x16xf32>
    %381 = arith.addf %377, %380 : vector<2x16x16xf32>
    %c46 = arith.constant 46 : index
    %382 = memref.load %arg1[%c46] : memref<98xf32, #tpu.memory_space<smem>>
    %c95 = arith.constant 95 : index
    %383 = memref.load %arg1[%c95] : memref<98xf32, #tpu.memory_space<smem>>
    %384 = vector.extract_strided_slice %28 {offsets = [0, 11, 0], sizes = [2, 16, 16], strides = [1, 1, 1]} : vector<2x27x16xf32> to vector<2x16x16xf32>
    %385 = vector.broadcast %382 : f32 to vector<2x16x16xf32>
    %386 = arith.mulf %385, %384 : vector<2x16x16xf32>
    %387 = arith.addf %351, %386 : vector<2x16x16xf32>
    %388 = vector.extract_strided_slice %35 {offsets = [0, 11, 0], sizes = [2, 16, 16], strides = [1, 1, 1]} : vector<2x27x16xf32> to vector<2x16x16xf32>
    %389 = vector.broadcast %383 : f32 to vector<2x16x16xf32>
    %390 = arith.mulf %389, %388 : vector<2x16x16xf32>
    %391 = arith.addf %387, %390 : vector<2x16x16xf32>
    %c5 = arith.constant 5 : index
    %392 = memref.load %arg1[%c5] : memref<98xf32, #tpu.memory_space<smem>>
    %c54 = arith.constant 54 : index
    %393 = memref.load %arg1[%c54] : memref<98xf32, #tpu.memory_space<smem>>
    %394 = vector.extract_strided_slice %29 {offsets = [0, 5, 0], sizes = [2, 16, 16], strides = [1, 1, 1]} : vector<2x27x16xf32> to vector<2x16x16xf32>
    %395 = vector.broadcast %392 : f32 to vector<2x16x16xf32>
    %396 = arith.mulf %395, %394 : vector<2x16x16xf32>
    %397 = arith.addf %361, %396 : vector<2x16x16xf32>
    %398 = vector.extract_strided_slice %36 {offsets = [0, 5, 0], sizes = [2, 16, 16], strides = [1, 1, 1]} : vector<2x27x16xf32> to vector<2x16x16xf32>
    %399 = vector.broadcast %393 : f32 to vector<2x16x16xf32>
    %400 = arith.mulf %399, %398 : vector<2x16x16xf32>
    %401 = arith.addf %397, %400 : vector<2x16x16xf32>
    %c12 = arith.constant 12 : index
    %402 = memref.load %arg1[%c12] : memref<98xf32, #tpu.memory_space<smem>>
    %c61 = arith.constant 61 : index
    %403 = memref.load %arg1[%c61] : memref<98xf32, #tpu.memory_space<smem>>
    %404 = vector.extract_strided_slice %29 {offsets = [0, 6, 0], sizes = [2, 16, 16], strides = [1, 1, 1]} : vector<2x27x16xf32> to vector<2x16x16xf32>
    %405 = vector.broadcast %402 : f32 to vector<2x16x16xf32>
    %406 = arith.mulf %405, %404 : vector<2x16x16xf32>
    %407 = arith.addf %371, %406 : vector<2x16x16xf32>
    %408 = vector.extract_strided_slice %36 {offsets = [0, 6, 0], sizes = [2, 16, 16], strides = [1, 1, 1]} : vector<2x27x16xf32> to vector<2x16x16xf32>
    %409 = vector.broadcast %403 : f32 to vector<2x16x16xf32>
    %410 = arith.mulf %409, %408 : vector<2x16x16xf32>
    %411 = arith.addf %407, %410 : vector<2x16x16xf32>
    %c19 = arith.constant 19 : index
    %412 = memref.load %arg1[%c19] : memref<98xf32, #tpu.memory_space<smem>>
    %c68 = arith.constant 68 : index
    %413 = memref.load %arg1[%c68] : memref<98xf32, #tpu.memory_space<smem>>
    %414 = vector.extract_strided_slice %29 {offsets = [0, 7, 0], sizes = [2, 16, 16], strides = [1, 1, 1]} : vector<2x27x16xf32> to vector<2x16x16xf32>
    %415 = vector.broadcast %412 : f32 to vector<2x16x16xf32>
    %416 = arith.mulf %415, %414 : vector<2x16x16xf32>
    %417 = arith.addf %381, %416 : vector<2x16x16xf32>
    %418 = vector.extract_strided_slice %36 {offsets = [0, 7, 0], sizes = [2, 16, 16], strides = [1, 1, 1]} : vector<2x27x16xf32> to vector<2x16x16xf32>
    %419 = vector.broadcast %413 : f32 to vector<2x16x16xf32>
    %420 = arith.mulf %419, %418 : vector<2x16x16xf32>
    %421 = arith.addf %417, %420 : vector<2x16x16xf32>
    %c26 = arith.constant 26 : index
    %422 = memref.load %arg1[%c26] : memref<98xf32, #tpu.memory_space<smem>>
    %c75 = arith.constant 75 : index
    %423 = memref.load %arg1[%c75] : memref<98xf32, #tpu.memory_space<smem>>
    %424 = vector.extract_strided_slice %29 {offsets = [0, 8, 0], sizes = [2, 16, 16], strides = [1, 1, 1]} : vector<2x27x16xf32> to vector<2x16x16xf32>
    %425 = vector.broadcast %422 : f32 to vector<2x16x16xf32>
    %426 = arith.mulf %425, %424 : vector<2x16x16xf32>
    %427 = arith.addf %391, %426 : vector<2x16x16xf32>
    %428 = vector.extract_strided_slice %36 {offsets = [0, 8, 0], sizes = [2, 16, 16], strides = [1, 1, 1]} : vector<2x27x16xf32> to vector<2x16x16xf32>
    %429 = vector.broadcast %423 : f32 to vector<2x16x16xf32>
    %430 = arith.mulf %429, %428 : vector<2x16x16xf32>
    %431 = arith.addf %427, %430 : vector<2x16x16xf32>
    %c33 = arith.constant 33 : index
    %432 = memref.load %arg1[%c33] : memref<98xf32, #tpu.memory_space<smem>>
    %c82 = arith.constant 82 : index
    %433 = memref.load %arg1[%c82] : memref<98xf32, #tpu.memory_space<smem>>
    %434 = vector.extract_strided_slice %29 {offsets = [0, 9, 0], sizes = [2, 16, 16], strides = [1, 1, 1]} : vector<2x27x16xf32> to vector<2x16x16xf32>
    %435 = vector.broadcast %432 : f32 to vector<2x16x16xf32>
    %436 = arith.mulf %435, %434 : vector<2x16x16xf32>
    %437 = arith.addf %401, %436 : vector<2x16x16xf32>
    %438 = vector.extract_strided_slice %36 {offsets = [0, 9, 0], sizes = [2, 16, 16], strides = [1, 1, 1]} : vector<2x27x16xf32> to vector<2x16x16xf32>
    %439 = vector.broadcast %433 : f32 to vector<2x16x16xf32>
    %440 = arith.mulf %439, %438 : vector<2x16x16xf32>
    %441 = arith.addf %437, %440 : vector<2x16x16xf32>
    %c40 = arith.constant 40 : index
    %442 = memref.load %arg1[%c40] : memref<98xf32, #tpu.memory_space<smem>>
    %c89 = arith.constant 89 : index
    %443 = memref.load %arg1[%c89] : memref<98xf32, #tpu.memory_space<smem>>
    %444 = vector.extract_strided_slice %29 {offsets = [0, 10, 0], sizes = [2, 16, 16], strides = [1, 1, 1]} : vector<2x27x16xf32> to vector<2x16x16xf32>
    %445 = vector.broadcast %442 : f32 to vector<2x16x16xf32>
    %446 = arith.mulf %445, %444 : vector<2x16x16xf32>
    %447 = arith.addf %411, %446 : vector<2x16x16xf32>
    %448 = vector.extract_strided_slice %36 {offsets = [0, 10, 0], sizes = [2, 16, 16], strides = [1, 1, 1]} : vector<2x27x16xf32> to vector<2x16x16xf32>
    %449 = vector.broadcast %443 : f32 to vector<2x16x16xf32>
    %450 = arith.mulf %449, %448 : vector<2x16x16xf32>
    %451 = arith.addf %447, %450 : vector<2x16x16xf32>
    %c47 = arith.constant 47 : index
    %452 = memref.load %arg1[%c47] : memref<98xf32, #tpu.memory_space<smem>>
    %c96 = arith.constant 96 : index
    %453 = memref.load %arg1[%c96] : memref<98xf32, #tpu.memory_space<smem>>
    %454 = vector.extract_strided_slice %29 {offsets = [0, 11, 0], sizes = [2, 16, 16], strides = [1, 1, 1]} : vector<2x27x16xf32> to vector<2x16x16xf32>
    %455 = vector.broadcast %452 : f32 to vector<2x16x16xf32>
    %456 = arith.mulf %455, %454 : vector<2x16x16xf32>
    %457 = arith.addf %421, %456 : vector<2x16x16xf32>
    %458 = vector.extract_strided_slice %36 {offsets = [0, 11, 0], sizes = [2, 16, 16], strides = [1, 1, 1]} : vector<2x27x16xf32> to vector<2x16x16xf32>
    %459 = vector.broadcast %453 : f32 to vector<2x16x16xf32>
    %460 = arith.mulf %459, %458 : vector<2x16x16xf32>
    %461 = arith.addf %457, %460 : vector<2x16x16xf32>
    %c6 = arith.constant 6 : index
    %462 = memref.load %arg1[%c6] : memref<98xf32, #tpu.memory_space<smem>>
    %c55 = arith.constant 55 : index
    %463 = memref.load %arg1[%c55] : memref<98xf32, #tpu.memory_space<smem>>
    %464 = vector.extract_strided_slice %30 {offsets = [0, 5, 0], sizes = [2, 16, 16], strides = [1, 1, 1]} : vector<2x27x16xf32> to vector<2x16x16xf32>
    %465 = vector.broadcast %462 : f32 to vector<2x16x16xf32>
    %466 = arith.mulf %465, %464 : vector<2x16x16xf32>
    %467 = arith.addf %431, %466 : vector<2x16x16xf32>
    %468 = vector.extract_strided_slice %37 {offsets = [0, 5, 0], sizes = [2, 16, 16], strides = [1, 1, 1]} : vector<2x27x16xf32> to vector<2x16x16xf32>
    %469 = vector.broadcast %463 : f32 to vector<2x16x16xf32>
    %470 = arith.mulf %469, %468 : vector<2x16x16xf32>
    %471 = arith.addf %467, %470 : vector<2x16x16xf32>
    %c13 = arith.constant 13 : index
    %472 = memref.load %arg1[%c13] : memref<98xf32, #tpu.memory_space<smem>>
    %c62 = arith.constant 62 : index
    %473 = memref.load %arg1[%c62] : memref<98xf32, #tpu.memory_space<smem>>
    %474 = vector.extract_strided_slice %30 {offsets = [0, 6, 0], sizes = [2, 16, 16], strides = [1, 1, 1]} : vector<2x27x16xf32> to vector<2x16x16xf32>
    %475 = vector.broadcast %472 : f32 to vector<2x16x16xf32>
    %476 = arith.mulf %475, %474 : vector<2x16x16xf32>
    %477 = arith.addf %441, %476 : vector<2x16x16xf32>
    %478 = vector.extract_strided_slice %37 {offsets = [0, 6, 0], sizes = [2, 16, 16], strides = [1, 1, 1]} : vector<2x27x16xf32> to vector<2x16x16xf32>
    %479 = vector.broadcast %473 : f32 to vector<2x16x16xf32>
    %480 = arith.mulf %479, %478 : vector<2x16x16xf32>
    %481 = arith.addf %477, %480 : vector<2x16x16xf32>
    %c20 = arith.constant 20 : index
    %482 = memref.load %arg1[%c20] : memref<98xf32, #tpu.memory_space<smem>>
    %c69 = arith.constant 69 : index
    %483 = memref.load %arg1[%c69] : memref<98xf32, #tpu.memory_space<smem>>
    %484 = vector.extract_strided_slice %30 {offsets = [0, 7, 0], sizes = [2, 16, 16], strides = [1, 1, 1]} : vector<2x27x16xf32> to vector<2x16x16xf32>
    %485 = vector.broadcast %482 : f32 to vector<2x16x16xf32>
    %486 = arith.mulf %485, %484 : vector<2x16x16xf32>
    %487 = arith.addf %451, %486 : vector<2x16x16xf32>
    %488 = vector.extract_strided_slice %37 {offsets = [0, 7, 0], sizes = [2, 16, 16], strides = [1, 1, 1]} : vector<2x27x16xf32> to vector<2x16x16xf32>
    %489 = vector.broadcast %483 : f32 to vector<2x16x16xf32>
    %490 = arith.mulf %489, %488 : vector<2x16x16xf32>
    %491 = arith.addf %487, %490 : vector<2x16x16xf32>
    %c27 = arith.constant 27 : index
    %492 = memref.load %arg1[%c27] : memref<98xf32, #tpu.memory_space<smem>>
    %c76 = arith.constant 76 : index
    %493 = memref.load %arg1[%c76] : memref<98xf32, #tpu.memory_space<smem>>
    %494 = vector.extract_strided_slice %30 {offsets = [0, 8, 0], sizes = [2, 16, 16], strides = [1, 1, 1]} : vector<2x27x16xf32> to vector<2x16x16xf32>
    %495 = vector.broadcast %492 : f32 to vector<2x16x16xf32>
    %496 = arith.mulf %495, %494 : vector<2x16x16xf32>
    %497 = arith.addf %461, %496 : vector<2x16x16xf32>
    %498 = vector.extract_strided_slice %37 {offsets = [0, 8, 0], sizes = [2, 16, 16], strides = [1, 1, 1]} : vector<2x27x16xf32> to vector<2x16x16xf32>
    %499 = vector.broadcast %493 : f32 to vector<2x16x16xf32>
    %500 = arith.mulf %499, %498 : vector<2x16x16xf32>
    %501 = arith.addf %497, %500 : vector<2x16x16xf32>
    %c34 = arith.constant 34 : index
    %502 = memref.load %arg1[%c34] : memref<98xf32, #tpu.memory_space<smem>>
    %c83 = arith.constant 83 : index
    %503 = memref.load %arg1[%c83] : memref<98xf32, #tpu.memory_space<smem>>
    %504 = vector.extract_strided_slice %30 {offsets = [0, 9, 0], sizes = [2, 16, 16], strides = [1, 1, 1]} : vector<2x27x16xf32> to vector<2x16x16xf32>
    %505 = vector.broadcast %502 : f32 to vector<2x16x16xf32>
    %506 = arith.mulf %505, %504 : vector<2x16x16xf32>
    %507 = arith.addf %471, %506 : vector<2x16x16xf32>
    %508 = vector.extract_strided_slice %37 {offsets = [0, 9, 0], sizes = [2, 16, 16], strides = [1, 1, 1]} : vector<2x27x16xf32> to vector<2x16x16xf32>
    %509 = vector.broadcast %503 : f32 to vector<2x16x16xf32>
    %510 = arith.mulf %509, %508 : vector<2x16x16xf32>
    %511 = arith.addf %507, %510 : vector<2x16x16xf32>
    %c41 = arith.constant 41 : index
    %512 = memref.load %arg1[%c41] : memref<98xf32, #tpu.memory_space<smem>>
    %c90 = arith.constant 90 : index
    %513 = memref.load %arg1[%c90] : memref<98xf32, #tpu.memory_space<smem>>
    %514 = vector.extract_strided_slice %30 {offsets = [0, 10, 0], sizes = [2, 16, 16], strides = [1, 1, 1]} : vector<2x27x16xf32> to vector<2x16x16xf32>
    %515 = vector.broadcast %512 : f32 to vector<2x16x16xf32>
    %516 = arith.mulf %515, %514 : vector<2x16x16xf32>
    %517 = arith.addf %481, %516 : vector<2x16x16xf32>
    %518 = vector.extract_strided_slice %37 {offsets = [0, 10, 0], sizes = [2, 16, 16], strides = [1, 1, 1]} : vector<2x27x16xf32> to vector<2x16x16xf32>
    %519 = vector.broadcast %513 : f32 to vector<2x16x16xf32>
    %520 = arith.mulf %519, %518 : vector<2x16x16xf32>
    %521 = arith.addf %517, %520 : vector<2x16x16xf32>
    %c48 = arith.constant 48 : index
    %522 = memref.load %arg1[%c48] : memref<98xf32, #tpu.memory_space<smem>>
    %c97 = arith.constant 97 : index
    %523 = memref.load %arg1[%c97] : memref<98xf32, #tpu.memory_space<smem>>
    %524 = vector.extract_strided_slice %30 {offsets = [0, 11, 0], sizes = [2, 16, 16], strides = [1, 1, 1]} : vector<2x27x16xf32> to vector<2x16x16xf32>
    %525 = vector.broadcast %522 : f32 to vector<2x16x16xf32>
    %526 = arith.mulf %525, %524 : vector<2x16x16xf32>
    %527 = arith.addf %491, %526 : vector<2x16x16xf32>
    %528 = vector.extract_strided_slice %37 {offsets = [0, 11, 0], sizes = [2, 16, 16], strides = [1, 1, 1]} : vector<2x27x16xf32> to vector<2x16x16xf32>
    %529 = vector.broadcast %523 : f32 to vector<2x16x16xf32>
    %530 = arith.mulf %529, %528 : vector<2x16x16xf32>
    %531 = arith.addf %527, %530 : vector<2x16x16xf32>
    %532 = arith.addf %531, %501 : vector<2x16x16xf32>
    %533 = arith.addf %532, %511 : vector<2x16x16xf32>
    %534 = arith.addf %533, %521 : vector<2x16x16xf32>
    %535 = arith.negf %534 : vector<2x16x16xf32>
    %536 = math.exp %535 : vector<2x16x16xf32>
    %cst_39 = arith.constant 1.000000e+00 : f32
    %537 = vector.broadcast %cst_39 : f32 to vector<2x16x16xf32>
    %538 = arith.addf %537, %536 : vector<2x16x16xf32>
    %539 = arith.divf %537, %538 : vector<2x16x16xf32>
    %c0_40 = arith.constant 0 : index
    %c0_41 = arith.constant 0 : index
    %c0_42 = arith.constant 0 : index
    %540 = vector.load %arg3[%c0_40, %c0_41, %c0_42] : memref<2x16x16xf32, #tpu.memory_space<vmem>>, vector<2x16x16xf32>
    tpu.vector_store %arg3[%c0_40, %c0_41, %c0_42], %539 {strides = array<i32>} : memref<2x16x16xf32, #tpu.memory_space<vmem>>, vector<2x16x16xf32>,
    return
  }
  func.func @transform_0(%arg0: i32) -> i32 {
    %c0_i32 = arith.constant 0 : i32
    %c0_i32_0 = arith.constant 0 : i32
    return %c0_i32 : i32
  }
  func.func @transform_1(%arg0: i32) -> (i32, i32, i32, i32) {
    %c0_i32 = arith.constant 0 : i32
    %c0_i32_0 = arith.constant 0 : i32
    %c0_i32_1 = arith.constant 0 : i32
    %c0_i32_2 = arith.constant 0 : i32
    return %arg0, %c0_i32, %c0_i32_0, %c0_i32_1 : i32, i32, i32, i32
  }
  func.func @transform_2(%arg0: i32) -> (i32, i32, i32) {
    %c0_i32 = arith.constant 0 : i32
    %c0_i32_0 = arith.constant 0 : i32
    %c0_i32_1 = arith.constant 0 : i32
    return %arg0, %c0_i32, %c0_i32_0 : i32, i32, i32
  }
}

</mosaic_0001>

<llo_original>
// kernel: tpu_custom_call.1
$region0: #{tpu_custom_call.1}
  #allocation0 [shape = 'u32[]', space=smem, size = 0x4, offset = 0x4, fixed_abs, tag = 'smem constant byte address 0x4 - core index']
  #allocation1 [shape = 'u32[144,128]{1,0:T(1,128)}', space=vmem, size = 0x12000, scoped, tag = 'internal scratch']
  #allocation2 [shape = 'f32[2,27,147]{2,1,0:T(8,128)}', space=vmem, size = 0x10000, scoped, tag = 'scratch operand']
  #allocation3 [shape = 'f32[2,27,147]{2,1,0:T(8,128)}', space=vmem, size = 0x10000, scoped, tag = 'scratch operand']
  %s0 = inlined_call_operand.hbm [shape: f32[98], index: 0, kind: input, shape index: {}]
  %s1 = inlined_call_operand.hbm [shape: f32[2,4,16,16], index: 1, kind: input, shape index: {}]
  %s2 = inlined_call_operand.hbm [shape: f32[2,16,16], index: 2, kind: output, shape index: {}]
  %s3 = sld [smem:[#allocation0]]
  $region26: #{tpu_custom_call.1} parent=0
    _
  %s5 = ssub.s32 1, %s3
  %s6 = scalar_select 0, %s5, %s3
  $region1: #{tpu_custom_call.1} parent=0
    #allocation4 [shape = 'u8[512]{0}', space=smem, size = 0x200, scoped, tag = 'input window, operand 0, single buffered']
    #allocation5 [shape = 's32[1]{0}', space=sflag, size = 0x4, scoped, tag = 'scoped memory for tpu_custom_call.1']
    #allocation6 [shape = 's32[1]{0}', space=sflag, size = 0x4, scoped, tag = 'scoped memory for tpu_custom_call.1']
    #allocation7 [shape = 's32[1]{0}', space=sflag, size = 0x4, scoped, tag = 'scoped memory for tpu_custom_call.1']
    #allocation8 [shape = 'u8[65536]{0}', space=vmem, size = 0x10000, scoped, tag = 'input window, operand 1, single buffered']
    #allocation9 [shape = 'u8[16384]{0}', space=vmem, size = 0x4000, scoped, tag = 'output window, operand 0, single buffered']
    %7 = vsyncpa [#allocation7], 0
    %8 = vsyncpa [#allocation5], 0
    %9 = vsyncpa [#allocation6], 0
    // Predicated region
    $region2: #{tpu_custom_call.1} parent=1 // pred_check
      _
    $region3: #{tpu_custom_call.1} parent=1 // pred_check_branch
      %11 = sbr.rel (0) target = $region5
    $region4: #{tpu_custom_call.1} parent=1 // pred_region
      %s13 = ssub.s32 16, 16
      %14 = vsyncadd [#allocation7], %s13
      %17 = dma.hbm_to_smem %s0, 16, [#allocation4], [#allocation7]
    $region5: #{tpu_custom_call.1} parent=1 // pred_fallthru
      _
    // Predicated region
    $region6: #{tpu_custom_call.1} parent=1 // pred_check
      _
    $region7: #{tpu_custom_call.1} parent=1 // pred_check_branch
      %19 = sbr.rel (0) target = $region9
    $region8: #{tpu_custom_call.1} parent=1 // pred_region
      %s21 = ssub.s32 2048, 2048
      %22 = vsyncadd [#allocation5], %s21
      %s23 = sshll.u32 [#allocation8], 4
      %s24 = int_to_ptr.vmem [resolvable:$true] %s23
      %29 = dma.hbm_to_vmem [thread:$0]  %s1, 2048, %s24, [#allocation5], 128, 128, 8
    $region9: #{tpu_custom_call.1} parent=1 // pred_fallthru
      _
    // Predicated region
    $region10: #{tpu_custom_call.1} parent=1 // pred_check
      _
    $region11: #{tpu_custom_call.1} parent=1 // pred_check_branch
      %31 = sbr.rel (0) target = $region13
    $region12: #{tpu_custom_call.1} parent=1 // pred_region
      %32 = dma.done [#allocation7], 16
    $region13: #{tpu_custom_call.1} parent=1 // pred_fallthru
      _
    // Predicated region
    $region14: #{tpu_custom_call.1} parent=1 // pred_check
      _
    $region15: #{tpu_custom_call.1} parent=1 // pred_check_branch
      %34 = sbr.rel (0) target = $region17
    $region16: #{tpu_custom_call.1} parent=1 // pred_region
      %35 = dma.done [#allocation5], 2048
    $region17: #{tpu_custom_call.1} parent=1 // pred_fallthru
      _
    %36 = sfence
    %v37 = vld [vmem:[#allocation8] sm:$0xff]
    %v38 = vld [vmem:[#allocation8 + $0x8] sm:$0xff]
    %v39 = vld [vmem:[#allocation8 + $0x40] sm:$0xff]
    %v40 = vld [vmem:[#allocation8 + $0x48] sm:$0xff]
    %s41 = scalar_lea.vmem [#allocation8], 16
    %v42 = vld [vmem:[%s41] sm:$0xff]
    %v43 = vld [vmem:[%s41 + $0x8] sm:$0xff]
    %v44 = vld [vmem:[%s41 + $0x40] sm:$0xff]
    %v45 = vld [vmem:[%s41 + $0x48] sm:$0xff]
    %v46 = vadd.f32 %v37, %v42
    %v47 = vadd.f32 %v38, %v43
    %v48 = vadd.f32 %v39, %v44
    %v49 = vadd.f32 %v40, %v45
    %v50 = vmax.f32 %v37, %v42
    %v51 = vmax.f32 %v38, %v43
    %v52 = vmax.f32 %v39, %v44
    %v53 = vmax.f32 %v40, %v45
    %s54 = scalar_lea.vmem [#allocation8], 32
    %v55 = vld [vmem:[%s54] sm:$0xff]
    %v56 = vld [vmem:[%s54 + $0x8] sm:$0xff]
    %v57 = vld [vmem:[%s54 + $0x40] sm:$0xff]
    %v58 = vld [vmem:[%s54 + $0x48] sm:$0xff]
    %v59 = vadd.f32 %v46, %v55
    %v60 = vadd.f32 %v47, %v56
    %v61 = vadd.f32 %v48, %v57
    %v62 = vadd.f32 %v49, %v58
    %v63 = vmax.f32 %v50, %v55
    %v64 = vmax.f32 %v51, %v56
    %v65 = vmax.f32 %v52, %v57
    %v66 = vmax.f32 %v53, %v58
    %s67 = scalar_lea.vmem [#allocation8], 48
    %v68 = vld [vmem:[%s67] sm:$0xff]
    %v69 = vld [vmem:[%s67 + $0x8] sm:$0xff]
    %v70 = vld [vmem:[%s67 + $0x40] sm:$0xff]
    %v71 = vld [vmem:[%s67 + $0x48] sm:$0xff]
    %v72 = vadd.f32 %v59, %v68
    %v73 = vadd.f32 %v60, %v69
    %v74 = vadd.f32 %v61, %v70
    %v75 = vadd.f32 %v62, %v71
    %v76 = vmax.f32 %v63, %v68
    %v77 = vmax.f32 %v64, %v69
    %v78 = vmax.f32 %v65, %v70
    %v79 = vmax.f32 %v66, %v71
    %v80 = vmul.f32 %v72, 0.25
    %v81 = vmul.f32 %v73, 0.25
    %v82 = vmul.f32 %v74, 0.25
    %v83 = vmul.f32 %v75, 0.25
    %84 = vst [vmem:[#allocation2] sm:$0xff] 0.0
    %vm85 = vcmask 154624
    %86 = vst.msk [vmem:[#allocation2 + $0x8] sm:$0xff] %vm85, 0.0
    %87 = vst [vmem:[#allocation2 + $0x10] sm:$0xff] 0.0
    %88 = vst.msk [vmem:[#allocation2 + $0x18] sm:$0xff] %vm85, 0.0
    %89 = vst [vmem:[#allocation2 + $0x20] sm:$0xff] 0.0
    %90 = vst.msk [vmem:[#allocation2 + $0x28] sm:$0xff] %vm85, 0.0
    %91 = vst [vmem:[#allocation2 + $0x30] sm:$0x7] 0.0
    %vm92 = vcmask 149504
    %93 = vst.msk [vmem:[#allocation2 + $0x38] sm:$0x7] %vm92, 0.0
    %94 = vst [vmem:[#allocation2 + $0x40] sm:$0xff] 0.0
    %95 = vst.msk [vmem:[#allocation2 + $0x48] sm:$0xff] %vm85, 0.0
    %96 = vst [vmem:[#allocation2 + $0x50] sm:$0xff] 0.0
    %97 = vst.msk [vmem:[#allocation2 + $0x58] sm:$0xff] %vm85, 0.0
    %98 = vst [vmem:[#allocation2 + $0x60] sm:$0xff] 0.0
    %99 = vst.msk [vmem:[#allocation2 + $0x68] sm:$0xff] %vm85, 0.0
    %100 = vst [vmem:[#allocation2 + $0x70] sm:$0x7] 0.0
    %101 = vst.msk [vmem:[#allocation2 + $0x78] sm:$0x7] %vm92, 0.0
    %102 = vst [vmem:[#allocation3] sm:$0xff] 0.0
    %103 = vst.msk [vmem:[#allocation3 + $0x8] sm:$0xff] %vm85, 0.0
    %104 = vst [vmem:[#allocation3 + $0x10] sm:$0xff] 0.0
    %105 = vst.msk [vmem:[#allocation3 + $0x18] sm:$0xff] %vm85, 0.0
    %106 = vst [vmem:[#allocation3 + $0x20] sm:$0xff] 0.0
    %107 = vst.msk [vmem:[#allocation3 + $0x28] sm:$0xff] %vm85, 0.0
    %108 = vst [vmem:[#allocation3 + $0x30] sm:$0x7] 0.0
    %109 = vst.msk [vmem:[#allocation3 + $0x38] sm:$0x7] %vm92, 0.0
    %110 = vst [vmem:[#allocation3 + $0x40] sm:$0xff] 0.0
    %111 = vst.msk [vmem:[#allocation3 + $0x48] sm:$0xff] %vm85, 0.0
    %112 = vst [vmem:[#allocation3 + $0x50] sm:$0xff] 0.0
    %113 = vst.msk [vmem:[#allocation3 + $0x58] sm:$0xff] %vm85, 0.0
    %114 = vst [vmem:[#allocation3 + $0x60] sm:$0xff] 0.0
    %115 = vst.msk [vmem:[#allocation3 + $0x68] sm:$0xff] %vm85, 0.0
    %116 = vst [vmem:[#allocation3 + $0x70] sm:$0x7] 0.0
    %117 = vst.msk [vmem:[#allocation3 + $0x78] sm:$0x7] %vm92, 0.0
    %vm118 = vcmask 130048
    %119 = vst.msk [vmem:[#allocation2 + $0x18] sm:$0xff] %vm118, %v80
    %120 = vst.msk [vmem:[#allocation2 + $0x28] sm:$0xff] %vm118, %v81
    %121 = vst.msk [vmem:[#allocation2 + $0x58] sm:$0xff] %vm118, %v82
    %122 = vst.msk [vmem:[#allocation2 + $0x68] sm:$0xff] %vm118, %v83
    %123 = vst.msk [vmem:[#allocation3 + $0x18] sm:$0xff] %vm118, %v76
    %124 = vst.msk [vmem:[#allocation3 + $0x28] sm:$0xff] %vm118, %v77
    %125 = vst.msk [vmem:[#allocation3 + $0x58] sm:$0xff] %vm118, %v78
    %126 = vst.msk [vmem:[#allocation3 + $0x68] sm:$0xff] %vm118, %v79
    %v127 = vld [vmem:[#allocation2] sm:$0xff]
    %v128 = vld [vmem:[#allocation2 + $0x8] sm:$0xff]
    %v129 = vld [vmem:[#allocation2 + $0x10] sm:$0xff]
    %v130 = vld [vmem:[#allocation2 + $0x18] sm:$0xff]
    %v131 = vld [vmem:[#allocation2 + $0x20] sm:$0xff]
    %v132 = vld [vmem:[#allocation2 + $0x28] sm:$0xff]
    %v133 = vld [vmem:[#allocation2 + $0x30] sm:$0x7]
    %v134 = vld [vmem:[#allocation2 + $0x38] sm:$0x7]
    %v135 = vld [vmem:[#allocation2 + $0x40] sm:$0xff]
    %v136 = vld [vmem:[#allocation2 + $0x48] sm:$0xff]
    %v137 = vld [vmem:[#allocation2 + $0x50] sm:$0xff]
    %v138 = vld [vmem:[#allocation2 + $0x58] sm:$0xff]
    %v139 = vld [vmem:[#allocation2 + $0x60] sm:$0xff]
    %v140 = vld [vmem:[#allocation2 + $0x68] sm:$0xff]
    %v141 = vld [vmem:[#allocation2 + $0x70] sm:$0x7]
    %v142 = vld [vmem:[#allocation2 + $0x78] sm:$0x7]
    %v143 = vld [vmem:[#allocation3] sm:$0xff]
    %v144 = vld [vmem:[#allocation3 + $0x8] sm:$0xff]
    %v145 = vld [vmem:[#allocation3 + $0x10] sm:$0xff]
    %v146 = vld [vmem:[#allocation3 + $0x18] sm:$0xff]
    %v147 = vld [vmem:[#allocation3 + $0x20] sm:$0xff]
    %v148 = vld [vmem:[#allocation3 + $0x28] sm:$0xff]
    %v149 = vld [vmem:[#allocation3 + $0x30] sm:$0x7]
    %v150 = vld [vmem:[#allocation3 + $0x38] sm:$0x7]
    %v151 = vld [vmem:[#allocation3 + $0x40] sm:$0xff]
    %v152 = vld [vmem:[#allocation3 + $0x48] sm:$0xff]
    %v153 = vld [vmem:[#allocation3 + $0x50] sm:$0xff]
    %v154 = vld [vmem:[#allocation3 + $0x58] sm:$0xff]
    %v155 = vld [vmem:[#allocation3 + $0x60] sm:$0xff]
    %v156 = vld [vmem:[#allocation3 + $0x68] sm:$0xff]
    %v157 = vld [vmem:[#allocation3 + $0x70] sm:$0x7]
    %v158 = vld [vmem:[#allocation3 + $0x78] sm:$0x7]
    %s159 = sld [smem:[#allocation4]]
    %s160 = sld [smem:[#allocation4 + $0x31]]
    %v161 = vstv %s159
    %v162 = vmul.f32 %v161, %v127
    %v163 = vmul.f32 %v161, %v128
    %v164 = vmul.f32 %v161, %v129
    %v165 = vmul.f32 %v161, %v130
    %v166 = vmul.f32 %v161, %v131
    %v167 = vmul.f32 %v161, %v132
    %v168 = vmul.f32 %v161, %v135
    %v169 = vmul.f32 %v161, %v136
    %v170 = vmul.f32 %v161, %v137
    %v171 = vmul.f32 %v161, %v138
    %v172 = vmul.f32 %v161, %v139
    %v173 = vmul.f32 %v161, %v140
    %v174 = vadd.f32 %v162, 0.0
    %v175 = vadd.f32 %v163, 0.0
    %v176 = vadd.f32 %v164, 0.0
    %v177 = vadd.f32 %v165, 0.0
    %v178 = vadd.f32 %v166, 0.0
    %v179 = vadd.f32 %v167, 0.0
    %v180 = vadd.f32 %v168, 0.0
    %v181 = vadd.f32 %v169, 0.0
    %v182 = vadd.f32 %v170, 0.0
    %v183 = vadd.f32 %v171, 0.0
    %v184 = vadd.f32 %v172, 0.0
    %v185 = vadd.f32 %v173, 0.0
    %v186 = vstv %s160
    %v187 = vmul.f32 %v186, %v143
    %v188 = vmul.f32 %v186, %v144
    %v189 = vmul.f32 %v186, %v145
    %v190 = vmul.f32 %v186, %v146
    %v191 = vmul.f32 %v186, %v147
    %v192 = vmul.f32 %v186, %v148
    %v193 = vmul.f32 %v186, %v151
    %v194 = vmul.f32 %v186, %v152
    %v195 = vmul.f32 %v186, %v153
    %v196 = vmul.f32 %v186, %v154
    %v197 = vmul.f32 %v186, %v155
    %v198 = vmul.f32 %v186, %v156
    %v199 = vadd.f32 %v174, %v187
    %v200 = vadd.f32 %v175, %v188
    %v201 = vadd.f32 %v176, %v189
    %v202 = vadd.f32 %v177, %v190
    %v203 = vadd.f32 %v178, %v191
    %v204 = vadd.f32 %v179, %v192
    %v205 = vadd.f32 %v180, %v193
    %v206 = vadd.f32 %v181, %v194
    %v207 = vadd.f32 %v182, %v195
    %v208 = vadd.f32 %v183, %v196
    %v209 = vadd.f32 %v184, %v197
    %v210 = vadd.f32 %v185, %v198
    %s211 = sld [smem:[#allocation4 + $0x7]]
    %s212 = sld [smem:[#allocation4 + $0x38]]
    %v213 = vstv %s211
    %v214 = vmul.f32 %v213, %v127
    %v215 = vmul.f32 %v213, %v128
    %v216 = vmul.f32 %v213, %v129
    %v217 = vmul.f32 %v213, %v130
    %v218 = vmul.f32 %v213, %v131
    %v219 = vmul.f32 %v213, %v132
    %v220 = vmul.f32 %v213, %v135
    %v221 = vmul.f32 %v213, %v136
    %v222 = vmul.f32 %v213, %v137
    %v223 = vmul.f32 %v213, %v138
    %v224 = vmul.f32 %v213, %v139
    %v225 = vmul.f32 %v213, %v140
    %v226 = vadd.f32 %v214, 0.0
    %v227 = vadd.f32 %v215, 0.0
    %v228 = vadd.f32 %v216, 0.0
    %v229 = vadd.f32 %v217, 0.0
    %v230 = vadd.f32 %v218, 0.0
    %v231 = vadd.f32 %v219, 0.0
    %v232 = vadd.f32 %v220, 0.0
    %v233 = vadd.f32 %v221, 0.0
    %v234 = vadd.f32 %v222, 0.0
    %v235 = vadd.f32 %v223, 0.0
    %v236 = vadd.f32 %v224, 0.0
    %v237 = vadd.f32 %v225, 0.0
    %v238 = vstv %s212
    %v239 = vmul.f32 %v238, %v143
    %v240 = vmul.f32 %v238, %v144
    %v241 = vmul.f32 %v238, %v145
    %v242 = vmul.f32 %v238, %v146
    %v243 = vmul.f32 %v238, %v147
    %v244 = vmul.f32 %v238, %v148
    %v245 = vmul.f32 %v238, %v151
    %v246 = vmul.f32 %v238, %v152
    %v247 = vmul.f32 %v238, %v153
    %v248 = vmul.f32 %v238, %v154
    %v249 = vmul.f32 %v238, %v155
    %v250 = vmul.f32 %v238, %v156
    %v251 = vadd.f32 %v226, %v239
    %v252 = vadd.f32 %v227, %v240
    %v253 = vadd.f32 %v228, %v241
    %v254 = vadd.f32 %v229, %v242
    %v255 = vadd.f32 %v230, %v243
    %v256 = vadd.f32 %v231, %v244
    %v257 = vadd.f32 %v232, %v245
    %v258 = vadd.f32 %v233, %v246
    %v259 = vadd.f32 %v234, %v247
    %v260 = vadd.f32 %v235, %v248
    %v261 = vadd.f32 %v236, %v249
    %v262 = vadd.f32 %v237, %v250
    %s263 = sld [smem:[#allocation4 + $0xe]]
    %s264 = sld [smem:[#allocation4 + $0x3f]]
    %v265 = vstv %s263
    %v266 = vmul.f32 %v265, %v127
    %v267 = vmul.f32 %v265, %v128
    %v268 = vmul.f32 %v265, %v129
    %v269 = vmul.f32 %v265, %v130
    %v270 = vmul.f32 %v265, %v131
    %v271 = vmul.f32 %v265, %v132
    %v272 = vmul.f32 %v265, %v135
    %v273 = vmul.f32 %v265, %v136
    %v274 = vmul.f32 %v265, %v137
    %v275 = vmul.f32 %v265, %v138
    %v276 = vmul.f32 %v265, %v139
    %v277 = vmul.f32 %v265, %v140
    %v278 = vadd.f32 %v266, 0.0
    %v279 = vadd.f32 %v267, 0.0
    %v280 = vadd.f32 %v268, 0.0
    %v281 = vadd.f32 %v269, 0.0
    %v282 = vadd.f32 %v270, 0.0
    %v283 = vadd.f32 %v271, 0.0
    %v284 = vadd.f32 %v272, 0.0
    %v285 = vadd.f32 %v273, 0.0
    %v286 = vadd.f32 %v274, 0.0
    %v287 = vadd.f32 %v275, 0.0
    %v288 = vadd.f32 %v276, 0.0
    %v289 = vadd.f32 %v277, 0.0
    %v290 = vstv %s264
    %v291 = vmul.f32 %v290, %v143
    %v292 = vmul.f32 %v290, %v144
    %v293 = vmul.f32 %v290, %v145
    %v294 = vmul.f32 %v290, %v146
    %v295 = vmul.f32 %v290, %v147
    %v296 = vmul.f32 %v290, %v148
    %v297 = vmul.f32 %v290, %v151
    %v298 = vmul.f32 %v290, %v152
    %v299 = vmul.f32 %v290, %v153
    %v300 = vmul.f32 %v290, %v154
    %v301 = vmul.f32 %v290, %v155
    %v302 = vmul.f32 %v290, %v156
    %v303 = vadd.f32 %v278, %v291
    %v304 = vadd.f32 %v279, %v292
    %v305 = vadd.f32 %v280, %v293
    %v306 = vadd.f32 %v281, %v294
    %v307 = vadd.f32 %v282, %v295
    %v308 = vadd.f32 %v283, %v296
    %v309 = vadd.f32 %v284, %v297
    %v310 = vadd.f32 %v285, %v298
    %v311 = vadd.f32 %v286, %v299
    %v312 = vadd.f32 %v287, %v300
    %v313 = vadd.f32 %v288, %v301
    %v314 = vadd.f32 %v289, %v302
    %s315 = sld [smem:[#allocation4 + $0x15]]
    %s316 = sld [smem:[#allocation4 + $0x46]]
    %v317 = vstv %s315
    %v318 = vmul.f32 %v317, %v129
    %v319 = vmul.f32 %v317, %v130
    %v320 = vmul.f32 %v317, %v131
    %v321 = vmul.f32 %v317, %v132
    %v322 = vmul.f32 %v317, %v137
    %v323 = vmul.f32 %v317, %v138
    %v324 = vmul.f32 %v317, %v139
    %v325 = vmul.f32 %v317, %v140
    %v326 = vadd.f32 %v318, 0.0
    %v327 = vadd.f32 %v319, 0.0
    %v328 = vadd.f32 %v320, 0.0
    %v329 = vadd.f32 %v321, 0.0
    %v330 = vadd.f32 %v322, 0.0
    %v331 = vadd.f32 %v323, 0.0
    %v332 = vadd.f32 %v324, 0.0
    %v333 = vadd.f32 %v325, 0.0
    %v334 = vstv %s316
    %v335 = vmul.f32 %v334, %v145
    %v336 = vmul.f32 %v334, %v146
    %v337 = vmul.f32 %v334, %v147
    %v338 = vmul.f32 %v334, %v148
    %v339 = vmul.f32 %v334, %v153
    %v340 = vmul.f32 %v334, %v154
    %v341 = vmul.f32 %v334, %v155
    %v342 = vmul.f32 %v334, %v156
    %v343 = vadd.f32 %v326, %v335
    %v344 = vadd.f32 %v327, %v336
    %v345 = vadd.f32 %v328, %v337
    %v346 = vadd.f32 %v329, %v338
    %v347 = vadd.f32 %v330, %v339
    %v348 = vadd.f32 %v331, %v340
    %v349 = vadd.f32 %v332, %v341
    %v350 = vadd.f32 %v333, %v342
    %s351 = sld [smem:[#allocation4 + $0x1c]]
    %s352 = sld [smem:[#allocation4 + $0x4d]]
    %v353 = vstv %s351
    %v354 = vmul.f32 %v353, %v129
    %v355 = vmul.f32 %v353, %v130
    %v356 = vmul.f32 %v353, %v131
    %v357 = vmul.f32 %v353, %v132
    %v358 = vmul.f32 %v353, %v133
    %v359 = vmul.f32 %v353, %v134
    %v360 = vmul.f32 %v353, %v137
    %v361 = vmul.f32 %v353, %v138
    %v362 = vmul.f32 %v353, %v139
    %v363 = vmul.f32 %v353, %v140
    %v364 = vmul.f32 %v353, %v141
    %v365 = vmul.f32 %v353, %v142
    %vm378 = vcmask 1043456
    %v379 = vrot.slane %v354, 4
    %v380 = vrot.slane %v355, 4
    %v381 = vrot.slane %v356, 4
    %v382 = vsel %vm378, %v379, %v381
    %v383 = vrot.slane %v357, 4
    %v384 = vsel %vm378, %v380, %v383
    %v385 = vrot.slane %v358, 4
    %v386 = vsel %vm378, %v381, %v385
    %v387 = vrot.slane %v359, 4
    %v388 = vsel %vm378, %v383, %v387
    %v389 = vrot.slane %v360, 4
    %v390 = vrot.slane %v361, 4
    %v391 = vrot.slane %v362, 4
    %v392 = vsel %vm378, %v389, %v391
    %v393 = vrot.slane %v363, 4
    %v394 = vsel %vm378, %v390, %v393
    %v395 = vrot.slane %v364, 4
    %v396 = vsel %vm378, %v391, %v395
    %v397 = vrot.slane %v365, 4
    %v398 = vsel %vm378, %v393, %v397
    %v411 = vadd.f32 %v199, %v379
    %v412 = vadd.f32 %v200, %v380
    %v413 = vadd.f32 %v201, %v382
    %v414 = vadd.f32 %v202, %v384
    %v415 = vadd.f32 %v203, %v386
    %v416 = vadd.f32 %v204, %v388
    %v417 = vadd.f32 %v205, %v389
    %v418 = vadd.f32 %v206, %v390
    %v419 = vadd.f32 %v207, %v392
    %v420 = vadd.f32 %v208, %v394
    %v421 = vadd.f32 %v209, %v396
    %v422 = vadd.f32 %v210, %v398
    %v423 = vstv %s352
    %v424 = vmul.f32 %v423, %v145
    %v425 = vmul.f32 %v423, %v146
    %v426 = vmul.f32 %v423, %v147
    %v427 = vmul.f32 %v423, %v148
    %v428 = vmul.f32 %v423, %v149
    %v429 = vmul.f32 %v423, %v150
    %v430 = vmul.f32 %v423, %v153
    %v431 = vmul.f32 %v423, %v154
    %v432 = vmul.f32 %v423, %v155
    %v433 = vmul.f32 %v423, %v156
    %v434 = vmul.f32 %v423, %v157
    %v435 = vmul.f32 %v423, %v158
    %v448 = vrot.slane %v424, 4
    %v449 = vrot.slane %v425, 4
    %v450 = vrot.slane %v426, 4
    %v451 = vsel %vm378, %v448, %v450
    %v452 = vrot.slane %v427, 4
    %v453 = vsel %vm378, %v449, %v452
    %v454 = vrot.slane %v428, 4
    %v455 = vsel %vm378, %v450, %v454
    %v456 = vrot.slane %v429, 4
    %v457 = vsel %vm378, %v452, %v456
    %v458 = vrot.slane %v430, 4
    %v459 = vrot.slane %v431, 4
    %v460 = vrot.slane %v432, 4
    %v461 = vsel %vm378, %v458, %v460
    %v462 = vrot.slane %v433, 4
    %v463 = vsel %vm378, %v459, %v462
    %v464 = vrot.slane %v434, 4
    %v465 = vsel %vm378, %v460, %v464
    %v466 = vrot.slane %v435, 4
    %v467 = vsel %vm378, %v462, %v466
    %v480 = vadd.f32 %v411, %v448
    %v481 = vadd.f32 %v412, %v449
    %v482 = vadd.f32 %v413, %v451
    %v483 = vadd.f32 %v414, %v453
    %v484 = vadd.f32 %v415, %v455
    %v485 = vadd.f32 %v416, %v457
    %v486 = vadd.f32 %v417, %v458
    %v487 = vadd.f32 %v418, %v459
    %v488 = vadd.f32 %v419, %v461
    %v489 = vadd.f32 %v420, %v463
    %v490 = vadd.f32 %v421, %v465
    %v491 = vadd.f32 %v422, %v467
    %s492 = sld [smem:[#allocation4 + $0x23]]
    %s493 = sld [smem:[#allocation4 + $0x54]]
    %v494 = vstv %s492
    %v495 = vmul.f32 %v494, %v129
    %v496 = vmul.f32 %v494, %v130
    %v497 = vmul.f32 %v494, %v131
    %v498 = vmul.f32 %v494, %v132
    %v499 = vmul.f32 %v494, %v133
    %v500 = vmul.f32 %v494, %v134
    %v501 = vmul.f32 %v494, %v137
    %v502 = vmul.f32 %v494, %v138
    %v503 = vmul.f32 %v494, %v139
    %v504 = vmul.f32 %v494, %v140
    %v505 = vmul.f32 %v494, %v141
    %v506 = vmul.f32 %v494, %v142
    %v519 = vrot.slane %v495, 4
    %v520 = vrot.slane %v496, 4
    %v521 = vrot.slane %v497, 4
    %v522 = vsel %vm378, %v519, %v521
    %v523 = vrot.slane %v498, 4
    %v524 = vsel %vm378, %v520, %v523
    %v525 = vrot.slane %v499, 4
    %v526 = vsel %vm378, %v521, %v525
    %v527 = vrot.slane %v500, 4
    %v528 = vsel %vm378, %v523, %v527
    %v529 = vrot.slane %v501, 4
    %v530 = vrot.slane %v502, 4
    %v531 = vrot.slane %v503, 4
    %v532 = vsel %vm378, %v529, %v531
    %v533 = vrot.slane %v504, 4
    %v534 = vsel %vm378, %v530, %v533
    %v535 = vrot.slane %v505, 4
    %v536 = vsel %vm378, %v531, %v535
    %v537 = vrot.slane %v506, 4
    %v538 = vsel %vm378, %v533, %v537
    %v551 = vadd.f32 %v251, %v519
    %v552 = vadd.f32 %v252, %v520
    %v553 = vadd.f32 %v253, %v522
    %v554 = vadd.f32 %v254, %v524
    %v555 = vadd.f32 %v255, %v526
    %v556 = vadd.f32 %v256, %v528
    %v557 = vadd.f32 %v257, %v529
    %v558 = vadd.f32 %v258, %v530
    %v559 = vadd.f32 %v259, %v532
    %v560 = vadd.f32 %v260, %v534
    %v561 = vadd.f32 %v261, %v536
    %v562 = vadd.f32 %v262, %v538
    %v563 = vstv %s493
    %v564 = vmul.f32 %v563, %v145
    %v565 = vmul.f32 %v563, %v146
    %v566 = vmul.f32 %v563, %v147
    %v567 = vmul.f32 %v563, %v148
    %v568 = vmul.f32 %v563, %v149
    %v569 = vmul.f32 %v563, %v150
    %v570 = vmul.f32 %v563, %v153
    %v571 = vmul.f32 %v563, %v154
    %v572 = vmul.f32 %v563, %v155
    %v573 = vmul.f32 %v563, %v156
    %v574 = vmul.f32 %v563, %v157
    %v575 = vmul.f32 %v563, %v158
    %v588 = vrot.slane %v564, 4
    %v589 = vrot.slane %v565, 4
    %v590 = vrot.slane %v566, 4
    %v591 = vsel %vm378, %v588, %v590
    %v592 = vrot.slane %v567, 4
    %v593 = vsel %vm378, %v589, %v592
    %v594 = vrot.slane %v568, 4
    %v595 = vsel %vm378, %v590, %v594
    %v596 = vrot.slane %v569, 4
    %v597 = vsel %vm378, %v592, %v596
    %v598 = vrot.slane %v570, 4
    %v599 = vrot.slane %v571, 4
    %v600 = vrot.slane %v572, 4
    %v601 = vsel %vm378, %v598, %v600
    %v602 = vrot.slane %v573, 4
    %v603 = vsel %vm378, %v599, %v602
    %v604 = vrot.slane %v574, 4
    %v605 = vsel %vm378, %v600, %v604
    %v606 = vrot.slane %v575, 4
    %v607 = vsel %vm378, %v602, %v606
    %v620 = vadd.f32 %v551, %v588
    %v621 = vadd.f32 %v552, %v589
    %v622 = vadd.f32 %v553, %v591
    %v623 = vadd.f32 %v554, %v593
    %v624 = vadd.f32 %v555, %v595
    %v625 = vadd.f32 %v556, %v597
    %v626 = vadd.f32 %v557, %v598
    %v627 = vadd.f32 %v558, %v599
    %v628 = vadd.f32 %v559, %v601
    %v629 = vadd.f32 %v560, %v603
    %v630 = vadd.f32 %v561, %v605
    %v631 = vadd.f32 %v562, %v607
    %s632 = sld [smem:[#allocation4 + $0x2a]]
    %s633 = sld [smem:[#allocation4 + $0x5b]]
    %v634 = vstv %s632
    %v635 = vmul.f32 %v634, %v129
    %v636 = vmul.f32 %v634, %v130
    %v637 = vmul.f32 %v634, %v131
    %v638 = vmul.f32 %v634, %v132
    %v639 = vmul.f32 %v634, %v133
    %v640 = vmul.f32 %v634, %v134
    %v641 = vmul.f32 %v634, %v137
    %v642 = vmul.f32 %v634, %v138
    %v643 = vmul.f32 %v634, %v139
    %v644 = vmul.f32 %v634, %v140
    %v645 = vmul.f32 %v634, %v141
    %v646 = vmul.f32 %v634, %v142
    %v659 = vrot.slane %v635, 4
    %v660 = vrot.slane %v636, 4
    %v661 = vrot.slane %v637, 4
    %v662 = vsel %vm378, %v659, %v661
    %v663 = vrot.slane %v638, 4
    %v664 = vsel %vm378, %v660, %v663
    %v665 = vrot.slane %v639, 4
    %v666 = vsel %vm378, %v661, %v665
    %v667 = vrot.slane %v640, 4
    %v668 = vsel %vm378, %v663, %v667
    %v669 = vrot.slane %v641, 4
    %v670 = vrot.slane %v642, 4
    %v671 = vrot.slane %v643, 4
    %v672 = vsel %vm378, %v669, %v671
    %v673 = vrot.slane %v644, 4
    %v674 = vsel %vm378, %v670, %v673
    %v675 = vrot.slane %v645, 4
    %v676 = vsel %vm378, %v671, %v675
    %v677 = vrot.slane %v646, 4
    %v678 = vsel %vm378, %v673, %v677
    %v691 = vadd.f32 %v303, %v659
    %v692 = vadd.f32 %v304, %v660
    %v693 = vadd.f32 %v305, %v662
    %v694 = vadd.f32 %v306, %v664
    %v695 = vadd.f32 %v307, %v666
    %v696 = vadd.f32 %v308, %v668
    %v697 = vadd.f32 %v309, %v669
    %v698 = vadd.f32 %v310, %v670
    %v699 = vadd.f32 %v311, %v672
    %v700 = vadd.f32 %v312, %v674
    %v701 = vadd.f32 %v313, %v676
    %v702 = vadd.f32 %v314, %v678
    %v703 = vstv %s633
    %v704 = vmul.f32 %v703, %v145
    %v705 = vmul.f32 %v703, %v146
    %v706 = vmul.f32 %v703, %v147
    %v707 = vmul.f32 %v703, %v148
    %v708 = vmul.f32 %v703, %v149
    %v709 = vmul.f32 %v703, %v150
    %v710 = vmul.f32 %v703, %v153
    %v711 = vmul.f32 %v703, %v154
    %v712 = vmul.f32 %v703, %v155
    %v713 = vmul.f32 %v703, %v156
    %v714 = vmul.f32 %v703, %v157
    %v715 = vmul.f32 %v703, %v158
    %v728 = vrot.slane %v704, 4
    %v729 = vrot.slane %v705, 4
    %v730 = vrot.slane %v706, 4
    %v731 = vsel %vm378, %v728, %v730
    %v732 = vrot.slane %v707, 4
    %v733 = vsel %vm378, %v729, %v732
    %v734 = vrot.slane %v708, 4
    %v735 = vsel %vm378, %v730, %v734
    %v736 = vrot.slane %v709, 4
    %v737 = vsel %vm378, %v732, %v736
    %v738 = vrot.slane %v710, 4
    %v739 = vrot.slane %v711, 4
    %v740 = vrot.slane %v712, 4
    %v741 = vsel %vm378, %v738, %v740
    %v742 = vrot.slane %v713, 4
    %v743 = vsel %vm378, %v739, %v742
    %v744 = vrot.slane %v714, 4
    %v745 = vsel %vm378, %v740, %v744
    %v746 = vrot.slane %v715, 4
    %v747 = vsel %vm378, %v742, %v746
    %v760 = vadd.f32 %v691, %v728
    %v761 = vadd.f32 %v692, %v729
    %v762 = vadd.f32 %v693, %v731
    %v763 = vadd.f32 %v694, %v733
    %v764 = vadd.f32 %v695, %v735
    %v765 = vadd.f32 %v696, %v737
    %v766 = vadd.f32 %v697, %v738
    %v767 = vadd.f32 %v698, %v739
    %v768 = vadd.f32 %v699, %v741
    %v769 = vadd.f32 %v700, %v743
    %v770 = vadd.f32 %v701, %v745
    %v771 = vadd.f32 %v702, %v747
    %s772 = sld [smem:[#allocation4 + $0x1]]
    %s773 = sld [smem:[#allocation4 + $0x32]]
    %v774 = vstv %s772
    %v775 = vmul.f32 %v774, %v127
    %v776 = vmul.f32 %v774, %v128
    %v777 = vmul.f32 %v774, %v129
    %v778 = vmul.f32 %v774, %v130
    %v779 = vmul.f32 %v774, %v131
    %v780 = vmul.f32 %v774, %v132
    %v781 = vmul.f32 %v774, %v135
    %v782 = vmul.f32 %v774, %v136
    %v783 = vmul.f32 %v774, %v137
    %v784 = vmul.f32 %v774, %v138
    %v785 = vmul.f32 %v774, %v139
    %v786 = vmul.f32 %v774, %v140
    %vm799 = vcmask 1042432
    %v800 = vrot.slane %v775, 5
    %v801 = vrot.slane %v777, 5
    %v802 = vsel %vm799, %v800, %v801
    %v803 = vrot.slane %v776, 5
    %v804 = vrot.slane %v778, 5
    %v805 = vsel %vm799, %v803, %v804
    %v806 = vrot.slane %v779, 5
    %v807 = vsel %vm799, %v801, %v806
    %v808 = vrot.slane %v780, 5
    %v809 = vsel %vm799, %v804, %v808
    %v810 = vrot.slane %v781, 5
    %v811 = vrot.slane %v783, 5
    %v812 = vsel %vm799, %v810, %v811
    %v813 = vrot.slane %v782, 5
    %v814 = vrot.slane %v784, 5
    %v815 = vsel %vm799, %v813, %v814
    %v816 = vrot.slane %v785, 5
    %v817 = vsel %vm799, %v811, %v816
    %v818 = vrot.slane %v786, 5
    %v819 = vsel %vm799, %v814, %v818
    %820 = vrot.lane.b32.xlu0 %v802, 127
    %v821 = vpop.permute.xlu0 %820
    %822 = vrot.lane.b32.xlu0 %v805, 127
    %v823 = vpop.permute.xlu0 %822
    %824 = vrot.lane.b32.xlu0 %v807, 127
    %v825 = vpop.permute.xlu0 %824
    %826 = vrot.lane.b32.xlu0 %v809, 127
    %v827 = vpop.permute.xlu0 %826
    %828 = vrot.lane.b32.xlu0 %v812, 127
    %v829 = vpop.permute.xlu0 %828
    %830 = vrot.lane.b32.xlu0 %v815, 127
    %v831 = vpop.permute.xlu0 %830
    %832 = vrot.lane.b32.xlu0 %v817, 127
    %v833 = vpop.permute.xlu0 %832
    %834 = vrot.lane.b32.xlu0 %v819, 127
    %v835 = vpop.permute.xlu0 %834
    %vm836 = vcmask 1039360
    %v837 = vsel %vm836, %v821, %v823
    %v838 = vsel %vm836, %v825, %v827
    %v839 = vsel %vm836, %v829, %v831
    %v840 = vsel %vm836, %v833, %v835
    %v849 = vadd.f32 %v343, %v837
    %v850 = vadd.f32 %v344, %v823
    %v851 = vadd.f32 %v345, %v838
    %v852 = vadd.f32 %v346, %v827
    %v853 = vadd.f32 %v347, %v839
    %v854 = vadd.f32 %v348, %v831
    %v855 = vadd.f32 %v349, %v840
    %v856 = vadd.f32 %v350, %v835
    %v857 = vstv %s773
    %v858 = vmul.f32 %v857, %v143
    %v859 = vmul.f32 %v857, %v144
    %v860 = vmul.f32 %v857, %v145
    %v861 = vmul.f32 %v857, %v146
    %v862 = vmul.f32 %v857, %v147
    %v863 = vmul.f32 %v857, %v148
    %v864 = vmul.f32 %v857, %v151
    %v865 = vmul.f32 %v857, %v152
    %v866 = vmul.f32 %v857, %v153
    %v867 = vmul.f32 %v857, %v154
    %v868 = vmul.f32 %v857, %v155
    %v869 = vmul.f32 %v857, %v156
    %v882 = vrot.slane %v858, 5
    %v883 = vrot.slane %v860, 5
    %v884 = vsel %vm799, %v882, %v883
    %v885 = vrot.slane %v859, 5
    %v886 = vrot.slane %v861, 5
    %v887 = vsel %vm799, %v885, %v886
    %v888 = vrot.slane %v862, 5
    %v889 = vsel %vm799, %v883, %v888
    %v890 = vrot.slane %v863, 5
    %v891 = vsel %vm799, %v886, %v890
    %v892 = vrot.slane %v864, 5
    %v893 = vrot.slane %v866, 5
    %v894 = vsel %vm799, %v892, %v893
    %v895 = vrot.slane %v865, 5
    %v896 = vrot.slane %v867, 5
    %v897 = vsel %vm799, %v895, %v896
    %v898 = vrot.slane %v868, 5
    %v899 = vsel %vm799, %v893, %v898
    %v900 = vrot.slane %v869, 5
    %v901 = vsel %vm799, %v896, %v900
    %902 = vrot.lane.b32.xlu0 %v884, 127
    %v903 = vpop.permute.xlu0 %902
    %904 = vrot.lane.b32.xlu0 %v887, 127
    %v905 = vpop.permute.xlu0 %904
    %906 = vrot.lane.b32.xlu0 %v889, 127
    %v907 = vpop.permute.xlu0 %906
    %908 = vrot.lane.b32.xlu0 %v891, 127
    %v909 = vpop.permute.xlu0 %908
    %910 = vrot.lane.b32.xlu0 %v894, 127
    %v911 = vpop.permute.xlu0 %910
    %912 = vrot.lane.b32.xlu0 %v897, 127
    %v913 = vpop.permute.xlu0 %912
    %914 = vrot.lane.b32.xlu0 %v899, 127
    %v915 = vpop.permute.xlu0 %914
    %916 = vrot.lane.b32.xlu0 %v901, 127
    %v917 = vpop.permute.xlu0 %916
    %v918 = vsel %vm836, %v903, %v905
    %v919 = vsel %vm836, %v907, %v909
    %v920 = vsel %vm836, %v911, %v913
    %v921 = vsel %vm836, %v915, %v917
    %v930 = vadd.f32 %v849, %v918
    %v931 = vadd.f32 %v850, %v905
    %v932 = vadd.f32 %v851, %v919
    %v933 = vadd.f32 %v852, %v909
    %v934 = vadd.f32 %v853, %v920
    %v935 = vadd.f32 %v854, %v913
    %v936 = vadd.f32 %v855, %v921
    %v937 = vadd.f32 %v856, %v917
    %s938 = sld [smem:[#allocation4 + $0x8]]
    %s939 = sld [smem:[#allocation4 + $0x39]]
    %v940 = vstv %s938
    %v941 = vmul.f32 %v940, %v127
    %v942 = vmul.f32 %v940, %v128
    %v943 = vmul.f32 %v940, %v129
    %v944 = vmul.f32 %v940, %v130
    %v945 = vmul.f32 %v940, %v131
    %v946 = vmul.f32 %v940, %v132
    %v947 = vmul.f32 %v940, %v135
    %v948 = vmul.f32 %v940, %v136
    %v949 = vmul.f32 %v940, %v137
    %v950 = vmul.f32 %v940, %v138
    %v951 = vmul.f32 %v940, %v139
    %v952 = vmul.f32 %v940, %v140
    %vm965 = vcmask 1046528
    %v966 = vrot.slane %v941, 1
    %v967 = vrot.slane %v943, 1
    %v968 = vsel %vm965, %v966, %v967
    %v969 = vrot.slane %v942, 1
    %v970 = vrot.slane %v944, 1
    %v971 = vsel %vm965, %v969, %v970
    %v972 = vrot.slane %v945, 1
    %v973 = vsel %vm965, %v967, %v972
    %v974 = vrot.slane %v946, 1
    %v975 = vsel %vm965, %v970, %v974
    %v976 = vrot.slane %v947, 1
    %v977 = vrot.slane %v949, 1
    %v978 = vsel %vm965, %v976, %v977
    %v979 = vrot.slane %v948, 1
    %v980 = vrot.slane %v950, 1
    %v981 = vsel %vm965, %v979, %v980
    %v982 = vrot.slane %v951, 1
    %v983 = vsel %vm965, %v977, %v982
    %v984 = vrot.slane %v952, 1
    %v985 = vsel %vm965, %v980, %v984
    %986 = vrot.lane.b32.xlu0 %v968, 127
    %v987 = vpop.permute.xlu0 %986
    %988 = vrot.lane.b32.xlu0 %v971, 127
    %v989 = vpop.permute.xlu0 %988
    %990 = vrot.lane.b32.xlu0 %v973, 127
    %v991 = vpop.permute.xlu0 %990
    %992 = vrot.lane.b32.xlu0 %v975, 127
    %v993 = vpop.permute.xlu0 %992
    %994 = vrot.lane.b32.xlu0 %v972, 127
    %v995 = vpop.permute.xlu0 %994
    %996 = vrot.lane.b32.xlu0 %v974, 127
    %v997 = vpop.permute.xlu0 %996
    %998 = vrot.lane.b32.xlu0 %v978, 127
    %v999 = vpop.permute.xlu0 %998
    %1000 = vrot.lane.b32.xlu0 %v981, 127
    %v1001 = vpop.permute.xlu0 %1000
    %1002 = vrot.lane.b32.xlu0 %v983, 127
    %v1003 = vpop.permute.xlu0 %1002
    %1004 = vrot.lane.b32.xlu0 %v985, 127
    %v1005 = vpop.permute.xlu0 %1004
    %1006 = vrot.lane.b32.xlu0 %v982, 127
    %v1007 = vpop.permute.xlu0 %1006
    %1008 = vrot.lane.b32.xlu0 %v984, 127
    %v1009 = vpop.permute.xlu0 %1008
    %v1010 = vsel %vm836, %v987, %v989
    %v1011 = vsel %vm836, %v991, %v993
    %v1012 = vsel %vm836, %v995, %v997
    %v1013 = vsel %vm836, %v999, %v1001
    %v1014 = vsel %vm836, %v1003, %v1005
    %v1015 = vsel %vm836, %v1007, %v1009
    %v1028 = vadd.f32 %v480, %v1010
    %v1029 = vadd.f32 %v481, %v989
    %v1030 = vadd.f32 %v482, %v1011
    %v1031 = vadd.f32 %v483, %v993
    %v1032 = vadd.f32 %v484, %v1012
    %v1033 = vadd.f32 %v485, %v997
    %v1034 = vadd.f32 %v486, %v1013
    %v1035 = vadd.f32 %v487, %v1001
    %v1036 = vadd.f32 %v488, %v1014
    %v1037 = vadd.f32 %v489, %v1005
    %v1038 = vadd.f32 %v490, %v1015
    %v1039 = vadd.f32 %v491, %v1009
    %v1040 = vstv %s939
    %v1041 = vmul.f32 %v1040, %v143
    %v1042 = vmul.f32 %v1040, %v144
    %v1043 = vmul.f32 %v1040, %v145
    %v1044 = vmul.f32 %v1040, %v146
    %v1045 = vmul.f32 %v1040, %v147
    %v1046 = vmul.f32 %v1040, %v148
    %v1047 = vmul.f32 %v1040, %v151
    %v1048 = vmul.f32 %v1040, %v152
    %v1049 = vmul.f32 %v1040, %v153
    %v1050 = vmul.f32 %v1040, %v154
    %v1051 = vmul.f32 %v1040, %v155
    %v1052 = vmul.f32 %v1040, %v156
    %v1065 = vrot.slane %v1041, 1
    %v1066 = vrot.slane %v1043, 1
    %v1067 = vsel %vm965, %v1065, %v1066
    %v1068 = vrot.slane %v1042, 1
    %v1069 = vrot.slane %v1044, 1
    %v1070 = vsel %vm965, %v1068, %v1069
    %v1071 = vrot.slane %v1045, 1
    %v1072 = vsel %vm965, %v1066, %v1071
    %v1073 = vrot.slane %v1046, 1
    %v1074 = vsel %vm965, %v1069, %v1073
    %v1075 = vrot.slane %v1047, 1
    %v1076 = vrot.slane %v1049, 1
    %v1077 = vsel %vm965, %v1075, %v1076
    %v1078 = vrot.slane %v1048, 1
    %v1079 = vrot.slane %v1050, 1
    %v1080 = vsel %vm965, %v1078, %v1079
    %v1081 = vrot.slane %v1051, 1
    %v1082 = vsel %vm965, %v1076, %v1081
    %v1083 = vrot.slane %v1052, 1
    %v1084 = vsel %vm965, %v1079, %v1083
    %1085 = vrot.lane.b32.xlu0 %v1067, 127
    %v1086 = vpop.permute.xlu0 %1085
    %1087 = vrot.lane.b32.xlu0 %v1070, 127
    %v1088 = vpop.permute.xlu0 %1087
    %1089 = vrot.lane.b32.xlu0 %v1072, 127
    %v1090 = vpop.permute.xlu0 %1089
    %1091 = vrot.lane.b32.xlu0 %v1074, 127
    %v1092 = vpop.permute.xlu0 %1091
    %1093 = vrot.lane.b32.xlu0 %v1071, 127
    %v1094 = vpop.permute.xlu0 %1093
    %1095 = vrot.lane.b32.xlu0 %v1073, 127
    %v1096 = vpop.permute.xlu0 %1095
    %1097 = vrot.lane.b32.xlu0 %v1077, 127
    %v1098 = vpop.permute.xlu0 %1097
    %1099 = vrot.lane.b32.xlu0 %v1080, 127
    %v1100 = vpop.permute.xlu0 %1099
    %1101 = vrot.lane.b32.xlu0 %v1082, 127
    %v1102 = vpop.permute.xlu0 %1101
    %1103 = vrot.lane.b32.xlu0 %v1084, 127
    %v1104 = vpop.permute.xlu0 %1103
    %1105 = vrot.lane.b32.xlu0 %v1081, 127
    %v1106 = vpop.permute.xlu0 %1105
    %1107 = vrot.lane.b32.xlu0 %v1083, 127
    %v1108 = vpop.permute.xlu0 %1107
    %v1109 = vsel %vm836, %v1086, %v1088
    %v1110 = vsel %vm836, %v1090, %v1092
    %v1111 = vsel %vm836, %v1094, %v1096
    %v1112 = vsel %vm836, %v1098, %v1100
    %v1113 = vsel %vm836, %v1102, %v1104
    %v1114 = vsel %vm836, %v1106, %v1108
    %v1127 = vadd.f32 %v1028, %v1109
    %v1128 = vadd.f32 %v1029, %v1088
    %v1129 = vadd.f32 %v1030, %v1110
    %v1130 = vadd.f32 %v1031, %v1092
    %v1131 = vadd.f32 %v1032, %v1111
    %v1132 = vadd.f32 %v1033, %v1096
    %v1133 = vadd.f32 %v1034, %v1112
    %v1134 = vadd.f32 %v1035, %v1100
    %v1135 = vadd.f32 %v1036, %v1113
    %v1136 = vadd.f32 %v1037, %v1104
    %v1137 = vadd.f32 %v1038, %v1114
    %v1138 = vadd.f32 %v1039, %v1108
    %s1139 = sld [smem:[#allocation4 + $0xf]]
    %s1140 = sld [smem:[#allocation4 + $0x40]]
    %v1141 = vstv %s1139
    %v1142 = vmul.f32 %v1141, %v127
    %v1143 = vmul.f32 %v1141, %v128
    %v1144 = vmul.f32 %v1141, %v129
    %v1145 = vmul.f32 %v1141, %v130
    %v1146 = vmul.f32 %v1141, %v131
    %v1147 = vmul.f32 %v1141, %v132
    %v1148 = vmul.f32 %v1141, %v135
    %v1149 = vmul.f32 %v1141, %v136
    %v1150 = vmul.f32 %v1141, %v137
    %v1151 = vmul.f32 %v1141, %v138
    %v1152 = vmul.f32 %v1141, %v139
    %v1153 = vmul.f32 %v1141, %v140
    %v1166 = vrot.slane %v1142, 1
    %v1167 = vrot.slane %v1144, 1
    %v1168 = vsel %vm965, %v1166, %v1167
    %v1169 = vrot.slane %v1143, 1
    %v1170 = vrot.slane %v1145, 1
    %v1171 = vsel %vm965, %v1169, %v1170
    %v1172 = vrot.slane %v1146, 1
    %v1173 = vsel %vm965, %v1167, %v1172
    %v1174 = vrot.slane %v1147, 1
    %v1175 = vsel %vm965, %v1170, %v1174
    %v1176 = vrot.slane %v1148, 1
    %v1177 = vrot.slane %v1150, 1
    %v1178 = vsel %vm965, %v1176, %v1177
    %v1179 = vrot.slane %v1149, 1
    %v1180 = vrot.slane %v1151, 1
    %v1181 = vsel %vm965, %v1179, %v1180
    %v1182 = vrot.slane %v1152, 1
    %v1183 = vsel %vm965, %v1177, %v1182
    %v1184 = vrot.slane %v1153, 1
    %v1185 = vsel %vm965, %v1180, %v1184
    %1186 = vrot.lane.b32.xlu0 %v1168, 127
    %v1187 = vpop.permute.xlu0 %1186
    %1188 = vrot.lane.b32.xlu0 %v1171, 127
    %v1189 = vpop.permute.xlu0 %1188
    %1190 = vrot.lane.b32.xlu0 %v1173, 127
    %v1191 = vpop.permute.xlu0 %1190
    %1192 = vrot.lane.b32.xlu0 %v1175, 127
    %v1193 = vpop.permute.xlu0 %1192
    %1194 = vrot.lane.b32.xlu0 %v1172, 127
    %v1195 = vpop.permute.xlu0 %1194
    %1196 = vrot.lane.b32.xlu0 %v1174, 127
    %v1197 = vpop.permute.xlu0 %1196
    %1198 = vrot.lane.b32.xlu0 %v1178, 127
    %v1199 = vpop.permute.xlu0 %1198
    %1200 = vrot.lane.b32.xlu0 %v1181, 127
    %v1201 = vpop.permute.xlu0 %1200
    %1202 = vrot.lane.b32.xlu0 %v1183, 127
    %v1203 = vpop.permute.xlu0 %1202
    %1204 = vrot.lane.b32.xlu0 %v1185, 127
    %v1205 = vpop.permute.xlu0 %1204
    %1206 = vrot.lane.b32.xlu0 %v1182, 127
    %v1207 = vpop.permute.xlu0 %1206
    %1208 = vrot.lane.b32.xlu0 %v1184, 127
    %v1209 = vpop.permute.xlu0 %1208
    %v1210 = vsel %vm836, %v1187, %v1189
    %v1211 = vsel %vm836, %v1191, %v1193
    %v1212 = vsel %vm836, %v1195, %v1197
    %v1213 = vsel %vm836, %v1199, %v1201
    %v1214 = vsel %vm836, %v1203, %v1205
    %v1215 = vsel %vm836, %v1207, %v1209
    %v1228 = vadd.f32 %v620, %v1210
    %v1229 = vadd.f32 %v621, %v1189
    %v1230 = vadd.f32 %v622, %v1211
    %v1231 = vadd.f32 %v623, %v1193
    %v1232 = vadd.f32 %v624, %v1212
    %v1233 = vadd.f32 %v625, %v1197
    %v1234 = vadd.f32 %v626, %v1213
    %v1235 = vadd.f32 %v627, %v1201
    %v1236 = vadd.f32 %v628, %v1214
    %v1237 = vadd.f32 %v629, %v1205
    %v1238 = vadd.f32 %v630, %v1215
    %v1239 = vadd.f32 %v631, %v1209
    %v1240 = vstv %s1140
    %v1241 = vmul.f32 %v1240, %v143
    %v1242 = vmul.f32 %v1240, %v144
    %v1243 = vmul.f32 %v1240, %v145
    %v1244 = vmul.f32 %v1240, %v146
    %v1245 = vmul.f32 %v1240, %v147
    %v1246 = vmul.f32 %v1240, %v148
    %v1247 = vmul.f32 %v1240, %v151
    %v1248 = vmul.f32 %v1240, %v152
    %v1249 = vmul.f32 %v1240, %v153
    %v1250 = vmul.f32 %v1240, %v154
    %v1251 = vmul.f32 %v1240, %v155
    %v1252 = vmul.f32 %v1240, %v156
    %v1265 = vrot.slane %v1241, 1
    %v1266 = vrot.slane %v1243, 1
    %v1267 = vsel %vm965, %v1265, %v1266
    %v1268 = vrot.slane %v1242, 1
    %v1269 = vrot.slane %v1244, 1
    %v1270 = vsel %vm965, %v1268, %v1269
    %v1271 = vrot.slane %v1245, 1
    %v1272 = vsel %vm965, %v1266, %v1271
    %v1273 = vrot.slane %v1246, 1
    %v1274 = vsel %vm965, %v1269, %v1273
    %v1275 = vrot.slane %v1247, 1
    %v1276 = vrot.slane %v1249, 1
    %v1277 = vsel %vm965, %v1275, %v1276
    %v1278 = vrot.slane %v1248, 1
    %v1279 = vrot.slane %v1250, 1
    %v1280 = vsel %vm965, %v1278, %v1279
    %v1281 = vrot.slane %v1251, 1
    %v1282 = vsel %vm965, %v1276, %v1281
    %v1283 = vrot.slane %v1252, 1
    %v1284 = vsel %vm965, %v1279, %v1283
    %1285 = vrot.lane.b32.xlu0 %v1267, 127
    %v1286 = vpop.permute.xlu0 %1285
    %1287 = vrot.lane.b32.xlu0 %v1270, 127
    %v1288 = vpop.permute.xlu0 %1287
    %1289 = vrot.lane.b32.xlu0 %v1272, 127
    %v1290 = vpop.permute.xlu0 %1289
    %1291 = vrot.lane.b32.xlu0 %v1274, 127
    %v1292 = vpop.permute.xlu0 %1291
    %1293 = vrot.lane.b32.xlu0 %v1271, 127
    %v1294 = vpop.permute.xlu0 %1293
    %1295 = vrot.lane.b32.xlu0 %v1273, 127
    %v1296 = vpop.permute.xlu0 %1295
    %1297 = vrot.lane.b32.xlu0 %v1277, 127
    %v1298 = vpop.permute.xlu0 %1297
    %1299 = vrot.lane.b32.xlu0 %v1280, 127
    %v1300 = vpop.permute.xlu0 %1299
    %1301 = vrot.lane.b32.xlu0 %v1282, 127
    %v1302 = vpop.permute.xlu0 %1301
    %1303 = vrot.lane.b32.xlu0 %v1284, 127
    %v1304 = vpop.permute.xlu0 %1303
    %1305 = vrot.lane.b32.xlu0 %v1281, 127
    %v1306 = vpop.permute.xlu0 %1305
    %1307 = vrot.lane.b32.xlu0 %v1283, 127
    %v1308 = vpop.permute.xlu0 %1307
    %v1309 = vsel %vm836, %v1286, %v1288
    %v1310 = vsel %vm836, %v1290, %v1292
    %v1311 = vsel %vm836, %v1294, %v1296
    %v1312 = vsel %vm836, %v1298, %v1300
    %v1313 = vsel %vm836, %v1302, %v1304
    %v1314 = vsel %vm836, %v1306, %v1308
    %v1327 = vadd.f32 %v1228, %v1309
    %v1328 = vadd.f32 %v1229, %v1288
    %v1329 = vadd.f32 %v1230, %v1310
    %v1330 = vadd.f32 %v1231, %v1292
    %v1331 = vadd.f32 %v1232, %v1311
    %v1332 = vadd.f32 %v1233, %v1296
    %v1333 = vadd.f32 %v1234, %v1312
    %v1334 = vadd.f32 %v1235, %v1300
    %v1335 = vadd.f32 %v1236, %v1313
    %v1336 = vadd.f32 %v1237, %v1304
    %v1337 = vadd.f32 %v1238, %v1314
    %v1338 = vadd.f32 %v1239, %v1308
    %s1339 = sld [smem:[#allocation4 + $0x16]]
    %s1340 = sld [smem:[#allocation4 + $0x47]]
    %v1341 = vstv %s1339
    %v1342 = vmul.f32 %v1341, %v129
    %v1343 = vmul.f32 %v1341, %v130
    %v1344 = vmul.f32 %v1341, %v131
    %v1345 = vmul.f32 %v1341, %v132
    %v1346 = vmul.f32 %v1341, %v137
    %v1347 = vmul.f32 %v1341, %v138
    %v1348 = vmul.f32 %v1341, %v139
    %v1349 = vmul.f32 %v1341, %v140
    %v1358 = vrot.slane %v1342, 1
    %v1359 = vrot.slane %v1343, 1
    %v1360 = vrot.slane %v1344, 1
    %v1361 = vsel %vm965, %v1358, %v1360
    %v1362 = vrot.slane %v1345, 1
    %v1363 = vsel %vm965, %v1359, %v1362
    %v1364 = vrot.slane %v1346, 1
    %v1365 = vrot.slane %v1347, 1
    %v1366 = vrot.slane %v1348, 1
    %v1367 = vsel %vm965, %v1364, %v1366
    %v1368 = vrot.slane %v1349, 1
    %v1369 = vsel %vm965, %v1365, %v1368
    %1370 = vrot.lane.b32.xlu0 %v1358, 127
    %v1371 = vpop.permute.xlu0 %1370
    %1372 = vrot.lane.b32.xlu0 %v1359, 127
    %v1373 = vpop.permute.xlu0 %1372
    %1374 = vrot.lane.b32.xlu0 %v1361, 127
    %v1375 = vpop.permute.xlu0 %1374
    %1376 = vrot.lane.b32.xlu0 %v1363, 127
    %v1377 = vpop.permute.xlu0 %1376
    %1378 = vrot.lane.b32.xlu0 %v1360, 127
    %v1379 = vpop.permute.xlu0 %1378
    %1380 = vrot.lane.b32.xlu0 %v1362, 127
    %v1381 = vpop.permute.xlu0 %1380
    %1382 = vrot.lane.b32.xlu0 %v1364, 127
    %v1383 = vpop.permute.xlu0 %1382
    %1384 = vrot.lane.b32.xlu0 %v1365, 127
    %v1385 = vpop.permute.xlu0 %1384
    %1386 = vrot.lane.b32.xlu0 %v1367, 127
    %v1387 = vpop.permute.xlu0 %1386
    %1388 = vrot.lane.b32.xlu0 %v1369, 127
    %v1389 = vpop.permute.xlu0 %1388
    %1390 = vrot.lane.b32.xlu0 %v1366, 127
    %v1391 = vpop.permute.xlu0 %1390
    %1392 = vrot.lane.b32.xlu0 %v1368, 127
    %v1393 = vpop.permute.xlu0 %1392
    %v1394 = vsel %vm836, %v1371, %v1373
    %v1395 = vsel %vm836, %v1375, %v1377
    %v1396 = vsel %vm836, %v1379, %v1381
    %v1397 = vsel %vm836, %v1383, %v1385
    %v1398 = vsel %vm836, %v1387, %v1389
    %v1399 = vsel %vm836, %v1391, %v1393
    %v1412 = vadd.f32 %v760, %v1394
    %v1413 = vadd.f32 %v761, %v1373
    %v1414 = vadd.f32 %v762, %v1395
    %v1415 = vadd.f32 %v763, %v1377
    %v1416 = vadd.f32 %v764, %v1396
    %v1417 = vadd.f32 %v765, %v1381
    %v1418 = vadd.f32 %v766, %v1397
    %v1419 = vadd.f32 %v767, %v1385
    %v1420 = vadd.f32 %v768, %v1398
    %v1421 = vadd.f32 %v769, %v1389
    %v1422 = vadd.f32 %v770, %v1399
    %v1423 = vadd.f32 %v771, %v1393
    %v1424 = vstv %s1340
    %v1425 = vmul.f32 %v1424, %v145
    %v1426 = vmul.f32 %v1424, %v146
    %v1427 = vmul.f32 %v1424, %v147
    %v1428 = vmul.f32 %v1424, %v148
    %v1429 = vmul.f32 %v1424, %v153
    %v1430 = vmul.f32 %v1424, %v154
    %v1431 = vmul.f32 %v1424, %v155
    %v1432 = vmul.f32 %v1424, %v156
    %v1441 = vrot.slane %v1425, 1
    %v1442 = vrot.slane %v1426, 1
    %v1443 = vrot.slane %v1427, 1
    %v1444 = vsel %vm965, %v1441, %v1443
    %v1445 = vrot.slane %v1428, 1
    %v1446 = vsel %vm965, %v1442, %v1445
    %v1447 = vrot.slane %v1429, 1
    %v1448 = vrot.slane %v1430, 1
    %v1449 = vrot.slane %v1431, 1
    %v1450 = vsel %vm965, %v1447, %v1449
    %v1451 = vrot.slane %v1432, 1
    %v1452 = vsel %vm965, %v1448, %v1451
    %1453 = vrot.lane.b32.xlu0 %v1441, 127
    %v1454 = vpop.permute.xlu0 %1453
    %1455 = vrot.lane.b32.xlu0 %v1442, 127
    %v1456 = vpop.permute.xlu0 %1455
    %1457 = vrot.lane.b32.xlu0 %v1444, 127
    %v1458 = vpop.permute.xlu0 %1457
    %1459 = vrot.lane.b32.xlu0 %v1446, 127
    %v1460 = vpop.permute.xlu0 %1459
    %1461 = vrot.lane.b32.xlu0 %v1443, 127
    %v1462 = vpop.permute.xlu0 %1461
    %1463 = vrot.lane.b32.xlu0 %v1445, 127
    %v1464 = vpop.permute.xlu0 %1463
    %1465 = vrot.lane.b32.xlu0 %v1447, 127
    %v1466 = vpop.permute.xlu0 %1465
    %1467 = vrot.lane.b32.xlu0 %v1448, 127
    %v1468 = vpop.permute.xlu0 %1467
    %1469 = vrot.lane.b32.xlu0 %v1450, 127
    %v1470 = vpop.permute.xlu0 %1469
    %1471 = vrot.lane.b32.xlu0 %v1452, 127
    %v1472 = vpop.permute.xlu0 %1471
    %1473 = vrot.lane.b32.xlu0 %v1449, 127
    %v1474 = vpop.permute.xlu0 %1473
    %1475 = vrot.lane.b32.xlu0 %v1451, 127
    %v1476 = vpop.permute.xlu0 %1475
    %v1477 = vsel %vm836, %v1454, %v1456
    %v1478 = vsel %vm836, %v1458, %v1460
    %v1479 = vsel %vm836, %v1462, %v1464
    %v1480 = vsel %vm836, %v1466, %v1468
    %v1481 = vsel %vm836, %v1470, %v1472
    %v1482 = vsel %vm836, %v1474, %v1476
    %v1495 = vadd.f32 %v1412, %v1477
    %v1496 = vadd.f32 %v1413, %v1456
    %v1497 = vadd.f32 %v1414, %v1478
    %v1498 = vadd.f32 %v1415, %v1460
    %v1499 = vadd.f32 %v1416, %v1479
    %v1500 = vadd.f32 %v1417, %v1464
    %v1501 = vadd.f32 %v1418, %v1480
    %v1502 = vadd.f32 %v1419, %v1468
    %v1503 = vadd.f32 %v1420, %v1481
    %v1504 = vadd.f32 %v1421, %v1472
    %v1505 = vadd.f32 %v1422, %v1482
    %v1506 = vadd.f32 %v1423, %v1476
    %s1507 = sld [smem:[#allocation4 + $0x1d]]
    %s1508 = sld [smem:[#allocation4 + $0x4e]]
    %v1509 = vstv %s1507
    %v1510 = vmul.f32 %v1509, %v129
    %v1511 = vmul.f32 %v1509, %v130
    %v1512 = vmul.f32 %v1509, %v131
    %v1513 = vmul.f32 %v1509, %v132
    %v1514 = vmul.f32 %v1509, %v133
    %v1515 = vmul.f32 %v1509, %v134
    %v1516 = vmul.f32 %v1509, %v137
    %v1517 = vmul.f32 %v1509, %v138
    %v1518 = vmul.f32 %v1509, %v139
    %v1519 = vmul.f32 %v1509, %v140
    %v1520 = vmul.f32 %v1509, %v141
    %v1521 = vmul.f32 %v1509, %v142
    %v1534 = vrot.slane %v1510, 1
    %v1535 = vrot.slane %v1512, 1
    %v1536 = vsel %vm965, %v1534, %v1535
    %v1537 = vrot.slane %v1511, 1
    %v1538 = vrot.slane %v1513, 1
    %v1539 = vsel %vm965, %v1537, %v1538
    %v1540 = vrot.slane %v1514, 1
    %v1541 = vsel %vm965, %v1535, %v1540
    %v1542 = vrot.slane %v1515, 1
    %v1543 = vsel %vm965, %v1538, %v1542
    %v1544 = vrot.slane %v1516, 1
    %v1545 = vrot.slane %v1518, 1
    %v1546 = vsel %vm965, %v1544, %v1545
    %v1547 = vrot.slane %v1517, 1
    %v1548 = vrot.slane %v1519, 1
    %v1549 = vsel %vm965, %v1547, %v1548
    %v1550 = vrot.slane %v1520, 1
    %v1551 = vsel %vm965, %v1545, %v1550
    %v1552 = vrot.slane %v1521, 1
    %v1553 = vsel %vm965, %v1548, %v1552
    %1554 = vrot.lane.b32.xlu0 %v1536, 127
    %v1555 = vpop.permute.xlu0 %1554
    %1556 = vrot.lane.b32.xlu0 %v1539, 127
    %v1557 = vpop.permute.xlu0 %1556
    %1558 = vrot.lane.b32.xlu0 %v1541, 127
    %v1559 = vpop.permute.xlu0 %1558
    %1560 = vrot.lane.b32.xlu0 %v1543, 127
    %v1561 = vpop.permute.xlu0 %1560
    %1562 = vrot.lane.b32.xlu0 %v1546, 127
    %v1563 = vpop.permute.xlu0 %1562
    %1564 = vrot.lane.b32.xlu0 %v1549, 127
    %v1565 = vpop.permute.xlu0 %1564
    %1566 = vrot.lane.b32.xlu0 %v1551, 127
    %v1567 = vpop.permute.xlu0 %1566
    %1568 = vrot.lane.b32.xlu0 %v1553, 127
    %v1569 = vpop.permute.xlu0 %1568
    %v1570 = vsel %vm836, %v1555, %v1557
    %v1571 = vsel %vm836, %v1559, %v1561
    %v1572 = vsel %vm836, %v1563, %v1565
    %v1573 = vsel %vm836, %v1567, %v1569
    %v1582 = vadd.f32 %v930, %v1570
    %v1583 = vadd.f32 %v931, %v1557
    %v1584 = vadd.f32 %v932, %v1571
    %v1585 = vadd.f32 %v933, %v1561
    %v1586 = vadd.f32 %v934, %v1572
    %v1587 = vadd.f32 %v935, %v1565
    %v1588 = vadd.f32 %v936, %v1573
    %v1589 = vadd.f32 %v937, %v1569
    %v1590 = vstv %s1508
    %v1591 = vmul.f32 %v1590, %v145
    %v1592 = vmul.f32 %v1590, %v146
    %v1593 = vmul.f32 %v1590, %v147
    %v1594 = vmul.f32 %v1590, %v148
    %v1595 = vmul.f32 %v1590, %v149
    %v1596 = vmul.f32 %v1590, %v150
    %v1597 = vmul.f32 %v1590, %v153
    %v1598 = vmul.f32 %v1590, %v154
    %v1599 = vmul.f32 %v1590, %v155
    %v1600 = vmul.f32 %v1590, %v156
    %v1601 = vmul.f32 %v1590, %v157
    %v1602 = vmul.f32 %v1590, %v158
    %v1615 = vrot.slane %v1591, 1
    %v1616 = vrot.slane %v1593, 1
    %v1617 = vsel %vm965, %v1615, %v1616
    %v1618 = vrot.slane %v1592, 1
    %v1619 = vrot.slane %v1594, 1
    %v1620 = vsel %vm965, %v1618, %v1619
    %v1621 = vrot.slane %v1595, 1
    %v1622 = vsel %vm965, %v1616, %v1621
    %v1623 = vrot.slane %v1596, 1
    %v1624 = vsel %vm965, %v1619, %v1623
    %v1625 = vrot.slane %v1597, 1
    %v1626 = vrot.slane %v1599, 1
    %v1627 = vsel %vm965, %v1625, %v1626
    %v1628 = vrot.slane %v1598, 1
    %v1629 = vrot.slane %v1600, 1
    %v1630 = vsel %vm965, %v1628, %v1629
    %v1631 = vrot.slane %v1601, 1
    %v1632 = vsel %vm965, %v1626, %v1631
    %v1633 = vrot.slane %v1602, 1
    %v1634 = vsel %vm965, %v1629, %v1633
    %1635 = vrot.lane.b32.xlu0 %v1617, 127
    %v1636 = vpop.permute.xlu0 %1635
    %1637 = vrot.lane.b32.xlu0 %v1620, 127
    %v1638 = vpop.permute.xlu0 %1637
    %1639 = vrot.lane.b32.xlu0 %v1622, 127
    %v1640 = vpop.permute.xlu0 %1639
    %1641 = vrot.lane.b32.xlu0 %v1624, 127
    %v1642 = vpop.permute.xlu0 %1641
    %1643 = vrot.lane.b32.xlu0 %v1627, 127
    %v1644 = vpop.permute.xlu0 %1643
    %1645 = vrot.lane.b32.xlu0 %v1630, 127
    %v1646 = vpop.permute.xlu0 %1645
    %1647 = vrot.lane.b32.xlu0 %v1632, 127
    %v1648 = vpop.permute.xlu0 %1647
    %1649 = vrot.lane.b32.xlu0 %v1634, 127
    %v1650 = vpop.permute.xlu0 %1649
    %v1651 = vsel %vm836, %v1636, %v1638
    %v1652 = vsel %vm836, %v1640, %v1642
    %v1653 = vsel %vm836, %v1644, %v1646
    %v1654 = vsel %vm836, %v1648, %v1650
    %v1663 = vadd.f32 %v1582, %v1651
    %v1664 = vadd.f32 %v1583, %v1638
    %v1665 = vadd.f32 %v1584, %v1652
    %v1666 = vadd.f32 %v1585, %v1642
    %v1667 = vadd.f32 %v1586, %v1653
    %v1668 = vadd.f32 %v1587, %v1646
    %v1669 = vadd.f32 %v1588, %v1654
    %v1670 = vadd.f32 %v1589, %v1650
    %s1671 = sld [smem:[#allocation4 + $0x24]]
    %s1672 = sld [smem:[#allocation4 + $0x55]]
    %v1673 = vstv %s1671
    %v1674 = vmul.f32 %v1673, %v129
    %v1675 = vmul.f32 %v1673, %v130
    %v1676 = vmul.f32 %v1673, %v131
    %v1677 = vmul.f32 %v1673, %v132
    %v1678 = vmul.f32 %v1673, %v133
    %v1679 = vmul.f32 %v1673, %v134
    %v1680 = vmul.f32 %v1673, %v137
    %v1681 = vmul.f32 %v1673, %v138
    %v1682 = vmul.f32 %v1673, %v139
    %v1683 = vmul.f32 %v1673, %v140
    %v1684 = vmul.f32 %v1673, %v141
    %v1685 = vmul.f32 %v1673, %v142
    %v1698 = vrot.slane %v1674, 5
    %v1699 = vrot.slane %v1675, 5
    %v1700 = vrot.slane %v1676, 5
    %v1701 = vsel %vm799, %v1698, %v1700
    %v1702 = vrot.slane %v1677, 5
    %v1703 = vsel %vm799, %v1699, %v1702
    %v1704 = vrot.slane %v1678, 5
    %v1705 = vsel %vm799, %v1700, %v1704
    %v1706 = vrot.slane %v1679, 5
    %v1707 = vsel %vm799, %v1702, %v1706
    %v1708 = vrot.slane %v1680, 5
    %v1709 = vrot.slane %v1681, 5
    %v1710 = vrot.slane %v1682, 5
    %v1711 = vsel %vm799, %v1708, %v1710
    %v1712 = vrot.slane %v1683, 5
    %v1713 = vsel %vm799, %v1709, %v1712
    %v1714 = vrot.slane %v1684, 5
    %v1715 = vsel %vm799, %v1710, %v1714
    %v1716 = vrot.slane %v1685, 5
    %v1717 = vsel %vm799, %v1712, %v1716
    %1718 = vrot.lane.b32.xlu0 %v1698, 127
    %v1719 = vpop.permute.xlu0 %1718
    %1720 = vrot.lane.b32.xlu0 %v1699, 127
    %v1721 = vpop.permute.xlu0 %1720
    %1722 = vrot.lane.b32.xlu0 %v1701, 127
    %v1723 = vpop.permute.xlu0 %1722
    %1724 = vrot.lane.b32.xlu0 %v1703, 127
    %v1725 = vpop.permute.xlu0 %1724
    %1726 = vrot.lane.b32.xlu0 %v1705, 127
    %v1727 = vpop.permute.xlu0 %1726
    %1728 = vrot.lane.b32.xlu0 %v1707, 127
    %v1729 = vpop.permute.xlu0 %1728
    %1730 = vrot.lane.b32.xlu0 %v1708, 127
    %v1731 = vpop.permute.xlu0 %1730
    %1732 = vrot.lane.b32.xlu0 %v1709, 127
    %v1733 = vpop.permute.xlu0 %1732
    %1734 = vrot.lane.b32.xlu0 %v1711, 127
    %v1735 = vpop.permute.xlu0 %1734
    %1736 = vrot.lane.b32.xlu0 %v1713, 127
    %v1737 = vpop.permute.xlu0 %1736
    %1738 = vrot.lane.b32.xlu0 %v1715, 127
    %v1739 = vpop.permute.xlu0 %1738
    %1740 = vrot.lane.b32.xlu0 %v1717, 127
    %v1741 = vpop.permute.xlu0 %1740
    %v1742 = vsel %vm836, %v1719, %v1721
    %v1743 = vsel %vm836, %v1723, %v1725
    %v1744 = vsel %vm836, %v1727, %v1729
    %v1745 = vsel %vm836, %v1731, %v1733
    %v1746 = vsel %vm836, %v1735, %v1737
    %v1747 = vsel %vm836, %v1739, %v1741
    %v1760 = vadd.f32 %v1127, %v1742
    %v1761 = vadd.f32 %v1128, %v1721
    %v1762 = vadd.f32 %v1129, %v1743
    %v1763 = vadd.f32 %v1130, %v1725
    %v1764 = vadd.f32 %v1131, %v1744
    %v1765 = vadd.f32 %v1132, %v1729
    %v1766 = vadd.f32 %v1133, %v1745
    %v1767 = vadd.f32 %v1134, %v1733
    %v1768 = vadd.f32 %v1135, %v1746
    %v1769 = vadd.f32 %v1136, %v1737
    %v1770 = vadd.f32 %v1137, %v1747
    %v1771 = vadd.f32 %v1138, %v1741
    %v1772 = vstv %s1672
    %v1773 = vmul.f32 %v1772, %v145
    %v1774 = vmul.f32 %v1772, %v146
    %v1775 = vmul.f32 %v1772, %v147
    %v1776 = vmul.f32 %v1772, %v148
    %v1777 = vmul.f32 %v1772, %v149
    %v1778 = vmul.f32 %v1772, %v150
    %v1779 = vmul.f32 %v1772, %v153
    %v1780 = vmul.f32 %v1772, %v154
    %v1781 = vmul.f32 %v1772, %v155
    %v1782 = vmul.f32 %v1772, %v156
    %v1783 = vmul.f32 %v1772, %v157
    %v1784 = vmul.f32 %v1772, %v158
    %v1797 = vrot.slane %v1773, 5
    %v1798 = vrot.slane %v1774, 5
    %v1799 = vrot.slane %v1775, 5
    %v1800 = vsel %vm799, %v1797, %v1799
    %v1801 = vrot.slane %v1776, 5
    %v1802 = vsel %vm799, %v1798, %v1801
    %v1803 = vrot.slane %v1777, 5
    %v1804 = vsel %vm799, %v1799, %v1803
    %v1805 = vrot.slane %v1778, 5
    %v1806 = vsel %vm799, %v1801, %v1805
    %v1807 = vrot.slane %v1779, 5
    %v1808 = vrot.slane %v1780, 5
    %v1809 = vrot.slane %v1781, 5
    %v1810 = vsel %vm799, %v1807, %v1809
    %v1811 = vrot.slane %v1782, 5
    %v1812 = vsel %vm799, %v1808, %v1811
    %v1813 = vrot.slane %v1783, 5
    %v1814 = vsel %vm799, %v1809, %v1813
    %v1815 = vrot.slane %v1784, 5
    %v1816 = vsel %vm799, %v1811, %v1815
    %1817 = vrot.lane.b32.xlu0 %v1797, 127
    %v1818 = vpop.permute.xlu0 %1817
    %1819 = vrot.lane.b32.xlu0 %v1798, 127
    %v1820 = vpop.permute.xlu0 %1819
    %1821 = vrot.lane.b32.xlu0 %v1800, 127
    %v1822 = vpop.permute.xlu0 %1821
    %1823 = vrot.lane.b32.xlu0 %v1802, 127
    %v1824 = vpop.permute.xlu0 %1823
    %1825 = vrot.lane.b32.xlu0 %v1804, 127
    %v1826 = vpop.permute.xlu0 %1825
    %1827 = vrot.lane.b32.xlu0 %v1806, 127
    %v1828 = vpop.permute.xlu0 %1827
    %1829 = vrot.lane.b32.xlu0 %v1807, 127
    %v1830 = vpop.permute.xlu0 %1829
    %1831 = vrot.lane.b32.xlu0 %v1808, 127
    %v1832 = vpop.permute.xlu0 %1831
    %1833 = vrot.lane.b32.xlu0 %v1810, 127
    %v1834 = vpop.permute.xlu0 %1833
    %1835 = vrot.lane.b32.xlu0 %v1812, 127
    %v1836 = vpop.permute.xlu0 %1835
    %1837 = vrot.lane.b32.xlu0 %v1814, 127
    %v1838 = vpop.permute.xlu0 %1837
    %1839 = vrot.lane.b32.xlu0 %v1816, 127
    %v1840 = vpop.permute.xlu0 %1839
    %v1841 = vsel %vm836, %v1818, %v1820
    %v1842 = vsel %vm836, %v1822, %v1824
    %v1843 = vsel %vm836, %v1826, %v1828
    %v1844 = vsel %vm836, %v1830, %v1832
    %v1845 = vsel %vm836, %v1834, %v1836
    %v1846 = vsel %vm836, %v1838, %v1840
    %v1859 = vadd.f32 %v1760, %v1841
    %v1860 = vadd.f32 %v1761, %v1820
    %v1861 = vadd.f32 %v1762, %v1842
    %v1862 = vadd.f32 %v1763, %v1824
    %v1863 = vadd.f32 %v1764, %v1843
    %v1864 = vadd.f32 %v1765, %v1828
    %v1865 = vadd.f32 %v1766, %v1844
    %v1866 = vadd.f32 %v1767, %v1832
    %v1867 = vadd.f32 %v1768, %v1845
    %v1868 = vadd.f32 %v1769, %v1836
    %v1869 = vadd.f32 %v1770, %v1846
    %v1870 = vadd.f32 %v1771, %v1840
    %s1871 = sld [smem:[#allocation4 + $0x2b]]
    %s1872 = sld [smem:[#allocation4 + $0x5c]]
    %v1873 = vstv %s1871
    %v1874 = vmul.f32 %v1873, %v129
    %v1875 = vmul.f32 %v1873, %v130
    %v1876 = vmul.f32 %v1873, %v131
    %v1877 = vmul.f32 %v1873, %v132
    %v1878 = vmul.f32 %v1873, %v133
    %v1879 = vmul.f32 %v1873, %v134
    %v1880 = vmul.f32 %v1873, %v137
    %v1881 = vmul.f32 %v1873, %v138
    %v1882 = vmul.f32 %v1873, %v139
    %v1883 = vmul.f32 %v1873, %v140
    %v1884 = vmul.f32 %v1873, %v141
    %v1885 = vmul.f32 %v1873, %v142
    %v1898 = vrot.slane %v1874, 5
    %v1899 = vrot.slane %v1875, 5
    %v1900 = vrot.slane %v1876, 5
    %v1901 = vsel %vm799, %v1898, %v1900
    %v1902 = vrot.slane %v1877, 5
    %v1903 = vsel %vm799, %v1899, %v1902
    %v1904 = vrot.slane %v1878, 5
    %v1905 = vsel %vm799, %v1900, %v1904
    %v1906 = vrot.slane %v1879, 5
    %v1907 = vsel %vm799, %v1902, %v1906
    %v1908 = vrot.slane %v1880, 5
    %v1909 = vrot.slane %v1881, 5
    %v1910 = vrot.slane %v1882, 5
    %v1911 = vsel %vm799, %v1908, %v1910
    %v1912 = vrot.slane %v1883, 5
    %v1913 = vsel %vm799, %v1909, %v1912
    %v1914 = vrot.slane %v1884, 5
    %v1915 = vsel %vm799, %v1910, %v1914
    %v1916 = vrot.slane %v1885, 5
    %v1917 = vsel %vm799, %v1912, %v1916
    %1918 = vrot.lane.b32.xlu0 %v1898, 127
    %v1919 = vpop.permute.xlu0 %1918
    %1920 = vrot.lane.b32.xlu0 %v1899, 127
    %v1921 = vpop.permute.xlu0 %1920
    %1922 = vrot.lane.b32.xlu0 %v1901, 127
    %v1923 = vpop.permute.xlu0 %1922
    %1924 = vrot.lane.b32.xlu0 %v1903, 127
    %v1925 = vpop.permute.xlu0 %1924
    %1926 = vrot.lane.b32.xlu0 %v1905, 127
    %v1927 = vpop.permute.xlu0 %1926
    %1928 = vrot.lane.b32.xlu0 %v1907, 127
    %v1929 = vpop.permute.xlu0 %1928
    %1930 = vrot.lane.b32.xlu0 %v1908, 127
    %v1931 = vpop.permute.xlu0 %1930
    %1932 = vrot.lane.b32.xlu0 %v1909, 127
    %v1933 = vpop.permute.xlu0 %1932
    %1934 = vrot.lane.b32.xlu0 %v1911, 127
    %v1935 = vpop.permute.xlu0 %1934
    %1936 = vrot.lane.b32.xlu0 %v1913, 127
    %v1937 = vpop.permute.xlu0 %1936
    %1938 = vrot.lane.b32.xlu0 %v1915, 127
    %v1939 = vpop.permute.xlu0 %1938
    %1940 = vrot.lane.b32.xlu0 %v1917, 127
    %v1941 = vpop.permute.xlu0 %1940
    %v1942 = vsel %vm836, %v1919, %v1921
    %v1943 = vsel %vm836, %v1923, %v1925
    %v1944 = vsel %vm836, %v1927, %v1929
    %v1945 = vsel %vm836, %v1931, %v1933
    %v1946 = vsel %vm836, %v1935, %v1937
    %v1947 = vsel %vm836, %v1939, %v1941
    %v1960 = vadd.f32 %v1327, %v1942
    %v1961 = vadd.f32 %v1328, %v1921
    %v1962 = vadd.f32 %v1329, %v1943
    %v1963 = vadd.f32 %v1330, %v1925
    %v1964 = vadd.f32 %v1331, %v1944
    %v1965 = vadd.f32 %v1332, %v1929
    %v1966 = vadd.f32 %v1333, %v1945
    %v1967 = vadd.f32 %v1334, %v1933
    %v1968 = vadd.f32 %v1335, %v1946
    %v1969 = vadd.f32 %v1336, %v1937
    %v1970 = vadd.f32 %v1337, %v1947
    %v1971 = vadd.f32 %v1338, %v1941
    %v1972 = vstv %s1872
    %v1973 = vmul.f32 %v1972, %v145
    %v1974 = vmul.f32 %v1972, %v146
    %v1975 = vmul.f32 %v1972, %v147
    %v1976 = vmul.f32 %v1972, %v148
    %v1977 = vmul.f32 %v1972, %v149
    %v1978 = vmul.f32 %v1972, %v150
    %v1979 = vmul.f32 %v1972, %v153
    %v1980 = vmul.f32 %v1972, %v154
    %v1981 = vmul.f32 %v1972, %v155
    %v1982 = vmul.f32 %v1972, %v156
    %v1983 = vmul.f32 %v1972, %v157
    %v1984 = vmul.f32 %v1972, %v158
    %v1997 = vrot.slane %v1973, 5
    %v1998 = vrot.slane %v1974, 5
    %v1999 = vrot.slane %v1975, 5
    %v2000 = vsel %vm799, %v1997, %v1999
    %v2001 = vrot.slane %v1976, 5
    %v2002 = vsel %vm799, %v1998, %v2001
    %v2003 = vrot.slane %v1977, 5
    %v2004 = vsel %vm799, %v1999, %v2003
    %v2005 = vrot.slane %v1978, 5
    %v2006 = vsel %vm799, %v2001, %v2005
    %v2007 = vrot.slane %v1979, 5
    %v2008 = vrot.slane %v1980, 5
    %v2009 = vrot.slane %v1981, 5
    %v2010 = vsel %vm799, %v2007, %v2009
    %v2011 = vrot.slane %v1982, 5
    %v2012 = vsel %vm799, %v2008, %v2011
    %v2013 = vrot.slane %v1983, 5
    %v2014 = vsel %vm799, %v2009, %v2013
    %v2015 = vrot.slane %v1984, 5
    %v2016 = vsel %vm799, %v2011, %v2015
    %2017 = vrot.lane.b32.xlu0 %v1997, 127
    %v2018 = vpop.permute.xlu0 %2017
    %2019 = vrot.lane.b32.xlu0 %v1998, 127
    %v2020 = vpop.permute.xlu0 %2019
    %2021 = vrot.lane.b32.xlu0 %v2000, 127
    %v2022 = vpop.permute.xlu0 %2021
    %2023 = vrot.lane.b32.xlu0 %v2002, 127
    %v2024 = vpop.permute.xlu0 %2023
    %2025 = vrot.lane.b32.xlu0 %v2004, 127
    %v2026 = vpop.permute.xlu0 %2025
    %2027 = vrot.lane.b32.xlu0 %v2006, 127
    %v2028 = vpop.permute.xlu0 %2027
    %2029 = vrot.lane.b32.xlu0 %v2007, 127
    %v2030 = vpop.permute.xlu0 %2029
    %2031 = vrot.lane.b32.xlu0 %v2008, 127
    %v2032 = vpop.permute.xlu0 %2031
    %2033 = vrot.lane.b32.xlu0 %v2010, 127
    %v2034 = vpop.permute.xlu0 %2033
    %2035 = vrot.lane.b32.xlu0 %v2012, 127
    %v2036 = vpop.permute.xlu0 %2035
    %2037 = vrot.lane.b32.xlu0 %v2014, 127
    %v2038 = vpop.permute.xlu0 %2037
    %2039 = vrot.lane.b32.xlu0 %v2016, 127
    %v2040 = vpop.permute.xlu0 %2039
    %v2041 = vsel %vm836, %v2018, %v2020
    %v2042 = vsel %vm836, %v2022, %v2024
    %v2043 = vsel %vm836, %v2026, %v2028
    %v2044 = vsel %vm836, %v2030, %v2032
    %v2045 = vsel %vm836, %v2034, %v2036
    %v2046 = vsel %vm836, %v2038, %v2040
    %v2059 = vadd.f32 %v1960, %v2041
    %v2060 = vadd.f32 %v1961, %v2020
    %v2061 = vadd.f32 %v1962, %v2042
    %v2062 = vadd.f32 %v1963, %v2024
    %v2063 = vadd.f32 %v1964, %v2043
    %v2064 = vadd.f32 %v1965, %v2028
    %v2065 = vadd.f32 %v1966, %v2044
    %v2066 = vadd.f32 %v1967, %v2032
    %v2067 = vadd.f32 %v1968, %v2045
    %v2068 = vadd.f32 %v1969, %v2036
    %v2069 = vadd.f32 %v1970, %v2046
    %v2070 = vadd.f32 %v1971, %v2040
    %s2071 = sld [smem:[#allocation4 + $0x2]]
    %s2072 = sld [smem:[#allocation4 + $0x33]]
    %v2073 = vstv %s2071
    %v2074 = vmul.f32 %v2073, %v127
    %v2075 = vmul.f32 %v2073, %v128
    %v2076 = vmul.f32 %v2073, %v129
    %v2077 = vmul.f32 %v2073, %v130
    %v2078 = vmul.f32 %v2073, %v131
    %v2079 = vmul.f32 %v2073, %v132
    %v2080 = vmul.f32 %v2073, %v135
    %v2081 = vmul.f32 %v2073, %v136
    %v2082 = vmul.f32 %v2073, %v137
    %v2083 = vmul.f32 %v2073, %v138
    %v2084 = vmul.f32 %v2073, %v139
    %v2085 = vmul.f32 %v2073, %v140
    %vm2098 = vcmask 1041408
    %v2099 = vrot.slane %v2074, 6
    %v2100 = vrot.slane %v2075, 6
    %v2101 = vrot.slane %v2076, 6
    %v2102 = vsel %vm2098, %v2099, %v2101
    %v2103 = vrot.slane %v2077, 6
    %v2104 = vsel %vm2098, %v2100, %v2103
    %v2105 = vrot.slane %v2078, 6
    %v2106 = vsel %vm2098, %v2101, %v2105
    %v2107 = vrot.slane %v2079, 6
    %v2108 = vsel %vm2098, %v2103, %v2107
    %v2109 = vrot.slane %v2080, 6
    %v2110 = vrot.slane %v2081, 6
    %v2111 = vrot.slane %v2082, 6
    %v2112 = vsel %vm2098, %v2109, %v2111
    %v2113 = vrot.slane %v2083, 6
    %v2114 = vsel %vm2098, %v2110, %v2113
    %v2115 = vrot.slane %v2084, 6
    %v2116 = vsel %vm2098, %v2111, %v2115
    %v2117 = vrot.slane %v2085, 6
    %v2118 = vsel %vm2098, %v2113, %v2117
    %2119 = vrot.lane.b32.xlu0 %v2099, 126
    %v2120 = vpop.permute.xlu0 %2119
    %2121 = vrot.lane.b32.xlu0 %v2100, 126
    %v2122 = vpop.permute.xlu0 %2121
    %2123 = vrot.lane.b32.xlu0 %v2102, 126
    %v2124 = vpop.permute.xlu0 %2123
    %2125 = vrot.lane.b32.xlu0 %v2104, 126
    %v2126 = vpop.permute.xlu0 %2125
    %2127 = vrot.lane.b32.xlu0 %v2106, 126
    %v2128 = vpop.permute.xlu0 %2127
    %2129 = vrot.lane.b32.xlu0 %v2108, 126
    %v2130 = vpop.permute.xlu0 %2129
    %2131 = vrot.lane.b32.xlu0 %v2109, 126
    %v2132 = vpop.permute.xlu0 %2131
    %2133 = vrot.lane.b32.xlu0 %v2110, 126
    %v2134 = vpop.permute.xlu0 %2133
    %2135 = vrot.lane.b32.xlu0 %v2112, 126
    %v2136 = vpop.permute.xlu0 %2135
    %2137 = vrot.lane.b32.xlu0 %v2114, 126
    %v2138 = vpop.permute.xlu0 %2137
    %2139 = vrot.lane.b32.xlu0 %v2116, 126
    %v2140 = vpop.permute.xlu0 %2139
    %2141 = vrot.lane.b32.xlu0 %v2118, 126
    %v2142 = vpop.permute.xlu0 %2141
    %vm2143 = vcmask 1031168
    %v2144 = vsel %vm2143, %v2120, %v2122
    %v2145 = vsel %vm2143, %v2124, %v2126
    %v2146 = vsel %vm2143, %v2128, %v2130
    %v2147 = vsel %vm2143, %v2132, %v2134
    %v2148 = vsel %vm2143, %v2136, %v2138
    %v2149 = vsel %vm2143, %v2140, %v2142
    %v2162 = vadd.f32 %v1495, %v2144
    %v2163 = vadd.f32 %v1496, %v2122
    %v2164 = vadd.f32 %v1497, %v2145
    %v2165 = vadd.f32 %v1498, %v2126
    %v2166 = vadd.f32 %v1499, %v2146
    %v2167 = vadd.f32 %v1500, %v2130
    %v2168 = vadd.f32 %v1501, %v2147
    %v2169 = vadd.f32 %v1502, %v2134
    %v2170 = vadd.f32 %v1503, %v2148
    %v2171 = vadd.f32 %v1504, %v2138
    %v2172 = vadd.f32 %v1505, %v2149
    %v2173 = vadd.f32 %v1506, %v2142
    %v2174 = vstv %s2072
    %v2175 = vmul.f32 %v2174, %v143
    %v2176 = vmul.f32 %v2174, %v144
    %v2177 = vmul.f32 %v2174, %v145
    %v2178 = vmul.f32 %v2174, %v146
    %v2179 = vmul.f32 %v2174, %v147
    %v2180 = vmul.f32 %v2174, %v148
    %v2181 = vmul.f32 %v2174, %v151
    %v2182 = vmul.f32 %v2174, %v152
    %v2183 = vmul.f32 %v2174, %v153
    %v2184 = vmul.f32 %v2174, %v154
    %v2185 = vmul.f32 %v2174, %v155
    %v2186 = vmul.f32 %v2174, %v156
    %v2199 = vrot.slane %v2175, 6
    %v2200 = vrot.slane %v2176, 6
    %v2201 = vrot.slane %v2177, 6
    %v2202 = vsel %vm2098, %v2199, %v2201
    %v2203 = vrot.slane %v2178, 6
    %v2204 = vsel %vm2098, %v2200, %v2203
    %v2205 = vrot.slane %v2179, 6
    %v2206 = vsel %vm2098, %v2201, %v2205
    %v2207 = vrot.slane %v2180, 6
    %v2208 = vsel %vm2098, %v2203, %v2207
    %v2209 = vrot.slane %v2181, 6
    %v2210 = vrot.slane %v2182, 6
    %v2211 = vrot.slane %v2183, 6
    %v2212 = vsel %vm2098, %v2209, %v2211
    %v2213 = vrot.slane %v2184, 6
    %v2214 = vsel %vm2098, %v2210, %v2213
    %v2215 = vrot.slane %v2185, 6
    %v2216 = vsel %vm2098, %v2211, %v2215
    %v2217 = vrot.slane %v2186, 6
    %v2218 = vsel %vm2098, %v2213, %v2217
    %2219 = vrot.lane.b32.xlu0 %v2199, 126
    %v2220 = vpop.permute.xlu0 %2219
    %2221 = vrot.lane.b32.xlu0 %v2200, 126
    %v2222 = vpop.permute.xlu0 %2221
    %2223 = vrot.lane.b32.xlu0 %v2202, 126
    %v2224 = vpop.permute.xlu0 %2223
    %2225 = vrot.lane.b32.xlu0 %v2204, 126
    %v2226 = vpop.permute.xlu0 %2225
    %2227 = vrot.lane.b32.xlu0 %v2206, 126
    %v2228 = vpop.permute.xlu0 %2227
    %2229 = vrot.lane.b32.xlu0 %v2208, 126
    %v2230 = vpop.permute.xlu0 %2229
    %2231 = vrot.lane.b32.xlu0 %v2209, 126
    %v2232 = vpop.permute.xlu0 %2231
    %2233 = vrot.lane.b32.xlu0 %v2210, 126
    %v2234 = vpop.permute.xlu0 %2233
    %2235 = vrot.lane.b32.xlu0 %v2212, 126
    %v2236 = vpop.permute.xlu0 %2235
    %2237 = vrot.lane.b32.xlu0 %v2214, 126
    %v2238 = vpop.permute.xlu0 %2237
    %2239 = vrot.lane.b32.xlu0 %v2216, 126
    %v2240 = vpop.permute.xlu0 %2239
    %2241 = vrot.lane.b32.xlu0 %v2218, 126
    %v2242 = vpop.permute.xlu0 %2241
    %v2243 = vsel %vm2143, %v2220, %v2222
    %v2244 = vsel %vm2143, %v2224, %v2226
    %v2245 = vsel %vm2143, %v2228, %v2230
    %v2246 = vsel %vm2143, %v2232, %v2234
    %v2247 = vsel %vm2143, %v2236, %v2238
    %v2248 = vsel %vm2143, %v2240, %v2242
    %v2261 = vadd.f32 %v2162, %v2243
    %v2262 = vadd.f32 %v2163, %v2222
    %v2263 = vadd.f32 %v2164, %v2244
    %v2264 = vadd.f32 %v2165, %v2226
    %v2265 = vadd.f32 %v2166, %v2245
    %v2266 = vadd.f32 %v2167, %v2230
    %v2267 = vadd.f32 %v2168, %v2246
    %v2268 = vadd.f32 %v2169, %v2234
    %v2269 = vadd.f32 %v2170, %v2247
    %v2270 = vadd.f32 %v2171, %v2238
    %v2271 = vadd.f32 %v2172, %v2248
    %v2272 = vadd.f32 %v2173, %v2242
    %s2273 = sld [smem:[#allocation4 + $0x9]]
    %s2274 = sld [smem:[#allocation4 + $0x3a]]
    %v2275 = vstv %s2273
    %v2276 = vmul.f32 %v2275, %v127
    %v2277 = vmul.f32 %v2275, %v128
    %v2278 = vmul.f32 %v2275, %v129
    %v2279 = vmul.f32 %v2275, %v130
    %v2280 = vmul.f32 %v2275, %v131
    %v2281 = vmul.f32 %v2275, %v132
    %v2282 = vmul.f32 %v2275, %v135
    %v2283 = vmul.f32 %v2275, %v136
    %v2284 = vmul.f32 %v2275, %v137
    %v2285 = vmul.f32 %v2275, %v138
    %v2286 = vmul.f32 %v2275, %v139
    %v2287 = vmul.f32 %v2275, %v140
    %v2300 = vrot.slane %v2276, 6
    %v2301 = vrot.slane %v2278, 6
    %v2302 = vsel %vm2098, %v2300, %v2301
    %v2303 = vrot.slane %v2277, 6
    %v2304 = vrot.slane %v2279, 6
    %v2305 = vsel %vm2098, %v2303, %v2304
    %v2306 = vrot.slane %v2280, 6
    %v2307 = vsel %vm2098, %v2301, %v2306
    %v2308 = vrot.slane %v2281, 6
    %v2309 = vsel %vm2098, %v2304, %v2308
    %v2310 = vrot.slane %v2282, 6
    %v2311 = vrot.slane %v2284, 6
    %v2312 = vsel %vm2098, %v2310, %v2311
    %v2313 = vrot.slane %v2283, 6
    %v2314 = vrot.slane %v2285, 6
    %v2315 = vsel %vm2098, %v2313, %v2314
    %v2316 = vrot.slane %v2286, 6
    %v2317 = vsel %vm2098, %v2311, %v2316
    %v2318 = vrot.slane %v2287, 6
    %v2319 = vsel %vm2098, %v2314, %v2318
    %2320 = vrot.lane.b32.xlu0 %v2302, 126
    %v2321 = vpop.permute.xlu0 %2320
    %2322 = vrot.lane.b32.xlu0 %v2305, 126
    %v2323 = vpop.permute.xlu0 %2322
    %2324 = vrot.lane.b32.xlu0 %v2307, 126
    %v2325 = vpop.permute.xlu0 %2324
    %2326 = vrot.lane.b32.xlu0 %v2309, 126
    %v2327 = vpop.permute.xlu0 %2326
    %2328 = vrot.lane.b32.xlu0 %v2312, 126
    %v2329 = vpop.permute.xlu0 %2328
    %2330 = vrot.lane.b32.xlu0 %v2315, 126
    %v2331 = vpop.permute.xlu0 %2330
    %2332 = vrot.lane.b32.xlu0 %v2317, 126
    %v2333 = vpop.permute.xlu0 %2332
    %2334 = vrot.lane.b32.xlu0 %v2319, 126
    %v2335 = vpop.permute.xlu0 %2334
    %v2336 = vsel %vm2143, %v2321, %v2323
    %v2337 = vsel %vm2143, %v2325, %v2327
    %v2338 = vsel %vm2143, %v2329, %v2331
    %v2339 = vsel %vm2143, %v2333, %v2335
    %v2348 = vadd.f32 %v1663, %v2336
    %v2349 = vadd.f32 %v1664, %v2323
    %v2350 = vadd.f32 %v1665, %v2337
    %v2351 = vadd.f32 %v1666, %v2327
    %v2352 = vadd.f32 %v1667, %v2338
    %v2353 = vadd.f32 %v1668, %v2331
    %v2354 = vadd.f32 %v1669, %v2339
    %v2355 = vadd.f32 %v1670, %v2335
    %v2356 = vstv %s2274
    %v2357 = vmul.f32 %v2356, %v143
    %v2358 = vmul.f32 %v2356, %v144
    %v2359 = vmul.f32 %v2356, %v145
    %v2360 = vmul.f32 %v2356, %v146
    %v2361 = vmul.f32 %v2356, %v147
    %v2362 = vmul.f32 %v2356, %v148
    %v2363 = vmul.f32 %v2356, %v151
    %v2364 = vmul.f32 %v2356, %v152
    %v2365 = vmul.f32 %v2356, %v153
    %v2366 = vmul.f32 %v2356, %v154
    %v2367 = vmul.f32 %v2356, %v155
    %v2368 = vmul.f32 %v2356, %v156
    %v2381 = vrot.slane %v2357, 6
    %v2382 = vrot.slane %v2359, 6
    %v2383 = vsel %vm2098, %v2381, %v2382
    %v2384 = vrot.slane %v2358, 6
    %v2385 = vrot.slane %v2360, 6
    %v2386 = vsel %vm2098, %v2384, %v2385
    %v2387 = vrot.slane %v2361, 6
    %v2388 = vsel %vm2098, %v2382, %v2387
    %v2389 = vrot.slane %v2362, 6
    %v2390 = vsel %vm2098, %v2385, %v2389
    %v2391 = vrot.slane %v2363, 6
    %v2392 = vrot.slane %v2365, 6
    %v2393 = vsel %vm2098, %v2391, %v2392
    %v2394 = vrot.slane %v2364, 6
    %v2395 = vrot.slane %v2366, 6
    %v2396 = vsel %vm2098, %v2394, %v2395
    %v2397 = vrot.slane %v2367, 6
    %v2398 = vsel %vm2098, %v2392, %v2397
    %v2399 = vrot.slane %v2368, 6
    %v2400 = vsel %vm2098, %v2395, %v2399
    %2401 = vrot.lane.b32.xlu0 %v2383, 126
    %v2402 = vpop.permute.xlu0 %2401
    %2403 = vrot.lane.b32.xlu0 %v2386, 126
    %v2404 = vpop.permute.xlu0 %2403
    %2405 = vrot.lane.b32.xlu0 %v2388, 126
    %v2406 = vpop.permute.xlu0 %2405
    %2407 = vrot.lane.b32.xlu0 %v2390, 126
    %v2408 = vpop.permute.xlu0 %2407
    %2409 = vrot.lane.b32.xlu0 %v2393, 126
    %v2410 = vpop.permute.xlu0 %2409
    %2411 = vrot.lane.b32.xlu0 %v2396, 126
    %v2412 = vpop.permute.xlu0 %2411
    %2413 = vrot.lane.b32.xlu0 %v2398, 126
    %v2414 = vpop.permute.xlu0 %2413
    %2415 = vrot.lane.b32.xlu0 %v2400, 126
    %v2416 = vpop.permute.xlu0 %2415
    %v2417 = vsel %vm2143, %v2402, %v2404
    %v2418 = vsel %vm2143, %v2406, %v2408
    %v2419 = vsel %vm2143, %v2410, %v2412
    %v2420 = vsel %vm2143, %v2414, %v2416
    %v2429 = vadd.f32 %v2348, %v2417
    %v2430 = vadd.f32 %v2349, %v2404
    %v2431 = vadd.f32 %v2350, %v2418
    %v2432 = vadd.f32 %v2351, %v2408
    %v2433 = vadd.f32 %v2352, %v2419
    %v2434 = vadd.f32 %v2353, %v2412
    %v2435 = vadd.f32 %v2354, %v2420
    %v2436 = vadd.f32 %v2355, %v2416
    %s2437 = sld [smem:[#allocation4 + $0x10]]
    %s2438 = sld [smem:[#allocation4 + $0x41]]
    %v2439 = vstv %s2437
    %v2440 = vmul.f32 %v2439, %v127
    %v2441 = vmul.f32 %v2439, %v128
    %v2442 = vmul.f32 %v2439, %v129
    %v2443 = vmul.f32 %v2439, %v130
    %v2444 = vmul.f32 %v2439, %v131
    %v2445 = vmul.f32 %v2439, %v132
    %v2446 = vmul.f32 %v2439, %v135
    %v2447 = vmul.f32 %v2439, %v136
    %v2448 = vmul.f32 %v2439, %v137
    %v2449 = vmul.f32 %v2439, %v138
    %v2450 = vmul.f32 %v2439, %v139
    %v2451 = vmul.f32 %v2439, %v140
    %vm2464 = vcmask 1045504
    %v2465 = vrot.slane %v2440, 2
    %v2466 = vrot.slane %v2442, 2
    %v2467 = vsel %vm2464, %v2465, %v2466
    %v2468 = vrot.slane %v2441, 2
    %v2469 = vrot.slane %v2443, 2
    %v2470 = vsel %vm2464, %v2468, %v2469
    %v2471 = vrot.slane %v2444, 2
    %v2472 = vsel %vm2464, %v2466, %v2471
    %v2473 = vrot.slane %v2445, 2
    %v2474 = vsel %vm2464, %v2469, %v2473
    %v2475 = vrot.slane %v2446, 2
    %v2476 = vrot.slane %v2448, 2
    %v2477 = vsel %vm2464, %v2475, %v2476
    %v2478 = vrot.slane %v2447, 2
    %v2479 = vrot.slane %v2449, 2
    %v2480 = vsel %vm2464, %v2478, %v2479
    %v2481 = vrot.slane %v2450, 2
    %v2482 = vsel %vm2464, %v2476, %v2481
    %v2483 = vrot.slane %v2451, 2
    %v2484 = vsel %vm2464, %v2479, %v2483
    %2485 = vrot.lane.b32.xlu0 %v2467, 126
    %v2486 = vpop.permute.xlu0 %2485
    %2487 = vrot.lane.b32.xlu0 %v2470, 126
    %v2488 = vpop.permute.xlu0 %2487
    %2489 = vrot.lane.b32.xlu0 %v2472, 126
    %v2490 = vpop.permute.xlu0 %2489
    %2491 = vrot.lane.b32.xlu0 %v2474, 126
    %v2492 = vpop.permute.xlu0 %2491
    %2493 = vrot.lane.b32.xlu0 %v2471, 126
    %v2494 = vpop.permute.xlu0 %2493
    %2495 = vrot.lane.b32.xlu0 %v2473, 126
    %v2496 = vpop.permute.xlu0 %2495
    %2497 = vrot.lane.b32.xlu0 %v2477, 126
    %v2498 = vpop.permute.xlu0 %2497
    %2499 = vrot.lane.b32.xlu0 %v2480, 126
    %v2500 = vpop.permute.xlu0 %2499
    %2501 = vrot.lane.b32.xlu0 %v2482, 126
    %v2502 = vpop.permute.xlu0 %2501
    %2503 = vrot.lane.b32.xlu0 %v2484, 126
    %v2504 = vpop.permute.xlu0 %2503
    %2505 = vrot.lane.b32.xlu0 %v2481, 126
    %v2506 = vpop.permute.xlu0 %2505
    %2507 = vrot.lane.b32.xlu0 %v2483, 126
    %v2508 = vpop.permute.xlu0 %2507
    %v2509 = vsel %vm2143, %v2486, %v2488
    %v2510 = vsel %vm2143, %v2490, %v2492
    %v2511 = vsel %vm2143, %v2494, %v2496
    %v2512 = vsel %vm2143, %v2498, %v2500
    %v2513 = vsel %vm2143, %v2502, %v2504
    %v2514 = vsel %vm2143, %v2506, %v2508
    %v2527 = vadd.f32 %v1859, %v2509
    %v2528 = vadd.f32 %v1860, %v2488
    %v2529 = vadd.f32 %v1861, %v2510
    %v2530 = vadd.f32 %v1862, %v2492
    %v2531 = vadd.f32 %v1863, %v2511
    %v2532 = vadd.f32 %v1864, %v2496
    %v2533 = vadd.f32 %v1865, %v2512
    %v2534 = vadd.f32 %v1866, %v2500
    %v2535 = vadd.f32 %v1867, %v2513
    %v2536 = vadd.f32 %v1868, %v2504
    %v2537 = vadd.f32 %v1869, %v2514
    %v2538 = vadd.f32 %v1870, %v2508
    %v2539 = vstv %s2438
    %v2540 = vmul.f32 %v2539, %v143
    %v2541 = vmul.f32 %v2539, %v144
    %v2542 = vmul.f32 %v2539, %v145
    %v2543 = vmul.f32 %v2539, %v146
    %v2544 = vmul.f32 %v2539, %v147
    %v2545 = vmul.f32 %v2539, %v148
    %v2546 = vmul.f32 %v2539, %v151
    %v2547 = vmul.f32 %v2539, %v152
    %v2548 = vmul.f32 %v2539, %v153
    %v2549 = vmul.f32 %v2539, %v154
    %v2550 = vmul.f32 %v2539, %v155
    %v2551 = vmul.f32 %v2539, %v156
    %v2564 = vrot.slane %v2540, 2
    %v2565 = vrot.slane %v2542, 2
    %v2566 = vsel %vm2464, %v2564, %v2565
    %v2567 = vrot.slane %v2541, 2
    %v2568 = vrot.slane %v2543, 2
    %v2569 = vsel %vm2464, %v2567, %v2568
    %v2570 = vrot.slane %v2544, 2
    %v2571 = vsel %vm2464, %v2565, %v2570
    %v2572 = vrot.slane %v2545, 2
    %v2573 = vsel %vm2464, %v2568, %v2572
    %v2574 = vrot.slane %v2546, 2
    %v2575 = vrot.slane %v2548, 2
    %v2576 = vsel %vm2464, %v2574, %v2575
    %v2577 = vrot.slane %v2547, 2
    %v2578 = vrot.slane %v2549, 2
    %v2579 = vsel %vm2464, %v2577, %v2578
    %v2580 = vrot.slane %v2550, 2
    %v2581 = vsel %vm2464, %v2575, %v2580
    %v2582 = vrot.slane %v2551, 2
    %v2583 = vsel %vm2464, %v2578, %v2582
    %2584 = vrot.lane.b32.xlu0 %v2566, 126
    %v2585 = vpop.permute.xlu0 %2584
    %2586 = vrot.lane.b32.xlu0 %v2569, 126
    %v2587 = vpop.permute.xlu0 %2586
    %2588 = vrot.lane.b32.xlu0 %v2571, 126
    %v2589 = vpop.permute.xlu0 %2588
    %2590 = vrot.lane.b32.xlu0 %v2573, 126
    %v2591 = vpop.permute.xlu0 %2590
    %2592 = vrot.lane.b32.xlu0 %v2570, 126
    %v2593 = vpop.permute.xlu0 %2592
    %2594 = vrot.lane.b32.xlu0 %v2572, 126
    %v2595 = vpop.permute.xlu0 %2594
    %2596 = vrot.lane.b32.xlu0 %v2576, 126
    %v2597 = vpop.permute.xlu0 %2596
    %2598 = vrot.lane.b32.xlu0 %v2579, 126
    %v2599 = vpop.permute.xlu0 %2598
    %2600 = vrot.lane.b32.xlu0 %v2581, 126
    %v2601 = vpop.permute.xlu0 %2600
    %2602 = vrot.lane.b32.xlu0 %v2583, 126
    %v2603 = vpop.permute.xlu0 %2602
    %2604 = vrot.lane.b32.xlu0 %v2580, 126
    %v2605 = vpop.permute.xlu0 %2604
    %2606 = vrot.lane.b32.xlu0 %v2582, 126
    %v2607 = vpop.permute.xlu0 %2606
    %v2608 = vsel %vm2143, %v2585, %v2587
    %v2609 = vsel %vm2143, %v2589, %v2591
    %v2610 = vsel %vm2143, %v2593, %v2595
    %v2611 = vsel %vm2143, %v2597, %v2599
    %v2612 = vsel %vm2143, %v2601, %v2603
    %v2613 = vsel %vm2143, %v2605, %v2607
    %v2626 = vadd.f32 %v2527, %v2608
    %v2627 = vadd.f32 %v2528, %v2587
    %v2628 = vadd.f32 %v2529, %v2609
    %v2629 = vadd.f32 %v2530, %v2591
    %v2630 = vadd.f32 %v2531, %v2610
    %v2631 = vadd.f32 %v2532, %v2595
    %v2632 = vadd.f32 %v2533, %v2611
    %v2633 = vadd.f32 %v2534, %v2599
    %v2634 = vadd.f32 %v2535, %v2612
    %v2635 = vadd.f32 %v2536, %v2603
    %v2636 = vadd.f32 %v2537, %v2613
    %v2637 = vadd.f32 %v2538, %v2607
    %s2638 = sld [smem:[#allocation4 + $0x17]]
    %s2639 = sld [smem:[#allocation4 + $0x48]]
    %v2640 = vstv %s2638
    %v2641 = vmul.f32 %v2640, %v129
    %v2642 = vmul.f32 %v2640, %v130
    %v2643 = vmul.f32 %v2640, %v131
    %v2644 = vmul.f32 %v2640, %v132
    %v2645 = vmul.f32 %v2640, %v137
    %v2646 = vmul.f32 %v2640, %v138
    %v2647 = vmul.f32 %v2640, %v139
    %v2648 = vmul.f32 %v2640, %v140
    %v2657 = vrot.slane %v2641, 2
    %v2658 = vrot.slane %v2642, 2
    %v2659 = vrot.slane %v2643, 2
    %v2660 = vsel %vm2464, %v2657, %v2659
    %v2661 = vrot.slane %v2644, 2
    %v2662 = vsel %vm2464, %v2658, %v2661
    %v2663 = vrot.slane %v2645, 2
    %v2664 = vrot.slane %v2646, 2
    %v2665 = vrot.slane %v2647, 2
    %v2666 = vsel %vm2464, %v2663, %v2665
    %v2667 = vrot.slane %v2648, 2
    %v2668 = vsel %vm2464, %v2664, %v2667
    %2669 = vrot.lane.b32.xlu0 %v2657, 126
    %v2670 = vpop.permute.xlu0 %2669
    %2671 = vrot.lane.b32.xlu0 %v2658, 126
    %v2672 = vpop.permute.xlu0 %2671
    %2673 = vrot.lane.b32.xlu0 %v2660, 126
    %v2674 = vpop.permute.xlu0 %2673
    %2675 = vrot.lane.b32.xlu0 %v2662, 126
    %v2676 = vpop.permute.xlu0 %2675
    %2677 = vrot.lane.b32.xlu0 %v2659, 126
    %v2678 = vpop.permute.xlu0 %2677
    %2679 = vrot.lane.b32.xlu0 %v2661, 126
    %v2680 = vpop.permute.xlu0 %2679
    %2681 = vrot.lane.b32.xlu0 %v2663, 126
    %v2682 = vpop.permute.xlu0 %2681
    %2683 = vrot.lane.b32.xlu0 %v2664, 126
    %v2684 = vpop.permute.xlu0 %2683
    %2685 = vrot.lane.b32.xlu0 %v2666, 126
    %v2686 = vpop.permute.xlu0 %2685
    %2687 = vrot.lane.b32.xlu0 %v2668, 126
    %v2688 = vpop.permute.xlu0 %2687
    %2689 = vrot.lane.b32.xlu0 %v2665, 126
    %v2690 = vpop.permute.xlu0 %2689
    %2691 = vrot.lane.b32.xlu0 %v2667, 126
    %v2692 = vpop.permute.xlu0 %2691
    %v2693 = vsel %vm2143, %v2670, %v2672
    %v2694 = vsel %vm2143, %v2674, %v2676
    %v2695 = vsel %vm2143, %v2678, %v2680
    %v2696 = vsel %vm2143, %v2682, %v2684
    %v2697 = vsel %vm2143, %v2686, %v2688
    %v2698 = vsel %vm2143, %v2690, %v2692
    %v2711 = vadd.f32 %v2059, %v2693
    %v2712 = vadd.f32 %v2060, %v2672
    %v2713 = vadd.f32 %v2061, %v2694
    %v2714 = vadd.f32 %v2062, %v2676
    %v2715 = vadd.f32 %v2063, %v2695
    %v2716 = vadd.f32 %v2064, %v2680
    %v2717 = vadd.f32 %v2065, %v2696
    %v2718 = vadd.f32 %v2066, %v2684
    %v2719 = vadd.f32 %v2067, %v2697
    %v2720 = vadd.f32 %v2068, %v2688
    %v2721 = vadd.f32 %v2069, %v2698
    %v2722 = vadd.f32 %v2070, %v2692
    %v2723 = vstv %s2639
    %v2724 = vmul.f32 %v2723, %v145
    %v2725 = vmul.f32 %v2723, %v146
    %v2726 = vmul.f32 %v2723, %v147
    %v2727 = vmul.f32 %v2723, %v148
    %v2728 = vmul.f32 %v2723, %v153
    %v2729 = vmul.f32 %v2723, %v154
    %v2730 = vmul.f32 %v2723, %v155
    %v2731 = vmul.f32 %v2723, %v156
    %v2740 = vrot.slane %v2724, 2
    %v2741 = vrot.slane %v2725, 2
    %v2742 = vrot.slane %v2726, 2
    %v2743 = vsel %vm2464, %v2740, %v2742
    %v2744 = vrot.slane %v2727, 2
    %v2745 = vsel %vm2464, %v2741, %v2744
    %v2746 = vrot.slane %v2728, 2
    %v2747 = vrot.slane %v2729, 2
    %v2748 = vrot.slane %v2730, 2
    %v2749 = vsel %vm2464, %v2746, %v2748
    %v2750 = vrot.slane %v2731, 2
    %v2751 = vsel %vm2464, %v2747, %v2750
    %2752 = vrot.lane.b32.xlu0 %v2740, 126
    %v2753 = vpop.permute.xlu0 %2752
    %2754 = vrot.lane.b32.xlu0 %v2741, 126
    %v2755 = vpop.permute.xlu0 %2754
    %2756 = vrot.lane.b32.xlu0 %v2743, 126
    %v2757 = vpop.permute.xlu0 %2756
    %2758 = vrot.lane.b32.xlu0 %v2745, 126
    %v2759 = vpop.permute.xlu0 %2758
    %2760 = vrot.lane.b32.xlu0 %v2742, 126
    %v2761 = vpop.permute.xlu0 %2760
    %2762 = vrot.lane.b32.xlu0 %v2744, 126
    %v2763 = vpop.permute.xlu0 %2762
    %2764 = vrot.lane.b32.xlu0 %v2746, 126
    %v2765 = vpop.permute.xlu0 %2764
    %2766 = vrot.lane.b32.xlu0 %v2747, 126
    %v2767 = vpop.permute.xlu0 %2766
    %2768 = vrot.lane.b32.xlu0 %v2749, 126
    %v2769 = vpop.permute.xlu0 %2768
    %2770 = vrot.lane.b32.xlu0 %v2751, 126
    %v2771 = vpop.permute.xlu0 %2770
    %2772 = vrot.lane.b32.xlu0 %v2748, 126
    %v2773 = vpop.permute.xlu0 %2772
    %2774 = vrot.lane.b32.xlu0 %v2750, 126
    %v2775 = vpop.permute.xlu0 %2774
    %v2776 = vsel %vm2143, %v2753, %v2755
    %v2777 = vsel %vm2143, %v2757, %v2759
    %v2778 = vsel %vm2143, %v2761, %v2763
    %v2779 = vsel %vm2143, %v2765, %v2767
    %v2780 = vsel %vm2143, %v2769, %v2771
    %v2781 = vsel %vm2143, %v2773, %v2775
    %v2794 = vadd.f32 %v2711, %v2776
    %v2795 = vadd.f32 %v2712, %v2755
    %v2796 = vadd.f32 %v2713, %v2777
    %v2797 = vadd.f32 %v2714, %v2759
    %v2798 = vadd.f32 %v2715, %v2778
    %v2799 = vadd.f32 %v2716, %v2763
    %v2800 = vadd.f32 %v2717, %v2779
    %v2801 = vadd.f32 %v2718, %v2767
    %v2802 = vadd.f32 %v2719, %v2780
    %v2803 = vadd.f32 %v2720, %v2771
    %v2804 = vadd.f32 %v2721, %v2781
    %v2805 = vadd.f32 %v2722, %v2775
    %s2806 = sld [smem:[#allocation4 + $0x1e]]
    %s2807 = sld [smem:[#allocation4 + $0x4f]]
    %v2808 = vstv %s2806
    %v2809 = vmul.f32 %v2808, %v129
    %v2810 = vmul.f32 %v2808, %v130
    %v2811 = vmul.f32 %v2808, %v131
    %v2812 = vmul.f32 %v2808, %v132
    %v2813 = vmul.f32 %v2808, %v133
    %v2814 = vmul.f32 %v2808, %v134
    %v2815 = vmul.f32 %v2808, %v137
    %v2816 = vmul.f32 %v2808, %v138
    %v2817 = vmul.f32 %v2808, %v139
    %v2818 = vmul.f32 %v2808, %v140
    %v2819 = vmul.f32 %v2808, %v141
    %v2820 = vmul.f32 %v2808, %v142
    %v2833 = vrot.slane %v2809, 2
    %v2834 = vrot.slane %v2810, 2
    %v2835 = vrot.slane %v2811, 2
    %v2836 = vsel %vm2464, %v2833, %v2835
    %v2837 = vrot.slane %v2812, 2
    %v2838 = vsel %vm2464, %v2834, %v2837
    %v2839 = vrot.slane %v2813, 2
    %v2840 = vsel %vm2464, %v2835, %v2839
    %v2841 = vrot.slane %v2814, 2
    %v2842 = vsel %vm2464, %v2837, %v2841
    %v2843 = vrot.slane %v2815, 2
    %v2844 = vrot.slane %v2816, 2
    %v2845 = vrot.slane %v2817, 2
    %v2846 = vsel %vm2464, %v2843, %v2845
    %v2847 = vrot.slane %v2818, 2
    %v2848 = vsel %vm2464, %v2844, %v2847
    %v2849 = vrot.slane %v2819, 2
    %v2850 = vsel %vm2464, %v2845, %v2849
    %v2851 = vrot.slane %v2820, 2
    %v2852 = vsel %vm2464, %v2847, %v2851
    %2853 = vrot.lane.b32.xlu0 %v2833, 126
    %v2854 = vpop.permute.xlu0 %2853
    %2855 = vrot.lane.b32.xlu0 %v2834, 126
    %v2856 = vpop.permute.xlu0 %2855
    %2857 = vrot.lane.b32.xlu0 %v2836, 126
    %v2858 = vpop.permute.xlu0 %2857
    %2859 = vrot.lane.b32.xlu0 %v2838, 126
    %v2860 = vpop.permute.xlu0 %2859
    %2861 = vrot.lane.b32.xlu0 %v2840, 126
    %v2862 = vpop.permute.xlu0 %2861
    %2863 = vrot.lane.b32.xlu0 %v2842, 126
    %v2864 = vpop.permute.xlu0 %2863
    %2865 = vrot.lane.b32.xlu0 %v2843, 126
    %v2866 = vpop.permute.xlu0 %2865
    %2867 = vrot.lane.b32.xlu0 %v2844, 126
    %v2868 = vpop.permute.xlu0 %2867
    %2869 = vrot.lane.b32.xlu0 %v2846, 126
    %v2870 = vpop.permute.xlu0 %2869
    %2871 = vrot.lane.b32.xlu0 %v2848, 126
    %v2872 = vpop.permute.xlu0 %2871
    %2873 = vrot.lane.b32.xlu0 %v2850, 126
    %v2874 = vpop.permute.xlu0 %2873
    %2875 = vrot.lane.b32.xlu0 %v2852, 126
    %v2876 = vpop.permute.xlu0 %2875
    %v2877 = vsel %vm2143, %v2854, %v2856
    %v2878 = vsel %vm2143, %v2858, %v2860
    %v2879 = vsel %vm2143, %v2862, %v2864
    %v2880 = vsel %vm2143, %v2866, %v2868
    %v2881 = vsel %vm2143, %v2870, %v2872
    %v2882 = vsel %vm2143, %v2874, %v2876
    %v2895 = vadd.f32 %v2261, %v2877
    %v2896 = vadd.f32 %v2262, %v2856
    %v2897 = vadd.f32 %v2263, %v2878
    %v2898 = vadd.f32 %v2264, %v2860
    %v2899 = vadd.f32 %v2265, %v2879
    %v2900 = vadd.f32 %v2266, %v2864
    %v2901 = vadd.f32 %v2267, %v2880
    %v2902 = vadd.f32 %v2268, %v2868
    %v2903 = vadd.f32 %v2269, %v2881
    %v2904 = vadd.f32 %v2270, %v2872
    %v2905 = vadd.f32 %v2271, %v2882
    %v2906 = vadd.f32 %v2272, %v2876
    %v2907 = vstv %s2807
    %v2908 = vmul.f32 %v2907, %v145
    %v2909 = vmul.f32 %v2907, %v146
    %v2910 = vmul.f32 %v2907, %v147
    %v2911 = vmul.f32 %v2907, %v148
    %v2912 = vmul.f32 %v2907, %v149
    %v2913 = vmul.f32 %v2907, %v150
    %v2914 = vmul.f32 %v2907, %v153
    %v2915 = vmul.f32 %v2907, %v154
    %v2916 = vmul.f32 %v2907, %v155
    %v2917 = vmul.f32 %v2907, %v156
    %v2918 = vmul.f32 %v2907, %v157
    %v2919 = vmul.f32 %v2907, %v158
    %v2932 = vrot.slane %v2908, 2
    %v2933 = vrot.slane %v2909, 2
    %v2934 = vrot.slane %v2910, 2
    %v2935 = vsel %vm2464, %v2932, %v2934
    %v2936 = vrot.slane %v2911, 2
    %v2937 = vsel %vm2464, %v2933, %v2936
    %v2938 = vrot.slane %v2912, 2
    %v2939 = vsel %vm2464, %v2934, %v2938
    %v2940 = vrot.slane %v2913, 2
    %v2941 = vsel %vm2464, %v2936, %v2940
    %v2942 = vrot.slane %v2914, 2
    %v2943 = vrot.slane %v2915, 2
    %v2944 = vrot.slane %v2916, 2
    %v2945 = vsel %vm2464, %v2942, %v2944
    %v2946 = vrot.slane %v2917, 2
    %v2947 = vsel %vm2464, %v2943, %v2946
    %v2948 = vrot.slane %v2918, 2
    %v2949 = vsel %vm2464, %v2944, %v2948
    %v2950 = vrot.slane %v2919, 2
    %v2951 = vsel %vm2464, %v2946, %v2950
    %2952 = vrot.lane.b32.xlu0 %v2932, 126
    %v2953 = vpop.permute.xlu0 %2952
    %2954 = vrot.lane.b32.xlu0 %v2933, 126
    %v2955 = vpop.permute.xlu0 %2954
    %2956 = vrot.lane.b32.xlu0 %v2935, 126
    %v2957 = vpop.permute.xlu0 %2956
    %2958 = vrot.lane.b32.xlu0 %v2937, 126
    %v2959 = vpop.permute.xlu0 %2958
    %2960 = vrot.lane.b32.xlu0 %v2939, 126
    %v2961 = vpop.permute.xlu0 %2960
    %2962 = vrot.lane.b32.xlu0 %v2941, 126
    %v2963 = vpop.permute.xlu0 %2962
    %2964 = vrot.lane.b32.xlu0 %v2942, 126
    %v2965 = vpop.permute.xlu0 %2964
    %2966 = vrot.lane.b32.xlu0 %v2943, 126
    %v2967 = vpop.permute.xlu0 %2966
    %2968 = vrot.lane.b32.xlu0 %v2945, 126
    %v2969 = vpop.permute.xlu0 %2968
    %2970 = vrot.lane.b32.xlu0 %v2947, 126
    %v2971 = vpop.permute.xlu0 %2970
    %2972 = vrot.lane.b32.xlu0 %v2949, 126
    %v2973 = vpop.permute.xlu0 %2972
    %2974 = vrot.lane.b32.xlu0 %v2951, 126
    %v2975 = vpop.permute.xlu0 %2974
    %v2976 = vsel %vm2143, %v2953, %v2955
    %v2977 = vsel %vm2143, %v2957, %v2959
    %v2978 = vsel %vm2143, %v2961, %v2963
    %v2979 = vsel %vm2143, %v2965, %v2967
    %v2980 = vsel %vm2143, %v2969, %v2971
    %v2981 = vsel %vm2143, %v2973, %v2975
    %v2994 = vadd.f32 %v2895, %v2976
    %v2995 = vadd.f32 %v2896, %v2955
    %v2996 = vadd.f32 %v2897, %v2977
    %v2997 = vadd.f32 %v2898, %v2959
    %v2998 = vadd.f32 %v2899, %v2978
    %v2999 = vadd.f32 %v2900, %v2963
    %v3000 = vadd.f32 %v2901, %v2979
    %v3001 = vadd.f32 %v2902, %v2967
    %v3002 = vadd.f32 %v2903, %v2980
    %v3003 = vadd.f32 %v2904, %v2971
    %v3004 = vadd.f32 %v2905, %v2981
    %v3005 = vadd.f32 %v2906, %v2975
    %s3006 = sld [smem:[#allocation4 + $0x25]]
    %s3007 = sld [smem:[#allocation4 + $0x56]]
    %v3008 = vstv %s3006
    %v3009 = vmul.f32 %v3008, %v129
    %v3010 = vmul.f32 %v3008, %v130
    %v3011 = vmul.f32 %v3008, %v131
    %v3012 = vmul.f32 %v3008, %v132
    %v3013 = vmul.f32 %v3008, %v133
    %v3014 = vmul.f32 %v3008, %v134
    %v3015 = vmul.f32 %v3008, %v137
    %v3016 = vmul.f32 %v3008, %v138
    %v3017 = vmul.f32 %v3008, %v139
    %v3018 = vmul.f32 %v3008, %v140
    %v3019 = vmul.f32 %v3008, %v141
    %v3020 = vmul.f32 %v3008, %v142
    %v3033 = vrot.slane %v3009, 2
    %v3034 = vrot.slane %v3011, 2
    %v3035 = vsel %vm2464, %v3033, %v3034
    %v3036 = vrot.slane %v3010, 2
    %v3037 = vrot.slane %v3012, 2
    %v3038 = vsel %vm2464, %v3036, %v3037
    %v3039 = vrot.slane %v3013, 2
    %v3040 = vsel %vm2464, %v3034, %v3039
    %v3041 = vrot.slane %v3014, 2
    %v3042 = vsel %vm2464, %v3037, %v3041
    %v3043 = vrot.slane %v3015, 2
    %v3044 = vrot.slane %v3017, 2
    %v3045 = vsel %vm2464, %v3043, %v3044
    %v3046 = vrot.slane %v3016, 2
    %v3047 = vrot.slane %v3018, 2
    %v3048 = vsel %vm2464, %v3046, %v3047
    %v3049 = vrot.slane %v3019, 2
    %v3050 = vsel %vm2464, %v3044, %v3049
    %v3051 = vrot.slane %v3020, 2
    %v3052 = vsel %vm2464, %v3047, %v3051
    %3053 = vrot.lane.b32.xlu0 %v3035, 126
    %v3054 = vpop.permute.xlu0 %3053
    %3055 = vrot.lane.b32.xlu0 %v3038, 126
    %v3056 = vpop.permute.xlu0 %3055
    %3057 = vrot.lane.b32.xlu0 %v3040, 126
    %v3058 = vpop.permute.xlu0 %3057
    %3059 = vrot.lane.b32.xlu0 %v3042, 126
    %v3060 = vpop.permute.xlu0 %3059
    %3061 = vrot.lane.b32.xlu0 %v3045, 126
    %v3062 = vpop.permute.xlu0 %3061
    %3063 = vrot.lane.b32.xlu0 %v3048, 126
    %v3064 = vpop.permute.xlu0 %3063
    %3065 = vrot.lane.b32.xlu0 %v3050, 126
    %v3066 = vpop.permute.xlu0 %3065
    %3067 = vrot.lane.b32.xlu0 %v3052, 126
    %v3068 = vpop.permute.xlu0 %3067
    %v3069 = vsel %vm2143, %v3054, %v3056
    %v3070 = vsel %vm2143, %v3058, %v3060
    %v3071 = vsel %vm2143, %v3062, %v3064
    %v3072 = vsel %vm2143, %v3066, %v3068
    %v3081 = vadd.f32 %v2429, %v3069
    %v3082 = vadd.f32 %v2430, %v3056
    %v3083 = vadd.f32 %v2431, %v3070
    %v3084 = vadd.f32 %v2432, %v3060
    %v3085 = vadd.f32 %v2433, %v3071
    %v3086 = vadd.f32 %v2434, %v3064
    %v3087 = vadd.f32 %v2435, %v3072
    %v3088 = vadd.f32 %v2436, %v3068
    %v3089 = vstv %s3007
    %v3090 = vmul.f32 %v3089, %v145
    %v3091 = vmul.f32 %v3089, %v146
    %v3092 = vmul.f32 %v3089, %v147
    %v3093 = vmul.f32 %v3089, %v148
    %v3094 = vmul.f32 %v3089, %v149
    %v3095 = vmul.f32 %v3089, %v150
    %v3096 = vmul.f32 %v3089, %v153
    %v3097 = vmul.f32 %v3089, %v154
    %v3098 = vmul.f32 %v3089, %v155
    %v3099 = vmul.f32 %v3089, %v156
    %v3100 = vmul.f32 %v3089, %v157
    %v3101 = vmul.f32 %v3089, %v158
    %v3114 = vrot.slane %v3090, 2
    %v3115 = vrot.slane %v3092, 2
    %v3116 = vsel %vm2464, %v3114, %v3115
    %v3117 = vrot.slane %v3091, 2
    %v3118 = vrot.slane %v3093, 2
    %v3119 = vsel %vm2464, %v3117, %v3118
    %v3120 = vrot.slane %v3094, 2
    %v3121 = vsel %vm2464, %v3115, %v3120
    %v3122 = vrot.slane %v3095, 2
    %v3123 = vsel %vm2464, %v3118, %v3122
    %v3124 = vrot.slane %v3096, 2
    %v3125 = vrot.slane %v3098, 2
    %v3126 = vsel %vm2464, %v3124, %v3125
    %v3127 = vrot.slane %v3097, 2
    %v3128 = vrot.slane %v3099, 2
    %v3129 = vsel %vm2464, %v3127, %v3128
    %v3130 = vrot.slane %v3100, 2
    %v3131 = vsel %vm2464, %v3125, %v3130
    %v3132 = vrot.slane %v3101, 2
    %v3133 = vsel %vm2464, %v3128, %v3132
    %3134 = vrot.lane.b32.xlu0 %v3116, 126
    %v3135 = vpop.permute.xlu0 %3134
    %3136 = vrot.lane.b32.xlu0 %v3119, 126
    %v3137 = vpop.permute.xlu0 %3136
    %3138 = vrot.lane.b32.xlu0 %v3121, 126
    %v3139 = vpop.permute.xlu0 %3138
    %3140 = vrot.lane.b32.xlu0 %v3123, 126
    %v3141 = vpop.permute.xlu0 %3140
    %3142 = vrot.lane.b32.xlu0 %v3126, 126
    %v3143 = vpop.permute.xlu0 %3142
    %3144 = vrot.lane.b32.xlu0 %v3129, 126
    %v3145 = vpop.permute.xlu0 %3144
    %3146 = vrot.lane.b32.xlu0 %v3131, 126
    %v3147 = vpop.permute.xlu0 %3146
    %3148 = vrot.lane.b32.xlu0 %v3133, 126
    %v3149 = vpop.permute.xlu0 %3148
    %v3150 = vsel %vm2143, %v3135, %v3137
    %v3151 = vsel %vm2143, %v3139, %v3141
    %v3152 = vsel %vm2143, %v3143, %v3145
    %v3153 = vsel %vm2143, %v3147, %v3149
    %v3162 = vadd.f32 %v3081, %v3150
    %v3163 = vadd.f32 %v3082, %v3137
    %v3164 = vadd.f32 %v3083, %v3151
    %v3165 = vadd.f32 %v3084, %v3141
    %v3166 = vadd.f32 %v3085, %v3152
    %v3167 = vadd.f32 %v3086, %v3145
    %v3168 = vadd.f32 %v3087, %v3153
    %v3169 = vadd.f32 %v3088, %v3149
    %s3170 = sld [smem:[#allocation4 + $0x2c]]
    %s3171 = sld [smem:[#allocation4 + $0x5d]]
    %v3172 = vstv %s3170
    %v3173 = vmul.f32 %v3172, %v129
    %v3174 = vmul.f32 %v3172, %v130
    %v3175 = vmul.f32 %v3172, %v131
    %v3176 = vmul.f32 %v3172, %v132
    %v3177 = vmul.f32 %v3172, %v133
    %v3178 = vmul.f32 %v3172, %v134
    %v3179 = vmul.f32 %v3172, %v137
    %v3180 = vmul.f32 %v3172, %v138
    %v3181 = vmul.f32 %v3172, %v139
    %v3182 = vmul.f32 %v3172, %v140
    %v3183 = vmul.f32 %v3172, %v141
    %v3184 = vmul.f32 %v3172, %v142
    %v3197 = vrot.slane %v3173, 6
    %v3198 = vrot.slane %v3174, 6
    %v3199 = vrot.slane %v3175, 6
    %v3200 = vsel %vm2098, %v3197, %v3199
    %v3201 = vrot.slane %v3176, 6
    %v3202 = vsel %vm2098, %v3198, %v3201
    %v3203 = vrot.slane %v3177, 6
    %v3204 = vsel %vm2098, %v3199, %v3203
    %v3205 = vrot.slane %v3178, 6
    %v3206 = vsel %vm2098, %v3201, %v3205
    %v3207 = vrot.slane %v3179, 6
    %v3208 = vrot.slane %v3180, 6
    %v3209 = vrot.slane %v3181, 6
    %v3210 = vsel %vm2098, %v3207, %v3209
    %v3211 = vrot.slane %v3182, 6
    %v3212 = vsel %vm2098, %v3208, %v3211
    %v3213 = vrot.slane %v3183, 6
    %v3214 = vsel %vm2098, %v3209, %v3213
    %v3215 = vrot.slane %v3184, 6
    %v3216 = vsel %vm2098, %v3211, %v3215
    %3217 = vrot.lane.b32.xlu0 %v3197, 126
    %v3218 = vpop.permute.xlu0 %3217
    %3219 = vrot.lane.b32.xlu0 %v3198, 126
    %v3220 = vpop.permute.xlu0 %3219
    %3221 = vrot.lane.b32.xlu0 %v3200, 126
    %v3222 = vpop.permute.xlu0 %3221
    %3223 = vrot.lane.b32.xlu0 %v3202, 126
    %v3224 = vpop.permute.xlu0 %3223
    %3225 = vrot.lane.b32.xlu0 %v3204, 126
    %v3226 = vpop.permute.xlu0 %3225
    %3227 = vrot.lane.b32.xlu0 %v3206, 126
    %v3228 = vpop.permute.xlu0 %3227
    %3229 = vrot.lane.b32.xlu0 %v3207, 126
    %v3230 = vpop.permute.xlu0 %3229
    %3231 = vrot.lane.b32.xlu0 %v3208, 126
    %v3232 = vpop.permute.xlu0 %3231
    %3233 = vrot.lane.b32.xlu0 %v3210, 126
    %v3234 = vpop.permute.xlu0 %3233
    %3235 = vrot.lane.b32.xlu0 %v3212, 126
    %v3236 = vpop.permute.xlu0 %3235
    %3237 = vrot.lane.b32.xlu0 %v3214, 126
    %v3238 = vpop.permute.xlu0 %3237
    %3239 = vrot.lane.b32.xlu0 %v3216, 126
    %v3240 = vpop.permute.xlu0 %3239
    %v3241 = vsel %vm2143, %v3218, %v3220
    %v3242 = vsel %vm2143, %v3222, %v3224
    %v3243 = vsel %vm2143, %v3226, %v3228
    %v3244 = vsel %vm2143, %v3230, %v3232
    %v3245 = vsel %vm2143, %v3234, %v3236
    %v3246 = vsel %vm2143, %v3238, %v3240
    %v3259 = vadd.f32 %v2626, %v3241
    %v3260 = vadd.f32 %v2627, %v3220
    %v3261 = vadd.f32 %v2628, %v3242
    %v3262 = vadd.f32 %v2629, %v3224
    %v3263 = vadd.f32 %v2630, %v3243
    %v3264 = vadd.f32 %v2631, %v3228
    %v3265 = vadd.f32 %v2632, %v3244
    %v3266 = vadd.f32 %v2633, %v3232
    %v3267 = vadd.f32 %v2634, %v3245
    %v3268 = vadd.f32 %v2635, %v3236
    %v3269 = vadd.f32 %v2636, %v3246
    %v3270 = vadd.f32 %v2637, %v3240
    %v3271 = vstv %s3171
    %v3272 = vmul.f32 %v3271, %v145
    %v3273 = vmul.f32 %v3271, %v146
    %v3274 = vmul.f32 %v3271, %v147
    %v3275 = vmul.f32 %v3271, %v148
    %v3276 = vmul.f32 %v3271, %v149
    %v3277 = vmul.f32 %v3271, %v150
    %v3278 = vmul.f32 %v3271, %v153
    %v3279 = vmul.f32 %v3271, %v154
    %v3280 = vmul.f32 %v3271, %v155
    %v3281 = vmul.f32 %v3271, %v156
    %v3282 = vmul.f32 %v3271, %v157
    %v3283 = vmul.f32 %v3271, %v158
    %v3296 = vrot.slane %v3272, 6
    %v3297 = vrot.slane %v3273, 6
    %v3298 = vrot.slane %v3274, 6
    %v3299 = vsel %vm2098, %v3296, %v3298
    %v3300 = vrot.slane %v3275, 6
    %v3301 = vsel %vm2098, %v3297, %v3300
    %v3302 = vrot.slane %v3276, 6
    %v3303 = vsel %vm2098, %v3298, %v3302
    %v3304 = vrot.slane %v3277, 6
    %v3305 = vsel %vm2098, %v3300, %v3304
    %v3306 = vrot.slane %v3278, 6
    %v3307 = vrot.slane %v3279, 6
    %v3308 = vrot.slane %v3280, 6
    %v3309 = vsel %vm2098, %v3306, %v3308
    %v3310 = vrot.slane %v3281, 6
    %v3311 = vsel %vm2098, %v3307, %v3310
    %v3312 = vrot.slane %v3282, 6
    %v3313 = vsel %vm2098, %v3308, %v3312
    %v3314 = vrot.slane %v3283, 6
    %v3315 = vsel %vm2098, %v3310, %v3314
    %3316 = vrot.lane.b32.xlu0 %v3296, 126
    %v3317 = vpop.permute.xlu0 %3316
    %3318 = vrot.lane.b32.xlu0 %v3297, 126
    %v3319 = vpop.permute.xlu0 %3318
    %3320 = vrot.lane.b32.xlu0 %v3299, 126
    %v3321 = vpop.permute.xlu0 %3320
    %3322 = vrot.lane.b32.xlu0 %v3301, 126
    %v3323 = vpop.permute.xlu0 %3322
    %3324 = vrot.lane.b32.xlu0 %v3303, 126
    %v3325 = vpop.permute.xlu0 %3324
    %3326 = vrot.lane.b32.xlu0 %v3305, 126
    %v3327 = vpop.permute.xlu0 %3326
    %3328 = vrot.lane.b32.xlu0 %v3306, 126
    %v3329 = vpop.permute.xlu0 %3328
    %3330 = vrot.lane.b32.xlu0 %v3307, 126
    %v3331 = vpop.permute.xlu0 %3330
    %3332 = vrot.lane.b32.xlu0 %v3309, 126
    %v3333 = vpop.permute.xlu0 %3332
    %3334 = vrot.lane.b32.xlu0 %v3311, 126
    %v3335 = vpop.permute.xlu0 %3334
    %3336 = vrot.lane.b32.xlu0 %v3313, 126
    %v3337 = vpop.permute.xlu0 %3336
    %3338 = vrot.lane.b32.xlu0 %v3315, 126
    %v3339 = vpop.permute.xlu0 %3338
    %v3340 = vsel %vm2143, %v3317, %v3319
    %v3341 = vsel %vm2143, %v3321, %v3323
    %v3342 = vsel %vm2143, %v3325, %v3327
    %v3343 = vsel %vm2143, %v3329, %v3331
    %v3344 = vsel %vm2143, %v3333, %v3335
    %v3345 = vsel %vm2143, %v3337, %v3339
    %v3358 = vadd.f32 %v3259, %v3340
    %v3359 = vadd.f32 %v3260, %v3319
    %v3360 = vadd.f32 %v3261, %v3341
    %v3361 = vadd.f32 %v3262, %v3323
    %v3362 = vadd.f32 %v3263, %v3342
    %v3363 = vadd.f32 %v3264, %v3327
    %v3364 = vadd.f32 %v3265, %v3343
    %v3365 = vadd.f32 %v3266, %v3331
    %v3366 = vadd.f32 %v3267, %v3344
    %v3367 = vadd.f32 %v3268, %v3335
    %v3368 = vadd.f32 %v3269, %v3345
    %v3369 = vadd.f32 %v3270, %v3339
    %s3370 = sld [smem:[#allocation4 + $0x3]]
    %s3371 = sld [smem:[#allocation4 + $0x34]]
    %v3372 = vstv %s3370
    %v3373 = vmul.f32 %v3372, %v128
    %v3374 = vmul.f32 %v3372, %v130
    %v3375 = vmul.f32 %v3372, %v132
    %v3376 = vmul.f32 %v3372, %v136
    %v3377 = vmul.f32 %v3372, %v138
    %v3378 = vmul.f32 %v3372, %v140
    %vm3385 = vcmask 1040384
    %v3386 = vrot.slane %v3373, 7
    %v3387 = vrot.slane %v3374, 7
    %v3388 = vsel %vm3385, %v3386, %v3387
    %v3389 = vrot.slane %v3375, 7
    %v3390 = vsel %vm3385, %v3387, %v3389
    %v3391 = vrot.slane %v3376, 7
    %v3392 = vrot.slane %v3377, 7
    %v3393 = vsel %vm3385, %v3391, %v3392
    %v3394 = vrot.slane %v3378, 7
    %v3395 = vsel %vm3385, %v3392, %v3394
    %3396 = vrot.lane.b32.xlu0 %v3386, 125
    %v3397 = vpop.permute.xlu0 %3396
    %3398 = vrot.lane.b32.xlu0 %v3388, 125
    %v3399 = vpop.permute.xlu0 %3398
    %3400 = vrot.lane.b32.xlu0 %v3390, 125
    %v3401 = vpop.permute.xlu0 %3400
    %3402 = vrot.lane.b32.xlu0 %v3391, 125
    %v3403 = vpop.permute.xlu0 %3402
    %3404 = vrot.lane.b32.xlu0 %v3393, 125
    %v3405 = vpop.permute.xlu0 %3404
    %3406 = vrot.lane.b32.xlu0 %v3395, 125
    %v3407 = vpop.permute.xlu0 %3406
    %v3414 = vadd.f32 %v2794, %v3397
    %v3415 = vadd.f32 %v2795, %v3397
    %v3416 = vadd.f32 %v2796, %v3399
    %v3417 = vadd.f32 %v2797, %v3399
    %v3418 = vadd.f32 %v2798, %v3401
    %v3419 = vadd.f32 %v2799, %v3401
    %v3420 = vadd.f32 %v2800, %v3403
    %v3421 = vadd.f32 %v2801, %v3403
    %v3422 = vadd.f32 %v2802, %v3405
    %v3423 = vadd.f32 %v2803, %v3405
    %v3424 = vadd.f32 %v2804, %v3407
    %v3425 = vadd.f32 %v2805, %v3407
    %v3426 = vstv %s3371
    %v3427 = vmul.f32 %v3426, %v144
    %v3428 = vmul.f32 %v3426, %v146
    %v3429 = vmul.f32 %v3426, %v148
    %v3430 = vmul.f32 %v3426, %v152
    %v3431 = vmul.f32 %v3426, %v154
    %v3432 = vmul.f32 %v3426, %v156
    %v3439 = vrot.slane %v3427, 7
    %v3440 = vrot.slane %v3428, 7
    %v3441 = vsel %vm3385, %v3439, %v3440
    %v3442 = vrot.slane %v3429, 7
    %v3443 = vsel %vm3385, %v3440, %v3442
    %v3444 = vrot.slane %v3430, 7
    %v3445 = vrot.slane %v3431, 7
    %v3446 = vsel %vm3385, %v3444, %v3445
    %v3447 = vrot.slane %v3432, 7
    %v3448 = vsel %vm3385, %v3445, %v3447
    %3449 = vrot.lane.b32.xlu0 %v3439, 125
    %v3450 = vpop.permute.xlu0 %3449
    %3451 = vrot.lane.b32.xlu0 %v3441, 125
    %v3452 = vpop.permute.xlu0 %3451
    %3453 = vrot.lane.b32.xlu0 %v3443, 125
    %v3454 = vpop.permute.xlu0 %3453
    %3455 = vrot.lane.b32.xlu0 %v3444, 125
    %v3456 = vpop.permute.xlu0 %3455
    %3457 = vrot.lane.b32.xlu0 %v3446, 125
    %v3458 = vpop.permute.xlu0 %3457
    %3459 = vrot.lane.b32.xlu0 %v3448, 125
    %v3460 = vpop.permute.xlu0 %3459
    %v3467 = vadd.f32 %v3414, %v3450
    %v3468 = vadd.f32 %v3415, %v3450
    %v3469 = vadd.f32 %v3416, %v3452
    %v3470 = vadd.f32 %v3417, %v3452
    %v3471 = vadd.f32 %v3418, %v3454
    %v3472 = vadd.f32 %v3419, %v3454
    %v3473 = vadd.f32 %v3420, %v3456
    %v3474 = vadd.f32 %v3421, %v3456
    %v3475 = vadd.f32 %v3422, %v3458
    %v3476 = vadd.f32 %v3423, %v3458
    %v3477 = vadd.f32 %v3424, %v3460
    %v3478 = vadd.f32 %v3425, %v3460
    %s3479 = sld [smem:[#allocation4 + $0xa]]
    %s3480 = sld [smem:[#allocation4 + $0x3b]]
    %v3481 = vstv %s3479
    %v3482 = vmul.f32 %v3481, %v128
    %v3483 = vmul.f32 %v3481, %v130
    %v3484 = vmul.f32 %v3481, %v132
    %v3485 = vmul.f32 %v3481, %v136
    %v3486 = vmul.f32 %v3481, %v138
    %v3487 = vmul.f32 %v3481, %v140
    %v3494 = vrot.slane %v3482, 7
    %v3495 = vrot.slane %v3483, 7
    %v3496 = vsel %vm3385, %v3494, %v3495
    %v3497 = vrot.slane %v3484, 7
    %v3498 = vsel %vm3385, %v3495, %v3497
    %v3499 = vrot.slane %v3485, 7
    %v3500 = vrot.slane %v3486, 7
    %v3501 = vsel %vm3385, %v3499, %v3500
    %v3502 = vrot.slane %v3487, 7
    %v3503 = vsel %vm3385, %v3500, %v3502
    %3504 = vrot.lane.b32.xlu0 %v3494, 125
    %v3505 = vpop.permute.xlu0 %3504
    %3506 = vrot.lane.b32.xlu0 %v3496, 125
    %v3507 = vpop.permute.xlu0 %3506
    %3508 = vrot.lane.b32.xlu0 %v3498, 125
    %v3509 = vpop.permute.xlu0 %3508
    %3510 = vrot.lane.b32.xlu0 %v3499, 125
    %v3511 = vpop.permute.xlu0 %3510
    %3512 = vrot.lane.b32.xlu0 %v3501, 125
    %v3513 = vpop.permute.xlu0 %3512
    %3514 = vrot.lane.b32.xlu0 %v3503, 125
    %v3515 = vpop.permute.xlu0 %3514
    %v3522 = vadd.f32 %v2994, %v3505
    %v3523 = vadd.f32 %v2995, %v3505
    %v3524 = vadd.f32 %v2996, %v3507
    %v3525 = vadd.f32 %v2997, %v3507
    %v3526 = vadd.f32 %v2998, %v3509
    %v3527 = vadd.f32 %v2999, %v3509
    %v3528 = vadd.f32 %v3000, %v3511
    %v3529 = vadd.f32 %v3001, %v3511
    %v3530 = vadd.f32 %v3002, %v3513
    %v3531 = vadd.f32 %v3003, %v3513
    %v3532 = vadd.f32 %v3004, %v3515
    %v3533 = vadd.f32 %v3005, %v3515
    %v3534 = vstv %s3480
    %v3535 = vmul.f32 %v3534, %v144
    %v3536 = vmul.f32 %v3534, %v146
    %v3537 = vmul.f32 %v3534, %v148
    %v3538 = vmul.f32 %v3534, %v152
    %v3539 = vmul.f32 %v3534, %v154
    %v3540 = vmul.f32 %v3534, %v156
    %v3547 = vrot.slane %v3535, 7
    %v3548 = vrot.slane %v3536, 7
    %v3549 = vsel %vm3385, %v3547, %v3548
    %v3550 = vrot.slane %v3537, 7
    %v3551 = vsel %vm3385, %v3548, %v3550
    %v3552 = vrot.slane %v3538, 7
    %v3553 = vrot.slane %v3539, 7
    %v3554 = vsel %vm3385, %v3552, %v3553
    %v3555 = vrot.slane %v3540, 7
    %v3556 = vsel %vm3385, %v3553, %v3555
    %3557 = vrot.lane.b32.xlu0 %v3547, 125
    %v3558 = vpop.permute.xlu0 %3557
    %3559 = vrot.lane.b32.xlu0 %v3549, 125
    %v3560 = vpop.permute.xlu0 %3559
    %3561 = vrot.lane.b32.xlu0 %v3551, 125
    %v3562 = vpop.permute.xlu0 %3561
    %3563 = vrot.lane.b32.xlu0 %v3552, 125
    %v3564 = vpop.permute.xlu0 %3563
    %3565 = vrot.lane.b32.xlu0 %v3554, 125
    %v3566 = vpop.permute.xlu0 %3565
    %3567 = vrot.lane.b32.xlu0 %v3556, 125
    %v3568 = vpop.permute.xlu0 %3567
    %v3575 = vadd.f32 %v3522, %v3558
    %v3576 = vadd.f32 %v3523, %v3558
    %v3577 = vadd.f32 %v3524, %v3560
    %v3578 = vadd.f32 %v3525, %v3560
    %v3579 = vadd.f32 %v3526, %v3562
    %v3580 = vadd.f32 %v3527, %v3562
    %v3581 = vadd.f32 %v3528, %v3564
    %v3582 = vadd.f32 %v3529, %v3564
    %v3583 = vadd.f32 %v3530, %v3566
    %v3584 = vadd.f32 %v3531, %v3566
    %v3585 = vadd.f32 %v3532, %v3568
    %v3586 = vadd.f32 %v3533, %v3568
    %s3587 = sld [smem:[#allocation4 + $0x11]]
    %s3588 = sld [smem:[#allocation4 + $0x42]]
    %v3589 = vstv %s3587
    %v3590 = vmul.f32 %v3589, %v128
    %v3591 = vmul.f32 %v3589, %v130
    %v3592 = vmul.f32 %v3589, %v132
    %v3593 = vmul.f32 %v3589, %v136
    %v3594 = vmul.f32 %v3589, %v138
    %v3595 = vmul.f32 %v3589, %v140
    %v3602 = vrot.slane %v3590, 7
    %v3603 = vrot.slane %v3591, 7
    %v3604 = vsel %vm3385, %v3602, %v3603
    %v3605 = vrot.slane %v3592, 7
    %v3606 = vsel %vm3385, %v3603, %v3605
    %v3607 = vrot.slane %v3593, 7
    %v3608 = vrot.slane %v3594, 7
    %v3609 = vsel %vm3385, %v3607, %v3608
    %v3610 = vrot.slane %v3595, 7
    %v3611 = vsel %vm3385, %v3608, %v3610
    %3612 = vrot.lane.b32.xlu0 %v3604, 125
    %v3613 = vpop.permute.xlu0 %3612
    %3614 = vrot.lane.b32.xlu0 %v3606, 125
    %v3615 = vpop.permute.xlu0 %3614
    %3616 = vrot.lane.b32.xlu0 %v3609, 125
    %v3617 = vpop.permute.xlu0 %3616
    %3618 = vrot.lane.b32.xlu0 %v3611, 125
    %v3619 = vpop.permute.xlu0 %3618
    %v3624 = vadd.f32 %v3162, %v3613
    %v3625 = vadd.f32 %v3163, %v3613
    %v3626 = vadd.f32 %v3164, %v3615
    %v3627 = vadd.f32 %v3165, %v3615
    %v3628 = vadd.f32 %v3166, %v3617
    %v3629 = vadd.f32 %v3167, %v3617
    %v3630 = vadd.f32 %v3168, %v3619
    %v3631 = vadd.f32 %v3169, %v3619
    %v3632 = vstv %s3588
    %v3633 = vmul.f32 %v3632, %v144
    %v3634 = vmul.f32 %v3632, %v146
    %v3635 = vmul.f32 %v3632, %v148
    %v3636 = vmul.f32 %v3632, %v152
    %v3637 = vmul.f32 %v3632, %v154
    %v3638 = vmul.f32 %v3632, %v156
    %v3645 = vrot.slane %v3633, 7
    %v3646 = vrot.slane %v3634, 7
    %v3647 = vsel %vm3385, %v3645, %v3646
    %v3648 = vrot.slane %v3635, 7
    %v3649 = vsel %vm3385, %v3646, %v3648
    %v3650 = vrot.slane %v3636, 7
    %v3651 = vrot.slane %v3637, 7
    %v3652 = vsel %vm3385, %v3650, %v3651
    %v3653 = vrot.slane %v3638, 7
    %v3654 = vsel %vm3385, %v3651, %v3653
    %3655 = vrot.lane.b32.xlu0 %v3647, 125
    %v3656 = vpop.permute.xlu0 %3655
    %3657 = vrot.lane.b32.xlu0 %v3649, 125
    %v3658 = vpop.permute.xlu0 %3657
    %3659 = vrot.lane.b32.xlu0 %v3652, 125
    %v3660 = vpop.permute.xlu0 %3659
    %3661 = vrot.lane.b32.xlu0 %v3654, 125
    %v3662 = vpop.permute.xlu0 %3661
    %v3667 = vadd.f32 %v3624, %v3656
    %v3668 = vadd.f32 %v3625, %v3656
    %v3669 = vadd.f32 %v3626, %v3658
    %v3670 = vadd.f32 %v3627, %v3658
    %v3671 = vadd.f32 %v3628, %v3660
    %v3672 = vadd.f32 %v3629, %v3660
    %v3673 = vadd.f32 %v3630, %v3662
    %v3674 = vadd.f32 %v3631, %v3662
    %s3675 = sld [smem:[#allocation4 + $0x18]]
    %s3676 = sld [smem:[#allocation4 + $0x49]]
    %v3677 = vstv %s3675
    %v3678 = vmul.f32 %v3677, %v130
    %v3679 = vmul.f32 %v3677, %v132
    %v3680 = vmul.f32 %v3677, %v138
    %v3681 = vmul.f32 %v3677, %v140
    %vm3686 = vcmask 1044480
    %v3687 = vrot.slane %v3678, 3
    %v3688 = vrot.slane %v3679, 3
    %v3689 = vsel %vm3686, %v3687, %v3688
    %v3690 = vrot.slane %v3680, 3
    %v3691 = vrot.slane %v3681, 3
    %v3692 = vsel %vm3686, %v3690, %v3691
    %3693 = vrot.lane.b32.xlu0 %v3687, 125
    %v3694 = vpop.permute.xlu0 %3693
    %3695 = vrot.lane.b32.xlu0 %v3689, 125
    %v3696 = vpop.permute.xlu0 %3695
    %3697 = vrot.lane.b32.xlu0 %v3688, 125
    %v3698 = vpop.permute.xlu0 %3697
    %3699 = vrot.lane.b32.xlu0 %v3690, 125
    %v3700 = vpop.permute.xlu0 %3699
    %3701 = vrot.lane.b32.xlu0 %v3692, 125
    %v3702 = vpop.permute.xlu0 %3701
    %3703 = vrot.lane.b32.xlu0 %v3691, 125
    %v3704 = vpop.permute.xlu0 %3703
    %v3711 = vadd.f32 %v3358, %v3694
    %v3712 = vadd.f32 %v3359, %v3694
    %v3713 = vadd.f32 %v3360, %v3696
    %v3714 = vadd.f32 %v3361, %v3696
    %v3715 = vadd.f32 %v3362, %v3698
    %v3716 = vadd.f32 %v3363, %v3698
    %v3717 = vadd.f32 %v3364, %v3700
    %v3718 = vadd.f32 %v3365, %v3700
    %v3719 = vadd.f32 %v3366, %v3702
    %v3720 = vadd.f32 %v3367, %v3702
    %v3721 = vadd.f32 %v3368, %v3704
    %v3722 = vadd.f32 %v3369, %v3704
    %v3723 = vstv %s3676
    %v3724 = vmul.f32 %v3723, %v146
    %v3725 = vmul.f32 %v3723, %v148
    %v3726 = vmul.f32 %v3723, %v154
    %v3727 = vmul.f32 %v3723, %v156
    %v3732 = vrot.slane %v3724, 3
    %v3733 = vrot.slane %v3725, 3
    %v3734 = vsel %vm3686, %v3732, %v3733
    %v3735 = vrot.slane %v3726, 3
    %v3736 = vrot.slane %v3727, 3
    %v3737 = vsel %vm3686, %v3735, %v3736
    %3738 = vrot.lane.b32.xlu0 %v3732, 125
    %v3739 = vpop.permute.xlu0 %3738
    %3740 = vrot.lane.b32.xlu0 %v3734, 125
    %v3741 = vpop.permute.xlu0 %3740
    %3742 = vrot.lane.b32.xlu0 %v3733, 125
    %v3743 = vpop.permute.xlu0 %3742
    %3744 = vrot.lane.b32.xlu0 %v3735, 125
    %v3745 = vpop.permute.xlu0 %3744
    %3746 = vrot.lane.b32.xlu0 %v3737, 125
    %v3747 = vpop.permute.xlu0 %3746
    %3748 = vrot.lane.b32.xlu0 %v3736, 125
    %v3749 = vpop.permute.xlu0 %3748
    %v3756 = vadd.f32 %v3711, %v3739
    %v3757 = vadd.f32 %v3712, %v3739
    %v3758 = vadd.f32 %v3713, %v3741
    %v3759 = vadd.f32 %v3714, %v3741
    %v3760 = vadd.f32 %v3715, %v3743
    %v3761 = vadd.f32 %v3716, %v3743
    %v3762 = vadd.f32 %v3717, %v3745
    %v3763 = vadd.f32 %v3718, %v3745
    %v3764 = vadd.f32 %v3719, %v3747
    %v3765 = vadd.f32 %v3720, %v3747
    %v3766 = vadd.f32 %v3721, %v3749
    %v3767 = vadd.f32 %v3722, %v3749
    %s3768 = sld [smem:[#allocation4 + $0x1f]]
    %s3769 = sld [smem:[#allocation4 + $0x50]]
    %v3770 = vstv %s3768
    %v3771 = vmul.f32 %v3770, %v130
    %v3772 = vmul.f32 %v3770, %v132
    %v3773 = vmul.f32 %v3770, %v134
    %v3774 = vmul.f32 %v3770, %v138
    %v3775 = vmul.f32 %v3770, %v140
    %v3776 = vmul.f32 %v3770, %v142
    %v3783 = vrot.slane %v3771, 3
    %v3784 = vrot.slane %v3772, 3
    %v3785 = vsel %vm3686, %v3783, %v3784
    %v3786 = vrot.slane %v3773, 3
    %v3787 = vsel %vm3686, %v3784, %v3786
    %v3788 = vrot.slane %v3774, 3
    %v3789 = vrot.slane %v3775, 3
    %v3790 = vsel %vm3686, %v3788, %v3789
    %v3791 = vrot.slane %v3776, 3
    %v3792 = vsel %vm3686, %v3789, %v3791
    %3793 = vrot.lane.b32.xlu0 %v3783, 125
    %v3794 = vpop.permute.xlu0 %3793
    %3795 = vrot.lane.b32.xlu0 %v3785, 125
    %v3796 = vpop.permute.xlu0 %3795
    %3797 = vrot.lane.b32.xlu0 %v3787, 125
    %v3798 = vpop.permute.xlu0 %3797
    %3799 = vrot.lane.b32.xlu0 %v3788, 125
    %v3800 = vpop.permute.xlu0 %3799
    %3801 = vrot.lane.b32.xlu0 %v3790, 125
    %v3802 = vpop.permute.xlu0 %3801
    %3803 = vrot.lane.b32.xlu0 %v3792, 125
    %v3804 = vpop.permute.xlu0 %3803
    %v3811 = vadd.f32 %v3467, %v3794
    %v3812 = vadd.f32 %v3468, %v3794
    %v3813 = vadd.f32 %v3469, %v3796
    %v3814 = vadd.f32 %v3470, %v3796
    %v3815 = vadd.f32 %v3471, %v3798
    %v3816 = vadd.f32 %v3472, %v3798
    %v3817 = vadd.f32 %v3473, %v3800
    %v3818 = vadd.f32 %v3474, %v3800
    %v3819 = vadd.f32 %v3475, %v3802
    %v3820 = vadd.f32 %v3476, %v3802
    %v3821 = vadd.f32 %v3477, %v3804
    %v3822 = vadd.f32 %v3478, %v3804
    %v3823 = vstv %s3769
    %v3824 = vmul.f32 %v3823, %v146
    %v3825 = vmul.f32 %v3823, %v148
    %v3826 = vmul.f32 %v3823, %v150
    %v3827 = vmul.f32 %v3823, %v154
    %v3828 = vmul.f32 %v3823, %v156
    %v3829 = vmul.f32 %v3823, %v158
    %v3836 = vrot.slane %v3824, 3
    %v3837 = vrot.slane %v3825, 3
    %v3838 = vsel %vm3686, %v3836, %v3837
    %v3839 = vrot.slane %v3826, 3
    %v3840 = vsel %vm3686, %v3837, %v3839
    %v3841 = vrot.slane %v3827, 3
    %v3842 = vrot.slane %v3828, 3
    %v3843 = vsel %vm3686, %v3841, %v3842
    %v3844 = vrot.slane %v3829, 3
    %v3845 = vsel %vm3686, %v3842, %v3844
    %3846 = vrot.lane.b32.xlu0 %v3836, 125
    %v3847 = vpop.permute.xlu0 %3846
    %3848 = vrot.lane.b32.xlu0 %v3838, 125
    %v3849 = vpop.permute.xlu0 %3848
    %3850 = vrot.lane.b32.xlu0 %v3840, 125
    %v3851 = vpop.permute.xlu0 %3850
    %3852 = vrot.lane.b32.xlu0 %v3841, 125
    %v3853 = vpop.permute.xlu0 %3852
    %3854 = vrot.lane.b32.xlu0 %v3843, 125
    %v3855 = vpop.permute.xlu0 %3854
    %3856 = vrot.lane.b32.xlu0 %v3845, 125
    %v3857 = vpop.permute.xlu0 %3856
    %v3864 = vadd.f32 %v3811, %v3847
    %v3865 = vadd.f32 %v3812, %v3847
    %v3866 = vadd.f32 %v3813, %v3849
    %v3867 = vadd.f32 %v3814, %v3849
    %v3868 = vadd.f32 %v3815, %v3851
    %v3869 = vadd.f32 %v3816, %v3851
    %v3870 = vadd.f32 %v3817, %v3853
    %v3871 = vadd.f32 %v3818, %v3853
    %v3872 = vadd.f32 %v3819, %v3855
    %v3873 = vadd.f32 %v3820, %v3855
    %v3874 = vadd.f32 %v3821, %v3857
    %v3875 = vadd.f32 %v3822, %v3857
    %s3876 = sld [smem:[#allocation4 + $0x26]]
    %s3877 = sld [smem:[#allocation4 + $0x57]]
    %v3878 = vstv %s3876
    %v3879 = vmul.f32 %v3878, %v130
    %v3880 = vmul.f32 %v3878, %v132
    %v3881 = vmul.f32 %v3878, %v134
    %v3882 = vmul.f32 %v3878, %v138
    %v3883 = vmul.f32 %v3878, %v140
    %v3884 = vmul.f32 %v3878, %v142
    %v3891 = vrot.slane %v3879, 3
    %v3892 = vrot.slane %v3880, 3
    %v3893 = vsel %vm3686, %v3891, %v3892
    %v3894 = vrot.slane %v3881, 3
    %v3895 = vsel %vm3686, %v3892, %v3894
    %v3896 = vrot.slane %v3882, 3
    %v3897 = vrot.slane %v3883, 3
    %v3898 = vsel %vm3686, %v3896, %v3897
    %v3899 = vrot.slane %v3884, 3
    %v3900 = vsel %vm3686, %v3897, %v3899
    %3901 = vrot.lane.b32.xlu0 %v3891, 125
    %v3902 = vpop.permute.xlu0 %3901
    %3903 = vrot.lane.b32.xlu0 %v3893, 125
    %v3904 = vpop.permute.xlu0 %3903
    %3905 = vrot.lane.b32.xlu0 %v3895, 125
    %v3906 = vpop.permute.xlu0 %3905
    %3907 = vrot.lane.b32.xlu0 %v3896, 125
    %v3908 = vpop.permute.xlu0 %3907
    %3909 = vrot.lane.b32.xlu0 %v3898, 125
    %v3910 = vpop.permute.xlu0 %3909
    %3911 = vrot.lane.b32.xlu0 %v3900, 125
    %v3912 = vpop.permute.xlu0 %3911
    %v3919 = vadd.f32 %v3575, %v3902
    %v3920 = vadd.f32 %v3576, %v3902
    %v3921 = vadd.f32 %v3577, %v3904
    %v3922 = vadd.f32 %v3578, %v3904
    %v3923 = vadd.f32 %v3579, %v3906
    %v3924 = vadd.f32 %v3580, %v3906
    %v3925 = vadd.f32 %v3581, %v3908
    %v3926 = vadd.f32 %v3582, %v3908
    %v3927 = vadd.f32 %v3583, %v3910
    %v3928 = vadd.f32 %v3584, %v3910
    %v3929 = vadd.f32 %v3585, %v3912
    %v3930 = vadd.f32 %v3586, %v3912
    %v3931 = vstv %s3877
    %v3932 = vmul.f32 %v3931, %v146
    %v3933 = vmul.f32 %v3931, %v148
    %v3934 = vmul.f32 %v3931, %v150
    %v3935 = vmul.f32 %v3931, %v154
    %v3936 = vmul.f32 %v3931, %v156
    %v3937 = vmul.f32 %v3931, %v158
    %v3944 = vrot.slane %v3932, 3
    %v3945 = vrot.slane %v3933, 3
    %v3946 = vsel %vm3686, %v3944, %v3945
    %v3947 = vrot.slane %v3934, 3
    %v3948 = vsel %vm3686, %v3945, %v3947
    %v3949 = vrot.slane %v3935, 3
    %v3950 = vrot.slane %v3936, 3
    %v3951 = vsel %vm3686, %v3949, %v3950
    %v3952 = vrot.slane %v3937, 3
    %v3953 = vsel %vm3686, %v3950, %v3952
    %3954 = vrot.lane.b32.xlu0 %v3944, 125
    %v3955 = vpop.permute.xlu0 %3954
    %3956 = vrot.lane.b32.xlu0 %v3946, 125
    %v3957 = vpop.permute.xlu0 %3956
    %3958 = vrot.lane.b32.xlu0 %v3948, 125
    %v3959 = vpop.permute.xlu0 %3958
    %3960 = vrot.lane.b32.xlu0 %v3949, 125
    %v3961 = vpop.permute.xlu0 %3960
    %3962 = vrot.lane.b32.xlu0 %v3951, 125
    %v3963 = vpop.permute.xlu0 %3962
    %3964 = vrot.lane.b32.xlu0 %v3953, 125
    %v3965 = vpop.permute.xlu0 %3964
    %v3972 = vadd.f32 %v3919, %v3955
    %v3973 = vadd.f32 %v3920, %v3955
    %v3974 = vadd.f32 %v3921, %v3957
    %v3975 = vadd.f32 %v3922, %v3957
    %v3976 = vadd.f32 %v3923, %v3959
    %v3977 = vadd.f32 %v3924, %v3959
    %v3978 = vadd.f32 %v3925, %v3961
    %v3979 = vadd.f32 %v3926, %v3961
    %v3980 = vadd.f32 %v3927, %v3963
    %v3981 = vadd.f32 %v3928, %v3963
    %v3982 = vadd.f32 %v3929, %v3965
    %v3983 = vadd.f32 %v3930, %v3965
    %s3984 = sld [smem:[#allocation4 + $0x2d]]
    %s3985 = sld [smem:[#allocation4 + $0x5e]]
    %v3986 = vstv %s3984
    %v3987 = vmul.f32 %v3986, %v130
    %v3988 = vmul.f32 %v3986, %v132
    %v3989 = vmul.f32 %v3986, %v134
    %v3990 = vmul.f32 %v3986, %v138
    %v3991 = vmul.f32 %v3986, %v140
    %v3992 = vmul.f32 %v3986, %v142
    %v3999 = vrot.slane %v3987, 3
    %v4000 = vrot.slane %v3988, 3
    %v4001 = vsel %vm3686, %v3999, %v4000
    %v4002 = vrot.slane %v3989, 3
    %v4003 = vsel %vm3686, %v4000, %v4002
    %v4004 = vrot.slane %v3990, 3
    %v4005 = vrot.slane %v3991, 3
    %v4006 = vsel %vm3686, %v4004, %v4005
    %v4007 = vrot.slane %v3992, 3
    %v4008 = vsel %vm3686, %v4005, %v4007
    %4009 = vrot.lane.b32.xlu0 %v4001, 125
    %v4010 = vpop.permute.xlu0 %4009
    %4011 = vrot.lane.b32.xlu0 %v4003, 125
    %v4012 = vpop.permute.xlu0 %4011
    %4013 = vrot.lane.b32.xlu0 %v4006, 125
    %v4014 = vpop.permute.xlu0 %4013
    %4015 = vrot.lane.b32.xlu0 %v4008, 125
    %v4016 = vpop.permute.xlu0 %4015
    %v4021 = vadd.f32 %v3667, %v4010
    %v4022 = vadd.f32 %v3668, %v4010
    %v4023 = vadd.f32 %v3669, %v4012
    %v4024 = vadd.f32 %v3670, %v4012
    %v4025 = vadd.f32 %v3671, %v4014
    %v4026 = vadd.f32 %v3672, %v4014
    %v4027 = vadd.f32 %v3673, %v4016
    %v4028 = vadd.f32 %v3674, %v4016
    %v4029 = vstv %s3985
    %v4030 = vmul.f32 %v4029, %v146
    %v4031 = vmul.f32 %v4029, %v148
    %v4032 = vmul.f32 %v4029, %v150
    %v4033 = vmul.f32 %v4029, %v154
    %v4034 = vmul.f32 %v4029, %v156
    %v4035 = vmul.f32 %v4029, %v158
    %v4042 = vrot.slane %v4030, 3
    %v4043 = vrot.slane %v4031, 3
    %v4044 = vsel %vm3686, %v4042, %v4043
    %v4045 = vrot.slane %v4032, 3
    %v4046 = vsel %vm3686, %v4043, %v4045
    %v4047 = vrot.slane %v4033, 3
    %v4048 = vrot.slane %v4034, 3
    %v4049 = vsel %vm3686, %v4047, %v4048
    %v4050 = vrot.slane %v4035, 3
    %v4051 = vsel %vm3686, %v4048, %v4050
    %4052 = vrot.lane.b32.xlu0 %v4044, 125
    %v4053 = vpop.permute.xlu0 %4052
    %4054 = vrot.lane.b32.xlu0 %v4046, 125
    %v4055 = vpop.permute.xlu0 %4054
    %4056 = vrot.lane.b32.xlu0 %v4049, 125
    %v4057 = vpop.permute.xlu0 %4056
    %4058 = vrot.lane.b32.xlu0 %v4051, 125
    %v4059 = vpop.permute.xlu0 %4058
    %v4064 = vadd.f32 %v4021, %v4053
    %v4065 = vadd.f32 %v4022, %v4053
    %v4066 = vadd.f32 %v4023, %v4055
    %v4067 = vadd.f32 %v4024, %v4055
    %v4068 = vadd.f32 %v4025, %v4057
    %v4069 = vadd.f32 %v4026, %v4057
    %v4070 = vadd.f32 %v4027, %v4059
    %v4071 = vadd.f32 %v4028, %v4059
    %s4072 = sld [smem:[#allocation4 + $0x4]]
    %s4073 = sld [smem:[#allocation4 + $0x35]]
    %v4074 = vstv %s4072
    %v4075 = vmul.f32 %v4074, %v128
    %v4076 = vmul.f32 %v4074, %v130
    %v4077 = vmul.f32 %v4074, %v132
    %v4078 = vmul.f32 %v4074, %v136
    %v4079 = vmul.f32 %v4074, %v138
    %v4080 = vmul.f32 %v4074, %v140
    %4087 = vrot.lane.b32.xlu0 %v4075, 124
    %v4088 = vpop.permute.xlu0 %4087
    %4089 = vrot.lane.b32.xlu0 %v4076, 124
    %v4090 = vpop.permute.xlu0 %4089
    %4091 = vrot.lane.b32.xlu0 %v4077, 124
    %v4092 = vpop.permute.xlu0 %4091
    %4093 = vrot.lane.b32.xlu0 %v4078, 124
    %v4094 = vpop.permute.xlu0 %4093
    %4095 = vrot.lane.b32.xlu0 %v4079, 124
    %v4096 = vpop.permute.xlu0 %4095
    %4097 = vrot.lane.b32.xlu0 %v4080, 124
    %v4098 = vpop.permute.xlu0 %4097
    %v4105 = vadd.f32 %v3756, %v4088
    %v4106 = vadd.f32 %v3757, %v4088
    %v4107 = vadd.f32 %v3758, %v4090
    %v4108 = vadd.f32 %v3759, %v4090
    %v4109 = vadd.f32 %v3760, %v4092
    %v4110 = vadd.f32 %v3761, %v4092
    %v4111 = vadd.f32 %v3762, %v4094
    %v4112 = vadd.f32 %v3763, %v4094
    %v4113 = vadd.f32 %v3764, %v4096
    %v4114 = vadd.f32 %v3765, %v4096
    %v4115 = vadd.f32 %v3766, %v4098
    %v4116 = vadd.f32 %v3767, %v4098
    %v4117 = vstv %s4073
    %v4118 = vmul.f32 %v4117, %v144
    %v4119 = vmul.f32 %v4117, %v146
    %v4120 = vmul.f32 %v4117, %v148
    %v4121 = vmul.f32 %v4117, %v152
    %v4122 = vmul.f32 %v4117, %v154
    %v4123 = vmul.f32 %v4117, %v156
    %4130 = vrot.lane.b32.xlu0 %v4118, 124
    %v4131 = vpop.permute.xlu0 %4130
    %4132 = vrot.lane.b32.xlu0 %v4119, 124
    %v4133 = vpop.permute.xlu0 %4132
    %4134 = vrot.lane.b32.xlu0 %v4120, 124
    %v4135 = vpop.permute.xlu0 %4134
    %4136 = vrot.lane.b32.xlu0 %v4121, 124
    %v4137 = vpop.permute.xlu0 %4136
    %4138 = vrot.lane.b32.xlu0 %v4122, 124
    %v4139 = vpop.permute.xlu0 %4138
    %4140 = vrot.lane.b32.xlu0 %v4123, 124
    %v4141 = vpop.permute.xlu0 %4140
    %v4148 = vadd.f32 %v4105, %v4131
    %v4149 = vadd.f32 %v4106, %v4131
    %v4150 = vadd.f32 %v4107, %v4133
    %v4151 = vadd.f32 %v4108, %v4133
    %v4152 = vadd.f32 %v4109, %v4135
    %v4153 = vadd.f32 %v4110, %v4135
    %v4154 = vadd.f32 %v4111, %v4137
    %v4155 = vadd.f32 %v4112, %v4137
    %v4156 = vadd.f32 %v4113, %v4139
    %v4157 = vadd.f32 %v4114, %v4139
    %v4158 = vadd.f32 %v4115, %v4141
    %v4159 = vadd.f32 %v4116, %v4141
    %s4160 = sld [smem:[#allocation4 + $0xb]]
    %s4161 = sld [smem:[#allocation4 + $0x3c]]
    %v4162 = vstv %s4160
    %v4163 = vmul.f32 %v4162, %v128
    %v4164 = vmul.f32 %v4162, %v130
    %v4165 = vmul.f32 %v4162, %v132
    %v4166 = vmul.f32 %v4162, %v136
    %v4167 = vmul.f32 %v4162, %v138
    %v4168 = vmul.f32 %v4162, %v140
    %4175 = vrot.lane.b32.xlu0 %v4163, 124
    %v4176 = vpop.permute.xlu0 %4175
    %4177 = vrot.lane.b32.xlu0 %v4164, 124
    %v4178 = vpop.permute.xlu0 %4177
    %4179 = vrot.lane.b32.xlu0 %v4165, 124
    %v4180 = vpop.permute.xlu0 %4179
    %4181 = vrot.lane.b32.xlu0 %v4166, 124
    %v4182 = vpop.permute.xlu0 %4181
    %4183 = vrot.lane.b32.xlu0 %v4167, 124
    %v4184 = vpop.permute.xlu0 %4183
    %4185 = vrot.lane.b32.xlu0 %v4168, 124
    %v4186 = vpop.permute.xlu0 %4185
    %v4193 = vadd.f32 %v3864, %v4176
    %v4194 = vadd.f32 %v3865, %v4176
    %v4195 = vadd.f32 %v3866, %v4178
    %v4196 = vadd.f32 %v3867, %v4178
    %v4197 = vadd.f32 %v3868, %v4180
    %v4198 = vadd.f32 %v3869, %v4180
    %v4199 = vadd.f32 %v3870, %v4182
    %v4200 = vadd.f32 %v3871, %v4182
    %v4201 = vadd.f32 %v3872, %v4184
    %v4202 = vadd.f32 %v3873, %v4184
    %v4203 = vadd.f32 %v3874, %v4186
    %v4204 = vadd.f32 %v3875, %v4186
    %v4205 = vstv %s4161
    %v4206 = vmul.f32 %v4205, %v144
    %v4207 = vmul.f32 %v4205, %v146
    %v4208 = vmul.f32 %v4205, %v148
    %v4209 = vmul.f32 %v4205, %v152
    %v4210 = vmul.f32 %v4205, %v154
    %v4211 = vmul.f32 %v4205, %v156
    %4218 = vrot.lane.b32.xlu0 %v4206, 124
    %v4219 = vpop.permute.xlu0 %4218
    %4220 = vrot.lane.b32.xlu0 %v4207, 124
    %v4221 = vpop.permute.xlu0 %4220
    %4222 = vrot.lane.b32.xlu0 %v4208, 124
    %v4223 = vpop.permute.xlu0 %4222
    %4224 = vrot.lane.b32.xlu0 %v4209, 124
    %v4225 = vpop.permute.xlu0 %4224
    %4226 = vrot.lane.b32.xlu0 %v4210, 124
    %v4227 = vpop.permute.xlu0 %4226
    %4228 = vrot.lane.b32.xlu0 %v4211, 124
    %v4229 = vpop.permute.xlu0 %4228
    %v4236 = vadd.f32 %v4193, %v4219
    %v4237 = vadd.f32 %v4194, %v4219
    %v4238 = vadd.f32 %v4195, %v4221
    %v4239 = vadd.f32 %v4196, %v4221
    %v4240 = vadd.f32 %v4197, %v4223
    %v4241 = vadd.f32 %v4198, %v4223
    %v4242 = vadd.f32 %v4199, %v4225
    %v4243 = vadd.f32 %v4200, %v4225
    %v4244 = vadd.f32 %v4201, %v4227
    %v4245 = vadd.f32 %v4202, %v4227
    %v4246 = vadd.f32 %v4203, %v4229
    %v4247 = vadd.f32 %v4204, %v4229
    %s4248 = sld [smem:[#allocation4 + $0x12]]
    %s4249 = sld [smem:[#allocation4 + $0x43]]
    %v4250 = vstv %s4248
    %v4251 = vmul.f32 %v4250, %v128
    %v4252 = vmul.f32 %v4250, %v130
    %v4253 = vmul.f32 %v4250, %v132
    %v4254 = vmul.f32 %v4250, %v136
    %v4255 = vmul.f32 %v4250, %v138
    %v4256 = vmul.f32 %v4250, %v140
    %4263 = vrot.lane.b32.xlu0 %v4251, 124
    %v4264 = vpop.permute.xlu0 %4263
    %4265 = vrot.lane.b32.xlu0 %v4252, 124
    %v4266 = vpop.permute.xlu0 %4265
    %4267 = vrot.lane.b32.xlu0 %v4253, 124
    %v4268 = vpop.permute.xlu0 %4267
    %4269 = vrot.lane.b32.xlu0 %v4254, 124
    %v4270 = vpop.permute.xlu0 %4269
    %4271 = vrot.lane.b32.xlu0 %v4255, 124
    %v4272 = vpop.permute.xlu0 %4271
    %4273 = vrot.lane.b32.xlu0 %v4256, 124
    %v4274 = vpop.permute.xlu0 %4273
    %v4281 = vadd.f32 %v3972, %v4264
    %v4282 = vadd.f32 %v3973, %v4264
    %v4283 = vadd.f32 %v3974, %v4266
    %v4284 = vadd.f32 %v3975, %v4266
    %v4285 = vadd.f32 %v3976, %v4268
    %v4286 = vadd.f32 %v3977, %v4268
    %v4287 = vadd.f32 %v3978, %v4270
    %v4288 = vadd.f32 %v3979, %v4270
    %v4289 = vadd.f32 %v3980, %v4272
    %v4290 = vadd.f32 %v3981, %v4272
    %v4291 = vadd.f32 %v3982, %v4274
    %v4292 = vadd.f32 %v3983, %v4274
    %v4293 = vstv %s4249
    %v4294 = vmul.f32 %v4293, %v144
    %v4295 = vmul.f32 %v4293, %v146
    %v4296 = vmul.f32 %v4293, %v148
    %v4297 = vmul.f32 %v4293, %v152
    %v4298 = vmul.f32 %v4293, %v154
    %v4299 = vmul.f32 %v4293, %v156
    %4306 = vrot.lane.b32.xlu0 %v4294, 124
    %v4307 = vpop.permute.xlu0 %4306
    %4308 = vrot.lane.b32.xlu0 %v4295, 124
    %v4309 = vpop.permute.xlu0 %4308
    %4310 = vrot.lane.b32.xlu0 %v4296, 124
    %v4311 = vpop.permute.xlu0 %4310
    %4312 = vrot.lane.b32.xlu0 %v4297, 124
    %v4313 = vpop.permute.xlu0 %4312
    %4314 = vrot.lane.b32.xlu0 %v4298, 124
    %v4315 = vpop.permute.xlu0 %4314
    %4316 = vrot.lane.b32.xlu0 %v4299, 124
    %v4317 = vpop.permute.xlu0 %4316
    %v4324 = vadd.f32 %v4281, %v4307
    %v4325 = vadd.f32 %v4282, %v4307
    %v4326 = vadd.f32 %v4283, %v4309
    %v4327 = vadd.f32 %v4284, %v4309
    %v4328 = vadd.f32 %v4285, %v4311
    %v4329 = vadd.f32 %v4286, %v4311
    %v4330 = vadd.f32 %v4287, %v4313
    %v4331 = vadd.f32 %v4288, %v4313
    %v4332 = vadd.f32 %v4289, %v4315
    %v4333 = vadd.f32 %v4290, %v4315
    %v4334 = vadd.f32 %v4291, %v4317
    %v4335 = vadd.f32 %v4292, %v4317
    %s4336 = sld [smem:[#allocation4 + $0x19]]
    %s4337 = sld [smem:[#allocation4 + $0x4a]]
    %v4338 = vstv %s4336
    %v4339 = vmul.f32 %v4338, %v130
    %v4340 = vmul.f32 %v4338, %v132
    %v4341 = vmul.f32 %v4338, %v138
    %v4342 = vmul.f32 %v4338, %v140
    %4347 = vrot.lane.b32.xlu0 %v4339, 124
    %v4348 = vpop.permute.xlu0 %4347
    %4349 = vrot.lane.b32.xlu0 %v4340, 124
    %v4350 = vpop.permute.xlu0 %4349
    %4351 = vrot.lane.b32.xlu0 %v4341, 124
    %v4352 = vpop.permute.xlu0 %4351
    %4353 = vrot.lane.b32.xlu0 %v4342, 124
    %v4354 = vpop.permute.xlu0 %4353
    %v4359 = vadd.f32 %v4064, %v4348
    %v4360 = vadd.f32 %v4065, %v4348
    %v4361 = vadd.f32 %v4066, %v4350
    %v4362 = vadd.f32 %v4067, %v4350
    %v4363 = vadd.f32 %v4068, %v4352
    %v4364 = vadd.f32 %v4069, %v4352
    %v4365 = vadd.f32 %v4070, %v4354
    %v4366 = vadd.f32 %v4071, %v4354
    %v4367 = vstv %s4337
    %v4368 = vmul.f32 %v4367, %v146
    %v4369 = vmul.f32 %v4367, %v148
    %v4370 = vmul.f32 %v4367, %v154
    %v4371 = vmul.f32 %v4367, %v156
    %4376 = vrot.lane.b32.xlu0 %v4368, 124
    %v4377 = vpop.permute.xlu0 %4376
    %4378 = vrot.lane.b32.xlu0 %v4369, 124
    %v4379 = vpop.permute.xlu0 %4378
    %4380 = vrot.lane.b32.xlu0 %v4370, 124
    %v4381 = vpop.permute.xlu0 %4380
    %4382 = vrot.lane.b32.xlu0 %v4371, 124
    %v4383 = vpop.permute.xlu0 %4382
    %v4388 = vadd.f32 %v4359, %v4377
    %v4389 = vadd.f32 %v4360, %v4377
    %v4390 = vadd.f32 %v4361, %v4379
    %v4391 = vadd.f32 %v4362, %v4379
    %v4392 = vadd.f32 %v4363, %v4381
    %v4393 = vadd.f32 %v4364, %v4381
    %v4394 = vadd.f32 %v4365, %v4383
    %v4395 = vadd.f32 %v4366, %v4383
    %s4396 = sld [smem:[#allocation4 + $0x20]]
    %s4397 = sld [smem:[#allocation4 + $0x51]]
    %v4398 = vstv %s4396
    %v4399 = vmul.f32 %v4398, %v130
    %v4400 = vmul.f32 %v4398, %v132
    %v4401 = vmul.f32 %v4398, %v134
    %v4402 = vmul.f32 %v4398, %v138
    %v4403 = vmul.f32 %v4398, %v140
    %v4404 = vmul.f32 %v4398, %v142
    %v4411 = vrot.slane %v4399, 4
    %v4412 = vrot.slane %v4400, 4
    %v4413 = vsel %vm378, %v4411, %v4412
    %v4414 = vrot.slane %v4401, 4
    %v4415 = vsel %vm378, %v4412, %v4414
    %v4416 = vrot.slane %v4402, 4
    %v4417 = vrot.slane %v4403, 4
    %v4418 = vsel %vm378, %v4416, %v4417
    %v4419 = vrot.slane %v4404, 4
    %v4420 = vsel %vm378, %v4417, %v4419
    %4421 = vrot.lane.b32.xlu0 %v4411, 124
    %v4422 = vpop.permute.xlu0 %4421
    %4423 = vrot.lane.b32.xlu0 %v4413, 124
    %v4424 = vpop.permute.xlu0 %4423
    %4425 = vrot.lane.b32.xlu0 %v4415, 124
    %v4426 = vpop.permute.xlu0 %4425
    %4427 = vrot.lane.b32.xlu0 %v4416, 124
    %v4428 = vpop.permute.xlu0 %4427
    %4429 = vrot.lane.b32.xlu0 %v4418, 124
    %v4430 = vpop.permute.xlu0 %4429
    %4431 = vrot.lane.b32.xlu0 %v4420, 124
    %v4432 = vpop.permute.xlu0 %4431
    %v4439 = vadd.f32 %v4148, %v4422
    %v4440 = vadd.f32 %v4149, %v4422
    %v4441 = vadd.f32 %v4150, %v4424
    %v4442 = vadd.f32 %v4151, %v4424
    %v4443 = vadd.f32 %v4152, %v4426
    %v4444 = vadd.f32 %v4153, %v4426
    %v4445 = vadd.f32 %v4154, %v4428
    %v4446 = vadd.f32 %v4155, %v4428
    %v4447 = vadd.f32 %v4156, %v4430
    %v4448 = vadd.f32 %v4157, %v4430
    %v4449 = vadd.f32 %v4158, %v4432
    %v4450 = vadd.f32 %v4159, %v4432
    %v4451 = vstv %s4397
    %v4452 = vmul.f32 %v4451, %v146
    %v4453 = vmul.f32 %v4451, %v148
    %v4454 = vmul.f32 %v4451, %v150
    %v4455 = vmul.f32 %v4451, %v154
    %v4456 = vmul.f32 %v4451, %v156
    %v4457 = vmul.f32 %v4451, %v158
    %v4464 = vrot.slane %v4452, 4
    %v4465 = vrot.slane %v4453, 4
    %v4466 = vsel %vm378, %v4464, %v4465
    %v4467 = vrot.slane %v4454, 4
    %v4468 = vsel %vm378, %v4465, %v4467
    %v4469 = vrot.slane %v4455, 4
    %v4470 = vrot.slane %v4456, 4
    %v4471 = vsel %vm378, %v4469, %v4470
    %v4472 = vrot.slane %v4457, 4
    %v4473 = vsel %vm378, %v4470, %v4472
    %4474 = vrot.lane.b32.xlu0 %v4464, 124
    %v4475 = vpop.permute.xlu0 %4474
    %4476 = vrot.lane.b32.xlu0 %v4466, 124
    %v4477 = vpop.permute.xlu0 %4476
    %4478 = vrot.lane.b32.xlu0 %v4468, 124
    %v4479 = vpop.permute.xlu0 %4478
    %4480 = vrot.lane.b32.xlu0 %v4469, 124
    %v4481 = vpop.permute.xlu0 %4480
    %4482 = vrot.lane.b32.xlu0 %v4471, 124
    %v4483 = vpop.permute.xlu0 %4482
    %4484 = vrot.lane.b32.xlu0 %v4473, 124
    %v4485 = vpop.permute.xlu0 %4484
    %v4492 = vadd.f32 %v4439, %v4475
    %v4493 = vadd.f32 %v4440, %v4475
    %v4494 = vadd.f32 %v4441, %v4477
    %v4495 = vadd.f32 %v4442, %v4477
    %v4496 = vadd.f32 %v4443, %v4479
    %v4497 = vadd.f32 %v4444, %v4479
    %v4498 = vadd.f32 %v4445, %v4481
    %v4499 = vadd.f32 %v4446, %v4481
    %v4500 = vadd.f32 %v4447, %v4483
    %v4501 = vadd.f32 %v4448, %v4483
    %v4502 = vadd.f32 %v4449, %v4485
    %v4503 = vadd.f32 %v4450, %v4485
    %s4504 = sld [smem:[#allocation4 + $0x27]]
    %s4505 = sld [smem:[#allocation4 + $0x58]]
    %v4506 = vstv %s4504
    %v4507 = vmul.f32 %v4506, %v130
    %v4508 = vmul.f32 %v4506, %v132
    %v4509 = vmul.f32 %v4506, %v134
    %v4510 = vmul.f32 %v4506, %v138
    %v4511 = vmul.f32 %v4506, %v140
    %v4512 = vmul.f32 %v4506, %v142
    %v4519 = vrot.slane %v4507, 4
    %v4520 = vrot.slane %v4508, 4
    %v4521 = vsel %vm378, %v4519, %v4520
    %v4522 = vrot.slane %v4509, 4
    %v4523 = vsel %vm378, %v4520, %v4522
    %v4524 = vrot.slane %v4510, 4
    %v4525 = vrot.slane %v4511, 4
    %v4526 = vsel %vm378, %v4524, %v4525
    %v4527 = vrot.slane %v4512, 4
    %v4528 = vsel %vm378, %v4525, %v4527
    %4529 = vrot.lane.b32.xlu0 %v4519, 124
    %v4530 = vpop.permute.xlu0 %4529
    %4531 = vrot.lane.b32.xlu0 %v4521, 124
    %v4532 = vpop.permute.xlu0 %4531
    %4533 = vrot.lane.b32.xlu0 %v4523, 124
    %v4534 = vpop.permute.xlu0 %4533
    %4535 = vrot.lane.b32.xlu0 %v4524, 124
    %v4536 = vpop.permute.xlu0 %4535
    %4537 = vrot.lane.b32.xlu0 %v4526, 124
    %v4538 = vpop.permute.xlu0 %4537
    %4539 = vrot.lane.b32.xlu0 %v4528, 124
    %v4540 = vpop.permute.xlu0 %4539
    %v4547 = vadd.f32 %v4236, %v4530
    %v4548 = vadd.f32 %v4237, %v4530
    %v4549 = vadd.f32 %v4238, %v4532
    %v4550 = vadd.f32 %v4239, %v4532
    %v4551 = vadd.f32 %v4240, %v4534
    %v4552 = vadd.f32 %v4241, %v4534
    %v4553 = vadd.f32 %v4242, %v4536
    %v4554 = vadd.f32 %v4243, %v4536
    %v4555 = vadd.f32 %v4244, %v4538
    %v4556 = vadd.f32 %v4245, %v4538
    %v4557 = vadd.f32 %v4246, %v4540
    %v4558 = vadd.f32 %v4247, %v4540
    %v4559 = vstv %s4505
    %v4560 = vmul.f32 %v4559, %v146
    %v4561 = vmul.f32 %v4559, %v148
    %v4562 = vmul.f32 %v4559, %v150
    %v4563 = vmul.f32 %v4559, %v154
    %v4564 = vmul.f32 %v4559, %v156
    %v4565 = vmul.f32 %v4559, %v158
    %v4572 = vrot.slane %v4560, 4
    %v4573 = vrot.slane %v4561, 4
    %v4574 = vsel %vm378, %v4572, %v4573
    %v4575 = vrot.slane %v4562, 4
    %v4576 = vsel %vm378, %v4573, %v4575
    %v4577 = vrot.slane %v4563, 4
    %v4578 = vrot.slane %v4564, 4
    %v4579 = vsel %vm378, %v4577, %v4578
    %v4580 = vrot.slane %v4565, 4
    %v4581 = vsel %vm378, %v4578, %v4580
    %4582 = vrot.lane.b32.xlu0 %v4572, 124
    %v4583 = vpop.permute.xlu0 %4582
    %4584 = vrot.lane.b32.xlu0 %v4574, 124
    %v4585 = vpop.permute.xlu0 %4584
    %4586 = vrot.lane.b32.xlu0 %v4576, 124
    %v4587 = vpop.permute.xlu0 %4586
    %4588 = vrot.lane.b32.xlu0 %v4577, 124
    %v4589 = vpop.permute.xlu0 %4588
    %4590 = vrot.lane.b32.xlu0 %v4579, 124
    %v4591 = vpop.permute.xlu0 %4590
    %4592 = vrot.lane.b32.xlu0 %v4581, 124
    %v4593 = vpop.permute.xlu0 %4592
    %v4600 = vadd.f32 %v4547, %v4583
    %v4601 = vadd.f32 %v4548, %v4583
    %v4602 = vadd.f32 %v4549, %v4585
    %v4603 = vadd.f32 %v4550, %v4585
    %v4604 = vadd.f32 %v4551, %v4587
    %v4605 = vadd.f32 %v4552, %v4587
    %v4606 = vadd.f32 %v4553, %v4589
    %v4607 = vadd.f32 %v4554, %v4589
    %v4608 = vadd.f32 %v4555, %v4591
    %v4609 = vadd.f32 %v4556, %v4591
    %v4610 = vadd.f32 %v4557, %v4593
    %v4611 = vadd.f32 %v4558, %v4593
    %s4612 = sld [smem:[#allocation4 + $0x2e]]
    %s4613 = sld [smem:[#allocation4 + $0x5f]]
    %v4614 = vstv %s4612
    %v4615 = vmul.f32 %v4614, %v130
    %v4616 = vmul.f32 %v4614, %v132
    %v4617 = vmul.f32 %v4614, %v134
    %v4618 = vmul.f32 %v4614, %v138
    %v4619 = vmul.f32 %v4614, %v140
    %v4620 = vmul.f32 %v4614, %v142
    %v4627 = vrot.slane %v4615, 4
    %v4628 = vrot.slane %v4616, 4
    %v4629 = vsel %vm378, %v4627, %v4628
    %v4630 = vrot.slane %v4617, 4
    %v4631 = vsel %vm378, %v4628, %v4630
    %v4632 = vrot.slane %v4618, 4
    %v4633 = vrot.slane %v4619, 4
    %v4634 = vsel %vm378, %v4632, %v4633
    %v4635 = vrot.slane %v4620, 4
    %v4636 = vsel %vm378, %v4633, %v4635
    %4637 = vrot.lane.b32.xlu0 %v4627, 124
    %v4638 = vpop.permute.xlu0 %4637
    %4639 = vrot.lane.b32.xlu0 %v4629, 124
    %v4640 = vpop.permute.xlu0 %4639
    %4641 = vrot.lane.b32.xlu0 %v4631, 124
    %v4642 = vpop.permute.xlu0 %4641
    %4643 = vrot.lane.b32.xlu0 %v4632, 124
    %v4644 = vpop.permute.xlu0 %4643
    %4645 = vrot.lane.b32.xlu0 %v4634, 124
    %v4646 = vpop.permute.xlu0 %4645
    %4647 = vrot.lane.b32.xlu0 %v4636, 124
    %v4648 = vpop.permute.xlu0 %4647
    %v4655 = vadd.f32 %v4324, %v4638
    %v4656 = vadd.f32 %v4325, %v4638
    %v4657 = vadd.f32 %v4326, %v4640
    %v4658 = vadd.f32 %v4327, %v4640
    %v4659 = vadd.f32 %v4328, %v4642
    %v4660 = vadd.f32 %v4329, %v4642
    %v4661 = vadd.f32 %v4330, %v4644
    %v4662 = vadd.f32 %v4331, %v4644
    %v4663 = vadd.f32 %v4332, %v4646
    %v4664 = vadd.f32 %v4333, %v4646
    %v4665 = vadd.f32 %v4334, %v4648
    %v4666 = vadd.f32 %v4335, %v4648
    %v4667 = vstv %s4613
    %v4668 = vmul.f32 %v4667, %v146
    %v4669 = vmul.f32 %v4667, %v148
    %v4670 = vmul.f32 %v4667, %v150
    %v4671 = vmul.f32 %v4667, %v154
    %v4672 = vmul.f32 %v4667, %v156
    %v4673 = vmul.f32 %v4667, %v158
    %v4680 = vrot.slane %v4668, 4
    %v4681 = vrot.slane %v4669, 4
    %v4682 = vsel %vm378, %v4680, %v4681
    %v4683 = vrot.slane %v4670, 4
    %v4684 = vsel %vm378, %v4681, %v4683
    %v4685 = vrot.slane %v4671, 4
    %v4686 = vrot.slane %v4672, 4
    %v4687 = vsel %vm378, %v4685, %v4686
    %v4688 = vrot.slane %v4673, 4
    %v4689 = vsel %vm378, %v4686, %v4688
    %4690 = vrot.lane.b32.xlu0 %v4680, 124
    %v4691 = vpop.permute.xlu0 %4690
    %4692 = vrot.lane.b32.xlu0 %v4682, 124
    %v4693 = vpop.permute.xlu0 %4692
    %4694 = vrot.lane.b32.xlu0 %v4684, 124
    %v4695 = vpop.permute.xlu0 %4694
    %4696 = vrot.lane.b32.xlu0 %v4685, 124
    %v4697 = vpop.permute.xlu0 %4696
    %4698 = vrot.lane.b32.xlu0 %v4687, 124
    %v4699 = vpop.permute.xlu0 %4698
    %4700 = vrot.lane.b32.xlu0 %v4689, 124
    %v4701 = vpop.permute.xlu0 %4700
    %v4708 = vadd.f32 %v4655, %v4691
    %v4709 = vadd.f32 %v4656, %v4691
    %v4710 = vadd.f32 %v4657, %v4693
    %v4711 = vadd.f32 %v4658, %v4693
    %v4712 = vadd.f32 %v4659, %v4695
    %v4713 = vadd.f32 %v4660, %v4695
    %v4714 = vadd.f32 %v4661, %v4697
    %v4715 = vadd.f32 %v4662, %v4697
    %v4716 = vadd.f32 %v4663, %v4699
    %v4717 = vadd.f32 %v4664, %v4699
    %v4718 = vadd.f32 %v4665, %v4701
    %v4719 = vadd.f32 %v4666, %v4701
    %s4720 = sld [smem:[#allocation4 + $0x5]]
    %s4721 = sld [smem:[#allocation4 + $0x36]]
    %v4722 = vstv %s4720
    %v4723 = vmul.f32 %v4722, %v128
    %v4724 = vmul.f32 %v4722, %v130
    %v4725 = vmul.f32 %v4722, %v132
    %v4726 = vmul.f32 %v4722, %v136
    %v4727 = vmul.f32 %v4722, %v138
    %v4728 = vmul.f32 %v4722, %v140
    %v4735 = vrot.slane %v4723, 5
    %v4736 = vrot.slane %v4724, 5
    %v4737 = vsel %vm799, %v4735, %v4736
    %v4738 = vrot.slane %v4725, 5
    %v4739 = vsel %vm799, %v4736, %v4738
    %v4740 = vrot.slane %v4726, 5
    %v4741 = vrot.slane %v4727, 5
    %v4742 = vsel %vm799, %v4740, %v4741
    %v4743 = vrot.slane %v4728, 5
    %v4744 = vsel %vm799, %v4741, %v4743
    %4745 = vrot.lane.b32.xlu0 %v4737, 123
    %v4746 = vpop.permute.xlu0 %4745
    %4747 = vrot.lane.b32.xlu0 %v4739, 123
    %v4748 = vpop.permute.xlu0 %4747
    %4749 = vrot.lane.b32.xlu0 %v4742, 123
    %v4750 = vpop.permute.xlu0 %4749
    %4751 = vrot.lane.b32.xlu0 %v4744, 123
    %v4752 = vpop.permute.xlu0 %4751
    %v4757 = vadd.f32 %v4388, %v4746
    %v4758 = vadd.f32 %v4389, %v4746
    %v4759 = vadd.f32 %v4390, %v4748
    %v4760 = vadd.f32 %v4391, %v4748
    %v4761 = vadd.f32 %v4392, %v4750
    %v4762 = vadd.f32 %v4393, %v4750
    %v4763 = vadd.f32 %v4394, %v4752
    %v4764 = vadd.f32 %v4395, %v4752
    %v4765 = vstv %s4721
    %v4766 = vmul.f32 %v4765, %v144
    %v4767 = vmul.f32 %v4765, %v146
    %v4768 = vmul.f32 %v4765, %v148
    %v4769 = vmul.f32 %v4765, %v152
    %v4770 = vmul.f32 %v4765, %v154
    %v4771 = vmul.f32 %v4765, %v156
    %v4778 = vrot.slane %v4766, 5
    %v4779 = vrot.slane %v4767, 5
    %v4780 = vsel %vm799, %v4778, %v4779
    %v4781 = vrot.slane %v4768, 5
    %v4782 = vsel %vm799, %v4779, %v4781
    %v4783 = vrot.slane %v4769, 5
    %v4784 = vrot.slane %v4770, 5
    %v4785 = vsel %vm799, %v4783, %v4784
    %v4786 = vrot.slane %v4771, 5
    %v4787 = vsel %vm799, %v4784, %v4786
    %4788 = vrot.lane.b32.xlu0 %v4780, 123
    %v4789 = vpop.permute.xlu0 %4788
    %4790 = vrot.lane.b32.xlu0 %v4782, 123
    %v4791 = vpop.permute.xlu0 %4790
    %4792 = vrot.lane.b32.xlu0 %v4785, 123
    %v4793 = vpop.permute.xlu0 %4792
    %4794 = vrot.lane.b32.xlu0 %v4787, 123
    %v4795 = vpop.permute.xlu0 %4794
    %v4800 = vadd.f32 %v4757, %v4789
    %v4801 = vadd.f32 %v4758, %v4789
    %v4802 = vadd.f32 %v4759, %v4791
    %v4803 = vadd.f32 %v4760, %v4791
    %v4804 = vadd.f32 %v4761, %v4793
    %v4805 = vadd.f32 %v4762, %v4793
    %v4806 = vadd.f32 %v4763, %v4795
    %v4807 = vadd.f32 %v4764, %v4795
    %s4808 = sld [smem:[#allocation4 + $0xc]]
    %s4809 = sld [smem:[#allocation4 + $0x3d]]
    %v4810 = vstv %s4808
    %v4811 = vmul.f32 %v4810, %v128
    %v4812 = vmul.f32 %v4810, %v130
    %v4813 = vmul.f32 %v4810, %v132
    %v4814 = vmul.f32 %v4810, %v136
    %v4815 = vmul.f32 %v4810, %v138
    %v4816 = vmul.f32 %v4810, %v140
    %v4823 = vrot.slane %v4811, 1
    %v4824 = vrot.slane %v4812, 1
    %v4825 = vsel %vm965, %v4823, %v4824
    %v4826 = vrot.slane %v4813, 1
    %v4827 = vsel %vm965, %v4824, %v4826
    %v4828 = vrot.slane %v4814, 1
    %v4829 = vrot.slane %v4815, 1
    %v4830 = vsel %vm965, %v4828, %v4829
    %v4831 = vrot.slane %v4816, 1
    %v4832 = vsel %vm965, %v4829, %v4831
    %4833 = vrot.lane.b32.xlu0 %v4825, 123
    %v4834 = vpop.permute.xlu0 %4833
    %4835 = vrot.lane.b32.xlu0 %v4827, 123
    %v4836 = vpop.permute.xlu0 %4835
    %4837 = vrot.lane.b32.xlu0 %v4826, 123
    %v4838 = vpop.permute.xlu0 %4837
    %4839 = vrot.lane.b32.xlu0 %v4830, 123
    %v4840 = vpop.permute.xlu0 %4839
    %4841 = vrot.lane.b32.xlu0 %v4832, 123
    %v4842 = vpop.permute.xlu0 %4841
    %4843 = vrot.lane.b32.xlu0 %v4831, 123
    %v4844 = vpop.permute.xlu0 %4843
    %v4851 = vadd.f32 %v4492, %v4834
    %v4852 = vadd.f32 %v4493, %v4834
    %v4853 = vadd.f32 %v4494, %v4836
    %v4854 = vadd.f32 %v4495, %v4836
    %v4855 = vadd.f32 %v4496, %v4838
    %v4856 = vadd.f32 %v4497, %v4838
    %v4857 = vadd.f32 %v4498, %v4840
    %v4858 = vadd.f32 %v4499, %v4840
    %v4859 = vadd.f32 %v4500, %v4842
    %v4860 = vadd.f32 %v4501, %v4842
    %v4861 = vadd.f32 %v4502, %v4844
    %v4862 = vadd.f32 %v4503, %v4844
    %v4863 = vstv %s4809
    %v4864 = vmul.f32 %v4863, %v144
    %v4865 = vmul.f32 %v4863, %v146
    %v4866 = vmul.f32 %v4863, %v148
    %v4867 = vmul.f32 %v4863, %v152
    %v4868 = vmul.f32 %v4863, %v154
    %v4869 = vmul.f32 %v4863, %v156
    %v4876 = vrot.slane %v4864, 1
    %v4877 = vrot.slane %v4865, 1
    %v4878 = vsel %vm965, %v4876, %v4877
    %v4879 = vrot.slane %v4866, 1
    %v4880 = vsel %vm965, %v4877, %v4879
    %v4881 = vrot.slane %v4867, 1
    %v4882 = vrot.slane %v4868, 1
    %v4883 = vsel %vm965, %v4881, %v4882
    %v4884 = vrot.slane %v4869, 1
    %v4885 = vsel %vm965, %v4882, %v4884
    %4886 = vrot.lane.b32.xlu0 %v4878, 123
    %v4887 = vpop.permute.xlu0 %4886
    %4888 = vrot.lane.b32.xlu0 %v4880, 123
    %v4889 = vpop.permute.xlu0 %4888
    %4890 = vrot.lane.b32.xlu0 %v4879, 123
    %v4891 = vpop.permute.xlu0 %4890
    %4892 = vrot.lane.b32.xlu0 %v4883, 123
    %v4893 = vpop.permute.xlu0 %4892
    %4894 = vrot.lane.b32.xlu0 %v4885, 123
    %v4895 = vpop.permute.xlu0 %4894
    %4896 = vrot.lane.b32.xlu0 %v4884, 123
    %v4897 = vpop.permute.xlu0 %4896
    %v4904 = vadd.f32 %v4851, %v4887
    %v4905 = vadd.f32 %v4852, %v4887
    %v4906 = vadd.f32 %v4853, %v4889
    %v4907 = vadd.f32 %v4854, %v4889
    %v4908 = vadd.f32 %v4855, %v4891
    %v4909 = vadd.f32 %v4856, %v4891
    %v4910 = vadd.f32 %v4857, %v4893
    %v4911 = vadd.f32 %v4858, %v4893
    %v4912 = vadd.f32 %v4859, %v4895
    %v4913 = vadd.f32 %v4860, %v4895
    %v4914 = vadd.f32 %v4861, %v4897
    %v4915 = vadd.f32 %v4862, %v4897
    %s4916 = sld [smem:[#allocation4 + $0x13]]
    %s4917 = sld [smem:[#allocation4 + $0x44]]
    %v4918 = vstv %s4916
    %v4919 = vmul.f32 %v4918, %v128
    %v4920 = vmul.f32 %v4918, %v130
    %v4921 = vmul.f32 %v4918, %v132
    %v4922 = vmul.f32 %v4918, %v136
    %v4923 = vmul.f32 %v4918, %v138
    %v4924 = vmul.f32 %v4918, %v140
    %v4931 = vrot.slane %v4919, 1
    %v4932 = vrot.slane %v4920, 1
    %v4933 = vsel %vm965, %v4931, %v4932
    %v4934 = vrot.slane %v4921, 1
    %v4935 = vsel %vm965, %v4932, %v4934
    %v4936 = vrot.slane %v4922, 1
    %v4937 = vrot.slane %v4923, 1
    %v4938 = vsel %vm965, %v4936, %v4937
    %v4939 = vrot.slane %v4924, 1
    %v4940 = vsel %vm965, %v4937, %v4939
    %4941 = vrot.lane.b32.xlu0 %v4933, 123
    %v4942 = vpop.permute.xlu0 %4941
    %4943 = vrot.lane.b32.xlu0 %v4935, 123
    %v4944 = vpop.permute.xlu0 %4943
    %4945 = vrot.lane.b32.xlu0 %v4934, 123
    %v4946 = vpop.permute.xlu0 %4945
    %4947 = vrot.lane.b32.xlu0 %v4938, 123
    %v4948 = vpop.permute.xlu0 %4947
    %4949 = vrot.lane.b32.xlu0 %v4940, 123
    %v4950 = vpop.permute.xlu0 %4949
    %4951 = vrot.lane.b32.xlu0 %v4939, 123
    %v4952 = vpop.permute.xlu0 %4951
    %v4959 = vadd.f32 %v4600, %v4942
    %v4960 = vadd.f32 %v4601, %v4942
    %v4961 = vadd.f32 %v4602, %v4944
    %v4962 = vadd.f32 %v4603, %v4944
    %v4963 = vadd.f32 %v4604, %v4946
    %v4964 = vadd.f32 %v4605, %v4946
    %v4965 = vadd.f32 %v4606, %v4948
    %v4966 = vadd.f32 %v4607, %v4948
    %v4967 = vadd.f32 %v4608, %v4950
    %v4968 = vadd.f32 %v4609, %v4950
    %v4969 = vadd.f32 %v4610, %v4952
    %v4970 = vadd.f32 %v4611, %v4952
    %v4971 = vstv %s4917
    %v4972 = vmul.f32 %v4971, %v144
    %v4973 = vmul.f32 %v4971, %v146
    %v4974 = vmul.f32 %v4971, %v148
    %v4975 = vmul.f32 %v4971, %v152
    %v4976 = vmul.f32 %v4971, %v154
    %v4977 = vmul.f32 %v4971, %v156
    %v4984 = vrot.slane %v4972, 1
    %v4985 = vrot.slane %v4973, 1
    %v4986 = vsel %vm965, %v4984, %v4985
    %v4987 = vrot.slane %v4974, 1
    %v4988 = vsel %vm965, %v4985, %v4987
    %v4989 = vrot.slane %v4975, 1
    %v4990 = vrot.slane %v4976, 1
    %v4991 = vsel %vm965, %v4989, %v4990
    %v4992 = vrot.slane %v4977, 1
    %v4993 = vsel %vm965, %v4990, %v4992
    %4994 = vrot.lane.b32.xlu0 %v4986, 123
    %v4995 = vpop.permute.xlu0 %4994
    %4996 = vrot.lane.b32.xlu0 %v4988, 123
    %v4997 = vpop.permute.xlu0 %4996
    %4998 = vrot.lane.b32.xlu0 %v4987, 123
    %v4999 = vpop.permute.xlu0 %4998
    %5000 = vrot.lane.b32.xlu0 %v4991, 123
    %v5001 = vpop.permute.xlu0 %5000
    %5002 = vrot.lane.b32.xlu0 %v4993, 123
    %v5003 = vpop.permute.xlu0 %5002
    %5004 = vrot.lane.b32.xlu0 %v4992, 123
    %v5005 = vpop.permute.xlu0 %5004
    %v5012 = vadd.f32 %v4959, %v4995
    %v5013 = vadd.f32 %v4960, %v4995
    %v5014 = vadd.f32 %v4961, %v4997
    %v5015 = vadd.f32 %v4962, %v4997
    %v5016 = vadd.f32 %v4963, %v4999
    %v5017 = vadd.f32 %v4964, %v4999
    %v5018 = vadd.f32 %v4965, %v5001
    %v5019 = vadd.f32 %v4966, %v5001
    %v5020 = vadd.f32 %v4967, %v5003
    %v5021 = vadd.f32 %v4968, %v5003
    %v5022 = vadd.f32 %v4969, %v5005
    %v5023 = vadd.f32 %v4970, %v5005
    %s5024 = sld [smem:[#allocation4 + $0x1a]]
    %s5025 = sld [smem:[#allocation4 + $0x4b]]
    %v5026 = vstv %s5024
    %v5027 = vmul.f32 %v5026, %v130
    %v5028 = vmul.f32 %v5026, %v132
    %v5029 = vmul.f32 %v5026, %v138
    %v5030 = vmul.f32 %v5026, %v140
    %v5035 = vrot.slane %v5027, 1
    %v5036 = vrot.slane %v5028, 1
    %v5037 = vsel %vm965, %v5035, %v5036
    %v5038 = vrot.slane %v5029, 1
    %v5039 = vrot.slane %v5030, 1
    %v5040 = vsel %vm965, %v5038, %v5039
    %5041 = vrot.lane.b32.xlu0 %v5035, 123
    %v5042 = vpop.permute.xlu0 %5041
    %5043 = vrot.lane.b32.xlu0 %v5037, 123
    %v5044 = vpop.permute.xlu0 %5043
    %5045 = vrot.lane.b32.xlu0 %v5036, 123
    %v5046 = vpop.permute.xlu0 %5045
    %5047 = vrot.lane.b32.xlu0 %v5038, 123
    %v5048 = vpop.permute.xlu0 %5047
    %5049 = vrot.lane.b32.xlu0 %v5040, 123
    %v5050 = vpop.permute.xlu0 %5049
    %5051 = vrot.lane.b32.xlu0 %v5039, 123
    %v5052 = vpop.permute.xlu0 %5051
    %v5059 = vadd.f32 %v4708, %v5042
    %v5060 = vadd.f32 %v4709, %v5042
    %v5061 = vadd.f32 %v4710, %v5044
    %v5062 = vadd.f32 %v4711, %v5044
    %v5063 = vadd.f32 %v4712, %v5046
    %v5064 = vadd.f32 %v4713, %v5046
    %v5065 = vadd.f32 %v4714, %v5048
    %v5066 = vadd.f32 %v4715, %v5048
    %v5067 = vadd.f32 %v4716, %v5050
    %v5068 = vadd.f32 %v4717, %v5050
    %v5069 = vadd.f32 %v4718, %v5052
    %v5070 = vadd.f32 %v4719, %v5052
    %v5071 = vstv %s5025
    %v5072 = vmul.f32 %v5071, %v146
    %v5073 = vmul.f32 %v5071, %v148
    %v5074 = vmul.f32 %v5071, %v154
    %v5075 = vmul.f32 %v5071, %v156
    %v5080 = vrot.slane %v5072, 1
    %v5081 = vrot.slane %v5073, 1
    %v5082 = vsel %vm965, %v5080, %v5081
    %v5083 = vrot.slane %v5074, 1
    %v5084 = vrot.slane %v5075, 1
    %v5085 = vsel %vm965, %v5083, %v5084
    %5086 = vrot.lane.b32.xlu0 %v5080, 123
    %v5087 = vpop.permute.xlu0 %5086
    %5088 = vrot.lane.b32.xlu0 %v5082, 123
    %v5089 = vpop.permute.xlu0 %5088
    %5090 = vrot.lane.b32.xlu0 %v5081, 123
    %v5091 = vpop.permute.xlu0 %5090
    %5092 = vrot.lane.b32.xlu0 %v5083, 123
    %v5093 = vpop.permute.xlu0 %5092
    %5094 = vrot.lane.b32.xlu0 %v5085, 123
    %v5095 = vpop.permute.xlu0 %5094
    %5096 = vrot.lane.b32.xlu0 %v5084, 123
    %v5097 = vpop.permute.xlu0 %5096
    %v5104 = vadd.f32 %v5059, %v5087
    %v5105 = vadd.f32 %v5060, %v5087
    %v5106 = vadd.f32 %v5061, %v5089
    %v5107 = vadd.f32 %v5062, %v5089
    %v5108 = vadd.f32 %v5063, %v5091
    %v5109 = vadd.f32 %v5064, %v5091
    %v5110 = vadd.f32 %v5065, %v5093
    %v5111 = vadd.f32 %v5066, %v5093
    %v5112 = vadd.f32 %v5067, %v5095
    %v5113 = vadd.f32 %v5068, %v5095
    %v5114 = vadd.f32 %v5069, %v5097
    %v5115 = vadd.f32 %v5070, %v5097
    %s5116 = sld [smem:[#allocation4 + $0x21]]
    %s5117 = sld [smem:[#allocation4 + $0x52]]
    %v5118 = vstv %s5116
    %v5119 = vmul.f32 %v5118, %v130
    %v5120 = vmul.f32 %v5118, %v132
    %v5121 = vmul.f32 %v5118, %v134
    %v5122 = vmul.f32 %v5118, %v138
    %v5123 = vmul.f32 %v5118, %v140
    %v5124 = vmul.f32 %v5118, %v142
    %v5131 = vrot.slane %v5119, 1
    %v5132 = vrot.slane %v5120, 1
    %v5133 = vsel %vm965, %v5131, %v5132
    %v5134 = vrot.slane %v5121, 1
    %v5135 = vsel %vm965, %v5132, %v5134
    %v5136 = vrot.slane %v5122, 1
    %v5137 = vrot.slane %v5123, 1
    %v5138 = vsel %vm965, %v5136, %v5137
    %v5139 = vrot.slane %v5124, 1
    %v5140 = vsel %vm965, %v5137, %v5139
    %5141 = vrot.lane.b32.xlu0 %v5133, 123
    %v5142 = vpop.permute.xlu0 %5141
    %5143 = vrot.lane.b32.xlu0 %v5135, 123
    %v5144 = vpop.permute.xlu0 %5143
    %5145 = vrot.lane.b32.xlu0 %v5138, 123
    %v5146 = vpop.permute.xlu0 %5145
    %5147 = vrot.lane.b32.xlu0 %v5140, 123
    %v5148 = vpop.permute.xlu0 %5147
    %v5153 = vadd.f32 %v4800, %v5142
    %v5154 = vadd.f32 %v4801, %v5142
    %v5155 = vadd.f32 %v4802, %v5144
    %v5156 = vadd.f32 %v4803, %v5144
    %v5157 = vadd.f32 %v4804, %v5146
    %v5158 = vadd.f32 %v4805, %v5146
    %v5159 = vadd.f32 %v4806, %v5148
    %v5160 = vadd.f32 %v4807, %v5148
    %v5161 = vstv %s5117
    %v5162 = vmul.f32 %v5161, %v146
    %v5163 = vmul.f32 %v5161, %v148
    %v5164 = vmul.f32 %v5161, %v150
    %v5165 = vmul.f32 %v5161, %v154
    %v5166 = vmul.f32 %v5161, %v156
    %v5167 = vmul.f32 %v5161, %v158
    %v5174 = vrot.slane %v5162, 1
    %v5175 = vrot.slane %v5163, 1
    %v5176 = vsel %vm965, %v5174, %v5175
    %v5177 = vrot.slane %v5164, 1
    %v5178 = vsel %vm965, %v5175, %v5177
    %v5179 = vrot.slane %v5165, 1
    %v5180 = vrot.slane %v5166, 1
    %v5181 = vsel %vm965, %v5179, %v5180
    %v5182 = vrot.slane %v5167, 1
    %v5183 = vsel %vm965, %v5180, %v5182
    %5184 = vrot.lane.b32.xlu0 %v5176, 123
    %v5185 = vpop.permute.xlu0 %5184
    %5186 = vrot.lane.b32.xlu0 %v5178, 123
    %v5187 = vpop.permute.xlu0 %5186
    %5188 = vrot.lane.b32.xlu0 %v5181, 123
    %v5189 = vpop.permute.xlu0 %5188
    %5190 = vrot.lane.b32.xlu0 %v5183, 123
    %v5191 = vpop.permute.xlu0 %5190
    %v5196 = vadd.f32 %v5153, %v5185
    %v5197 = vadd.f32 %v5154, %v5185
    %v5198 = vadd.f32 %v5155, %v5187
    %v5199 = vadd.f32 %v5156, %v5187
    %v5200 = vadd.f32 %v5157, %v5189
    %v5201 = vadd.f32 %v5158, %v5189
    %v5202 = vadd.f32 %v5159, %v5191
    %v5203 = vadd.f32 %v5160, %v5191
    %s5204 = sld [smem:[#allocation4 + $0x28]]
    %s5205 = sld [smem:[#allocation4 + $0x59]]
    %v5206 = vstv %s5204
    %v5207 = vmul.f32 %v5206, %v130
    %v5208 = vmul.f32 %v5206, %v132
    %v5209 = vmul.f32 %v5206, %v134
    %v5210 = vmul.f32 %v5206, %v138
    %v5211 = vmul.f32 %v5206, %v140
    %v5212 = vmul.f32 %v5206, %v142
    %v5219 = vrot.slane %v5207, 5
    %v5220 = vrot.slane %v5208, 5
    %v5221 = vsel %vm799, %v5219, %v5220
    %v5222 = vrot.slane %v5209, 5
    %v5223 = vsel %vm799, %v5220, %v5222
    %v5224 = vrot.slane %v5210, 5
    %v5225 = vrot.slane %v5211, 5
    %v5226 = vsel %vm799, %v5224, %v5225
    %v5227 = vrot.slane %v5212, 5
    %v5228 = vsel %vm799, %v5225, %v5227
    %5229 = vrot.lane.b32.xlu0 %v5219, 123
    %v5230 = vpop.permute.xlu0 %5229
    %5231 = vrot.lane.b32.xlu0 %v5221, 123
    %v5232 = vpop.permute.xlu0 %5231
    %5233 = vrot.lane.b32.xlu0 %v5223, 123
    %v5234 = vpop.permute.xlu0 %5233
    %5235 = vrot.lane.b32.xlu0 %v5224, 123
    %v5236 = vpop.permute.xlu0 %5235
    %5237 = vrot.lane.b32.xlu0 %v5226, 123
    %v5238 = vpop.permute.xlu0 %5237
    %5239 = vrot.lane.b32.xlu0 %v5228, 123
    %v5240 = vpop.permute.xlu0 %5239
    %v5247 = vadd.f32 %v4904, %v5230
    %v5248 = vadd.f32 %v4905, %v5230
    %v5249 = vadd.f32 %v4906, %v5232
    %v5250 = vadd.f32 %v4907, %v5232
    %v5251 = vadd.f32 %v4908, %v5234
    %v5252 = vadd.f32 %v4909, %v5234
    %v5253 = vadd.f32 %v4910, %v5236
    %v5254 = vadd.f32 %v4911, %v5236
    %v5255 = vadd.f32 %v4912, %v5238
    %v5256 = vadd.f32 %v4913, %v5238
    %v5257 = vadd.f32 %v4914, %v5240
    %v5258 = vadd.f32 %v4915, %v5240
    %v5259 = vstv %s5205
    %v5260 = vmul.f32 %v5259, %v146
    %v5261 = vmul.f32 %v5259, %v148
    %v5262 = vmul.f32 %v5259, %v150
    %v5263 = vmul.f32 %v5259, %v154
    %v5264 = vmul.f32 %v5259, %v156
    %v5265 = vmul.f32 %v5259, %v158
    %v5272 = vrot.slane %v5260, 5
    %v5273 = vrot.slane %v5261, 5
    %v5274 = vsel %vm799, %v5272, %v5273
    %v5275 = vrot.slane %v5262, 5
    %v5276 = vsel %vm799, %v5273, %v5275
    %v5277 = vrot.slane %v5263, 5
    %v5278 = vrot.slane %v5264, 5
    %v5279 = vsel %vm799, %v5277, %v5278
    %v5280 = vrot.slane %v5265, 5
    %v5281 = vsel %vm799, %v5278, %v5280
    %5282 = vrot.lane.b32.xlu0 %v5272, 123
    %v5283 = vpop.permute.xlu0 %5282
    %5284 = vrot.lane.b32.xlu0 %v5274, 123
    %v5285 = vpop.permute.xlu0 %5284
    %5286 = vrot.lane.b32.xlu0 %v5276, 123
    %v5287 = vpop.permute.xlu0 %5286
    %5288 = vrot.lane.b32.xlu0 %v5277, 123
    %v5289 = vpop.permute.xlu0 %5288
    %5290 = vrot.lane.b32.xlu0 %v5279, 123
    %v5291 = vpop.permute.xlu0 %5290
    %5292 = vrot.lane.b32.xlu0 %v5281, 123
    %v5293 = vpop.permute.xlu0 %5292
    %v5300 = vadd.f32 %v5247, %v5283
    %v5301 = vadd.f32 %v5248, %v5283
    %v5302 = vadd.f32 %v5249, %v5285
    %v5303 = vadd.f32 %v5250, %v5285
    %v5304 = vadd.f32 %v5251, %v5287
    %v5305 = vadd.f32 %v5252, %v5287
    %v5306 = vadd.f32 %v5253, %v5289
    %v5307 = vadd.f32 %v5254, %v5289
    %v5308 = vadd.f32 %v5255, %v5291
    %v5309 = vadd.f32 %v5256, %v5291
    %v5310 = vadd.f32 %v5257, %v5293
    %v5311 = vadd.f32 %v5258, %v5293
    %s5312 = sld [smem:[#allocation4 + $0x2f]]
    %s5313 = sld [smem:[#allocation4 + $0x60]]
    %v5314 = vstv %s5312
    %v5315 = vmul.f32 %v5314, %v130
    %v5316 = vmul.f32 %v5314, %v132
    %v5317 = vmul.f32 %v5314, %v134
    %v5318 = vmul.f32 %v5314, %v138
    %v5319 = vmul.f32 %v5314, %v140
    %v5320 = vmul.f32 %v5314, %v142
    %v5327 = vrot.slane %v5315, 5
    %v5328 = vrot.slane %v5316, 5
    %v5329 = vsel %vm799, %v5327, %v5328
    %v5330 = vrot.slane %v5317, 5
    %v5331 = vsel %vm799, %v5328, %v5330
    %v5332 = vrot.slane %v5318, 5
    %v5333 = vrot.slane %v5319, 5
    %v5334 = vsel %vm799, %v5332, %v5333
    %v5335 = vrot.slane %v5320, 5
    %v5336 = vsel %vm799, %v5333, %v5335
    %5337 = vrot.lane.b32.xlu0 %v5327, 123
    %v5338 = vpop.permute.xlu0 %5337
    %5339 = vrot.lane.b32.xlu0 %v5329, 123
    %v5340 = vpop.permute.xlu0 %5339
    %5341 = vrot.lane.b32.xlu0 %v5331, 123
    %v5342 = vpop.permute.xlu0 %5341
    %5343 = vrot.lane.b32.xlu0 %v5332, 123
    %v5344 = vpop.permute.xlu0 %5343
    %5345 = vrot.lane.b32.xlu0 %v5334, 123
    %v5346 = vpop.permute.xlu0 %5345
    %5347 = vrot.lane.b32.xlu0 %v5336, 123
    %v5348 = vpop.permute.xlu0 %5347
    %v5355 = vadd.f32 %v5012, %v5338
    %v5356 = vadd.f32 %v5013, %v5338
    %v5357 = vadd.f32 %v5014, %v5340
    %v5358 = vadd.f32 %v5015, %v5340
    %v5359 = vadd.f32 %v5016, %v5342
    %v5360 = vadd.f32 %v5017, %v5342
    %v5361 = vadd.f32 %v5018, %v5344
    %v5362 = vadd.f32 %v5019, %v5344
    %v5363 = vadd.f32 %v5020, %v5346
    %v5364 = vadd.f32 %v5021, %v5346
    %v5365 = vadd.f32 %v5022, %v5348
    %v5366 = vadd.f32 %v5023, %v5348
    %v5367 = vstv %s5313
    %v5368 = vmul.f32 %v5367, %v146
    %v5369 = vmul.f32 %v5367, %v148
    %v5370 = vmul.f32 %v5367, %v150
    %v5371 = vmul.f32 %v5367, %v154
    %v5372 = vmul.f32 %v5367, %v156
    %v5373 = vmul.f32 %v5367, %v158
    %v5380 = vrot.slane %v5368, 5
    %v5381 = vrot.slane %v5369, 5
    %v5382 = vsel %vm799, %v5380, %v5381
    %v5383 = vrot.slane %v5370, 5
    %v5384 = vsel %vm799, %v5381, %v5383
    %v5385 = vrot.slane %v5371, 5
    %v5386 = vrot.slane %v5372, 5
    %v5387 = vsel %vm799, %v5385, %v5386
    %v5388 = vrot.slane %v5373, 5
    %v5389 = vsel %vm799, %v5386, %v5388
    %5390 = vrot.lane.b32.xlu0 %v5380, 123
    %v5391 = vpop.permute.xlu0 %5390
    %5392 = vrot.lane.b32.xlu0 %v5382, 123
    %v5393 = vpop.permute.xlu0 %5392
    %5394 = vrot.lane.b32.xlu0 %v5384, 123
    %v5395 = vpop.permute.xlu0 %5394
    %5396 = vrot.lane.b32.xlu0 %v5385, 123
    %v5397 = vpop.permute.xlu0 %5396
    %5398 = vrot.lane.b32.xlu0 %v5387, 123
    %v5399 = vpop.permute.xlu0 %5398
    %5400 = vrot.lane.b32.xlu0 %v5389, 123
    %v5401 = vpop.permute.xlu0 %5400
    %v5408 = vadd.f32 %v5355, %v5391
    %v5409 = vadd.f32 %v5356, %v5391
    %v5410 = vadd.f32 %v5357, %v5393
    %v5411 = vadd.f32 %v5358, %v5393
    %v5412 = vadd.f32 %v5359, %v5395
    %v5413 = vadd.f32 %v5360, %v5395
    %v5414 = vadd.f32 %v5361, %v5397
    %v5415 = vadd.f32 %v5362, %v5397
    %v5416 = vadd.f32 %v5363, %v5399
    %v5417 = vadd.f32 %v5364, %v5399
    %v5418 = vadd.f32 %v5365, %v5401
    %v5419 = vadd.f32 %v5366, %v5401
    %s5420 = sld [smem:[#allocation4 + $0x6]]
    %s5421 = sld [smem:[#allocation4 + $0x37]]
    %v5422 = vstv %s5420
    %v5423 = vmul.f32 %v5422, %v128
    %v5424 = vmul.f32 %v5422, %v130
    %v5425 = vmul.f32 %v5422, %v132
    %v5426 = vmul.f32 %v5422, %v136
    %v5427 = vmul.f32 %v5422, %v138
    %v5428 = vmul.f32 %v5422, %v140
    %v5435 = vrot.slane %v5423, 6
    %v5436 = vrot.slane %v5424, 6
    %v5437 = vsel %vm2098, %v5435, %v5436
    %v5438 = vrot.slane %v5425, 6
    %v5439 = vsel %vm2098, %v5436, %v5438
    %v5440 = vrot.slane %v5426, 6
    %v5441 = vrot.slane %v5427, 6
    %v5442 = vsel %vm2098, %v5440, %v5441
    %v5443 = vrot.slane %v5428, 6
    %v5444 = vsel %vm2098, %v5441, %v5443
    %5445 = vrot.lane.b32.xlu0 %v5435, 122
    %v5446 = vpop.permute.xlu0 %5445
    %5447 = vrot.lane.b32.xlu0 %v5437, 122
    %v5448 = vpop.permute.xlu0 %5447
    %5449 = vrot.lane.b32.xlu0 %v5439, 122
    %v5450 = vpop.permute.xlu0 %5449
    %5451 = vrot.lane.b32.xlu0 %v5440, 122
    %v5452 = vpop.permute.xlu0 %5451
    %5453 = vrot.lane.b32.xlu0 %v5442, 122
    %v5454 = vpop.permute.xlu0 %5453
    %5455 = vrot.lane.b32.xlu0 %v5444, 122
    %v5456 = vpop.permute.xlu0 %5455
    %v5463 = vadd.f32 %v5104, %v5446
    %v5464 = vadd.f32 %v5105, %v5446
    %v5465 = vadd.f32 %v5106, %v5448
    %v5466 = vadd.f32 %v5107, %v5448
    %v5467 = vadd.f32 %v5108, %v5450
    %v5468 = vadd.f32 %v5109, %v5450
    %v5469 = vadd.f32 %v5110, %v5452
    %v5470 = vadd.f32 %v5111, %v5452
    %v5471 = vadd.f32 %v5112, %v5454
    %v5472 = vadd.f32 %v5113, %v5454
    %v5473 = vadd.f32 %v5114, %v5456
    %v5474 = vadd.f32 %v5115, %v5456
    %v5475 = vstv %s5421
    %v5476 = vmul.f32 %v5475, %v144
    %v5477 = vmul.f32 %v5475, %v146
    %v5478 = vmul.f32 %v5475, %v148
    %v5479 = vmul.f32 %v5475, %v152
    %v5480 = vmul.f32 %v5475, %v154
    %v5481 = vmul.f32 %v5475, %v156
    %v5488 = vrot.slane %v5476, 6
    %v5489 = vrot.slane %v5477, 6
    %v5490 = vsel %vm2098, %v5488, %v5489
    %v5491 = vrot.slane %v5478, 6
    %v5492 = vsel %vm2098, %v5489, %v5491
    %v5493 = vrot.slane %v5479, 6
    %v5494 = vrot.slane %v5480, 6
    %v5495 = vsel %vm2098, %v5493, %v5494
    %v5496 = vrot.slane %v5481, 6
    %v5497 = vsel %vm2098, %v5494, %v5496
    %5498 = vrot.lane.b32.xlu0 %v5488, 122
    %v5499 = vpop.permute.xlu0 %5498
    %5500 = vrot.lane.b32.xlu0 %v5490, 122
    %v5501 = vpop.permute.xlu0 %5500
    %5502 = vrot.lane.b32.xlu0 %v5492, 122
    %v5503 = vpop.permute.xlu0 %5502
    %5504 = vrot.lane.b32.xlu0 %v5493, 122
    %v5505 = vpop.permute.xlu0 %5504
    %5506 = vrot.lane.b32.xlu0 %v5495, 122
    %v5507 = vpop.permute.xlu0 %5506
    %5508 = vrot.lane.b32.xlu0 %v5497, 122
    %v5509 = vpop.permute.xlu0 %5508
    %v5516 = vadd.f32 %v5463, %v5499
    %v5517 = vadd.f32 %v5464, %v5499
    %v5518 = vadd.f32 %v5465, %v5501
    %v5519 = vadd.f32 %v5466, %v5501
    %v5520 = vadd.f32 %v5467, %v5503
    %v5521 = vadd.f32 %v5468, %v5503
    %v5522 = vadd.f32 %v5469, %v5505
    %v5523 = vadd.f32 %v5470, %v5505
    %v5524 = vadd.f32 %v5471, %v5507
    %v5525 = vadd.f32 %v5472, %v5507
    %v5526 = vadd.f32 %v5473, %v5509
    %v5527 = vadd.f32 %v5474, %v5509
    %s5528 = sld [smem:[#allocation4 + $0xd]]
    %s5529 = sld [smem:[#allocation4 + $0x3e]]
    %v5530 = vstv %s5528
    %v5531 = vmul.f32 %v5530, %v128
    %v5532 = vmul.f32 %v5530, %v130
    %v5533 = vmul.f32 %v5530, %v132
    %v5534 = vmul.f32 %v5530, %v136
    %v5535 = vmul.f32 %v5530, %v138
    %v5536 = vmul.f32 %v5530, %v140
    %v5543 = vrot.slane %v5531, 6
    %v5544 = vrot.slane %v5532, 6
    %v5545 = vsel %vm2098, %v5543, %v5544
    %v5546 = vrot.slane %v5533, 6
    %v5547 = vsel %vm2098, %v5544, %v5546
    %v5548 = vrot.slane %v5534, 6
    %v5549 = vrot.slane %v5535, 6
    %v5550 = vsel %vm2098, %v5548, %v5549
    %v5551 = vrot.slane %v5536, 6
    %v5552 = vsel %vm2098, %v5549, %v5551
    %5553 = vrot.lane.b32.xlu0 %v5545, 122
    %v5554 = vpop.permute.xlu0 %5553
    %5555 = vrot.lane.b32.xlu0 %v5547, 122
    %v5556 = vpop.permute.xlu0 %5555
    %5557 = vrot.lane.b32.xlu0 %v5550, 122
    %v5558 = vpop.permute.xlu0 %5557
    %5559 = vrot.lane.b32.xlu0 %v5552, 122
    %v5560 = vpop.permute.xlu0 %5559
    %v5565 = vadd.f32 %v5196, %v5554
    %v5566 = vadd.f32 %v5197, %v5554
    %v5567 = vadd.f32 %v5198, %v5556
    %v5568 = vadd.f32 %v5199, %v5556
    %v5569 = vadd.f32 %v5200, %v5558
    %v5570 = vadd.f32 %v5201, %v5558
    %v5571 = vadd.f32 %v5202, %v5560
    %v5572 = vadd.f32 %v5203, %v5560
    %v5573 = vstv %s5529
    %v5574 = vmul.f32 %v5573, %v144
    %v5575 = vmul.f32 %v5573, %v146
    %v5576 = vmul.f32 %v5573, %v148
    %v5577 = vmul.f32 %v5573, %v152
    %v5578 = vmul.f32 %v5573, %v154
    %v5579 = vmul.f32 %v5573, %v156
    %v5586 = vrot.slane %v5574, 6
    %v5587 = vrot.slane %v5575, 6
    %v5588 = vsel %vm2098, %v5586, %v5587
    %v5589 = vrot.slane %v5576, 6
    %v5590 = vsel %vm2098, %v5587, %v5589
    %v5591 = vrot.slane %v5577, 6
    %v5592 = vrot.slane %v5578, 6
    %v5593 = vsel %vm2098, %v5591, %v5592
    %v5594 = vrot.slane %v5579, 6
    %v5595 = vsel %vm2098, %v5592, %v5594
    %5596 = vrot.lane.b32.xlu0 %v5588, 122
    %v5597 = vpop.permute.xlu0 %5596
    %5598 = vrot.lane.b32.xlu0 %v5590, 122
    %v5599 = vpop.permute.xlu0 %5598
    %5600 = vrot.lane.b32.xlu0 %v5593, 122
    %v5601 = vpop.permute.xlu0 %5600
    %5602 = vrot.lane.b32.xlu0 %v5595, 122
    %v5603 = vpop.permute.xlu0 %5602
    %v5608 = vadd.f32 %v5565, %v5597
    %v5609 = vadd.f32 %v5566, %v5597
    %v5610 = vadd.f32 %v5567, %v5599
    %v5611 = vadd.f32 %v5568, %v5599
    %v5612 = vadd.f32 %v5569, %v5601
    %v5613 = vadd.f32 %v5570, %v5601
    %v5614 = vadd.f32 %v5571, %v5603
    %v5615 = vadd.f32 %v5572, %v5603
    %s5616 = sld [smem:[#allocation4 + $0x14]]
    %s5617 = sld [smem:[#allocation4 + $0x45]]
    %v5618 = vstv %s5616
    %v5619 = vmul.f32 %v5618, %v128
    %v5620 = vmul.f32 %v5618, %v130
    %v5621 = vmul.f32 %v5618, %v132
    %v5622 = vmul.f32 %v5618, %v136
    %v5623 = vmul.f32 %v5618, %v138
    %v5624 = vmul.f32 %v5618, %v140
    %v5631 = vrot.slane %v5619, 2
    %v5632 = vrot.slane %v5620, 2
    %v5633 = vsel %vm2464, %v5631, %v5632
    %v5634 = vrot.slane %v5621, 2
    %v5635 = vsel %vm2464, %v5632, %v5634
    %v5636 = vrot.slane %v5622, 2
    %v5637 = vrot.slane %v5623, 2
    %v5638 = vsel %vm2464, %v5636, %v5637
    %v5639 = vrot.slane %v5624, 2
    %v5640 = vsel %vm2464, %v5637, %v5639
    %5641 = vrot.lane.b32.xlu0 %v5633, 122
    %v5642 = vpop.permute.xlu0 %5641
    %5643 = vrot.lane.b32.xlu0 %v5635, 122
    %v5644 = vpop.permute.xlu0 %5643
    %5645 = vrot.lane.b32.xlu0 %v5634, 122
    %v5646 = vpop.permute.xlu0 %5645
    %5647 = vrot.lane.b32.xlu0 %v5638, 122
    %v5648 = vpop.permute.xlu0 %5647
    %5649 = vrot.lane.b32.xlu0 %v5640, 122
    %v5650 = vpop.permute.xlu0 %5649
    %5651 = vrot.lane.b32.xlu0 %v5639, 122
    %v5652 = vpop.permute.xlu0 %5651
    %v5659 = vadd.f32 %v5300, %v5642
    %v5660 = vadd.f32 %v5301, %v5642
    %v5661 = vadd.f32 %v5302, %v5644
    %v5662 = vadd.f32 %v5303, %v5644
    %v5663 = vadd.f32 %v5304, %v5646
    %v5664 = vadd.f32 %v5305, %v5646
    %v5665 = vadd.f32 %v5306, %v5648
    %v5666 = vadd.f32 %v5307, %v5648
    %v5667 = vadd.f32 %v5308, %v5650
    %v5668 = vadd.f32 %v5309, %v5650
    %v5669 = vadd.f32 %v5310, %v5652
    %v5670 = vadd.f32 %v5311, %v5652
    %v5671 = vstv %s5617
    %v5672 = vmul.f32 %v5671, %v144
    %v5673 = vmul.f32 %v5671, %v146
    %v5674 = vmul.f32 %v5671, %v148
    %v5675 = vmul.f32 %v5671, %v152
    %v5676 = vmul.f32 %v5671, %v154
    %v5677 = vmul.f32 %v5671, %v156
    %v5684 = vrot.slane %v5672, 2
    %v5685 = vrot.slane %v5673, 2
    %v5686 = vsel %vm2464, %v5684, %v5685
    %v5687 = vrot.slane %v5674, 2
    %v5688 = vsel %vm2464, %v5685, %v5687
    %v5689 = vrot.slane %v5675, 2
    %v5690 = vrot.slane %v5676, 2
    %v5691 = vsel %vm2464, %v5689, %v5690
    %v5692 = vrot.slane %v5677, 2
    %v5693 = vsel %vm2464, %v5690, %v5692
    %5694 = vrot.lane.b32.xlu0 %v5686, 122
    %v5695 = vpop.permute.xlu0 %5694
    %5696 = vrot.lane.b32.xlu0 %v5688, 122
    %v5697 = vpop.permute.xlu0 %5696
    %5698 = vrot.lane.b32.xlu0 %v5687, 122
    %v5699 = vpop.permute.xlu0 %5698
    %5700 = vrot.lane.b32.xlu0 %v5691, 122
    %v5701 = vpop.permute.xlu0 %5700
    %5702 = vrot.lane.b32.xlu0 %v5693, 122
    %v5703 = vpop.permute.xlu0 %5702
    %5704 = vrot.lane.b32.xlu0 %v5692, 122
    %v5705 = vpop.permute.xlu0 %5704
    %v5712 = vadd.f32 %v5659, %v5695
    %v5713 = vadd.f32 %v5660, %v5695
    %v5714 = vadd.f32 %v5661, %v5697
    %v5715 = vadd.f32 %v5662, %v5697
    %v5716 = vadd.f32 %v5663, %v5699
    %v5717 = vadd.f32 %v5664, %v5699
    %v5718 = vadd.f32 %v5665, %v5701
    %v5719 = vadd.f32 %v5666, %v5701
    %v5720 = vadd.f32 %v5667, %v5703
    %v5721 = vadd.f32 %v5668, %v5703
    %v5722 = vadd.f32 %v5669, %v5705
    %v5723 = vadd.f32 %v5670, %v5705
    %s5724 = sld [smem:[#allocation4 + $0x1b]]
    %s5725 = sld [smem:[#allocation4 + $0x4c]]
    %v5726 = vstv %s5724
    %v5727 = vmul.f32 %v5726, %v130
    %v5728 = vmul.f32 %v5726, %v132
    %v5729 = vmul.f32 %v5726, %v138
    %v5730 = vmul.f32 %v5726, %v140
    %v5735 = vrot.slane %v5727, 2
    %v5736 = vrot.slane %v5728, 2
    %v5737 = vsel %vm2464, %v5735, %v5736
    %v5738 = vrot.slane %v5729, 2
    %v5739 = vrot.slane %v5730, 2
    %v5740 = vsel %vm2464, %v5738, %v5739
    %5741 = vrot.lane.b32.xlu0 %v5735, 122
    %v5742 = vpop.permute.xlu0 %5741
    %5743 = vrot.lane.b32.xlu0 %v5737, 122
    %v5744 = vpop.permute.xlu0 %5743
    %5745 = vrot.lane.b32.xlu0 %v5736, 122
    %v5746 = vpop.permute.xlu0 %5745
    %5747 = vrot.lane.b32.xlu0 %v5738, 122
    %v5748 = vpop.permute.xlu0 %5747
    %5749 = vrot.lane.b32.xlu0 %v5740, 122
    %v5750 = vpop.permute.xlu0 %5749
    %5751 = vrot.lane.b32.xlu0 %v5739, 122
    %v5752 = vpop.permute.xlu0 %5751
    %v5759 = vadd.f32 %v5408, %v5742
    %v5760 = vadd.f32 %v5409, %v5742
    %v5761 = vadd.f32 %v5410, %v5744
    %v5762 = vadd.f32 %v5411, %v5744
    %v5763 = vadd.f32 %v5412, %v5746
    %v5764 = vadd.f32 %v5413, %v5746
    %v5765 = vadd.f32 %v5414, %v5748
    %v5766 = vadd.f32 %v5415, %v5748
    %v5767 = vadd.f32 %v5416, %v5750
    %v5768 = vadd.f32 %v5417, %v5750
    %v5769 = vadd.f32 %v5418, %v5752
    %v5770 = vadd.f32 %v5419, %v5752
    %v5771 = vstv %s5725
    %v5772 = vmul.f32 %v5771, %v146
    %v5773 = vmul.f32 %v5771, %v148
    %v5774 = vmul.f32 %v5771, %v154
    %v5775 = vmul.f32 %v5771, %v156
    %v5780 = vrot.slane %v5772, 2
    %v5781 = vrot.slane %v5773, 2
    %v5782 = vsel %vm2464, %v5780, %v5781
    %v5783 = vrot.slane %v5774, 2
    %v5784 = vrot.slane %v5775, 2
    %v5785 = vsel %vm2464, %v5783, %v5784
    %5786 = vrot.lane.b32.xlu0 %v5780, 122
    %v5787 = vpop.permute.xlu0 %5786
    %5788 = vrot.lane.b32.xlu0 %v5782, 122
    %v5789 = vpop.permute.xlu0 %5788
    %5790 = vrot.lane.b32.xlu0 %v5781, 122
    %v5791 = vpop.permute.xlu0 %5790
    %5792 = vrot.lane.b32.xlu0 %v5783, 122
    %v5793 = vpop.permute.xlu0 %5792
    %5794 = vrot.lane.b32.xlu0 %v5785, 122
    %v5795 = vpop.permute.xlu0 %5794
    %5796 = vrot.lane.b32.xlu0 %v5784, 122
    %v5797 = vpop.permute.xlu0 %5796
    %v5804 = vadd.f32 %v5759, %v5787
    %v5805 = vadd.f32 %v5760, %v5787
    %v5806 = vadd.f32 %v5761, %v5789
    %v5807 = vadd.f32 %v5762, %v5789
    %v5808 = vadd.f32 %v5763, %v5791
    %v5809 = vadd.f32 %v5764, %v5791
    %v5810 = vadd.f32 %v5765, %v5793
    %v5811 = vadd.f32 %v5766, %v5793
    %v5812 = vadd.f32 %v5767, %v5795
    %v5813 = vadd.f32 %v5768, %v5795
    %v5814 = vadd.f32 %v5769, %v5797
    %v5815 = vadd.f32 %v5770, %v5797
    %s5816 = sld [smem:[#allocation4 + $0x22]]
    %s5817 = sld [smem:[#allocation4 + $0x53]]
    %v5818 = vstv %s5816
    %v5819 = vmul.f32 %v5818, %v130
    %v5820 = vmul.f32 %v5818, %v132
    %v5821 = vmul.f32 %v5818, %v134
    %v5822 = vmul.f32 %v5818, %v138
    %v5823 = vmul.f32 %v5818, %v140
    %v5824 = vmul.f32 %v5818, %v142
    %v5831 = vrot.slane %v5819, 2
    %v5832 = vrot.slane %v5820, 2
    %v5833 = vsel %vm2464, %v5831, %v5832
    %v5834 = vrot.slane %v5821, 2
    %v5835 = vsel %vm2464, %v5832, %v5834
    %v5836 = vrot.slane %v5822, 2
    %v5837 = vrot.slane %v5823, 2
    %v5838 = vsel %vm2464, %v5836, %v5837
    %v5839 = vrot.slane %v5824, 2
    %v5840 = vsel %vm2464, %v5837, %v5839
    %5841 = vrot.lane.b32.xlu0 %v5831, 122
    %v5842 = vpop.permute.xlu0 %5841
    %5843 = vrot.lane.b32.xlu0 %v5833, 122
    %v5844 = vpop.permute.xlu0 %5843
    %5845 = vrot.lane.b32.xlu0 %v5835, 122
    %v5846 = vpop.permute.xlu0 %5845
    %5847 = vrot.lane.b32.xlu0 %v5836, 122
    %v5848 = vpop.permute.xlu0 %5847
    %5849 = vrot.lane.b32.xlu0 %v5838, 122
    %v5850 = vpop.permute.xlu0 %5849
    %5851 = vrot.lane.b32.xlu0 %v5840, 122
    %v5852 = vpop.permute.xlu0 %5851
    %v5859 = vadd.f32 %v5516, %v5842
    %v5860 = vadd.f32 %v5517, %v5842
    %v5861 = vadd.f32 %v5518, %v5844
    %v5862 = vadd.f32 %v5519, %v5844
    %v5863 = vadd.f32 %v5520, %v5846
    %v5864 = vadd.f32 %v5521, %v5846
    %v5865 = vadd.f32 %v5522, %v5848
    %v5866 = vadd.f32 %v5523, %v5848
    %v5867 = vadd.f32 %v5524, %v5850
    %v5868 = vadd.f32 %v5525, %v5850
    %v5869 = vadd.f32 %v5526, %v5852
    %v5870 = vadd.f32 %v5527, %v5852
    %v5871 = vstv %s5817
    %v5872 = vmul.f32 %v5871, %v146
    %v5873 = vmul.f32 %v5871, %v148
    %v5874 = vmul.f32 %v5871, %v150
    %v5875 = vmul.f32 %v5871, %v154
    %v5876 = vmul.f32 %v5871, %v156
    %v5877 = vmul.f32 %v5871, %v158
    %v5884 = vrot.slane %v5872, 2
    %v5885 = vrot.slane %v5873, 2
    %v5886 = vsel %vm2464, %v5884, %v5885
    %v5887 = vrot.slane %v5874, 2
    %v5888 = vsel %vm2464, %v5885, %v5887
    %v5889 = vrot.slane %v5875, 2
    %v5890 = vrot.slane %v5876, 2
    %v5891 = vsel %vm2464, %v5889, %v5890
    %v5892 = vrot.slane %v5877, 2
    %v5893 = vsel %vm2464, %v5890, %v5892
    %5894 = vrot.lane.b32.xlu0 %v5884, 122
    %v5895 = vpop.permute.xlu0 %5894
    %5896 = vrot.lane.b32.xlu0 %v5886, 122
    %v5897 = vpop.permute.xlu0 %5896
    %5898 = vrot.lane.b32.xlu0 %v5888, 122
    %v5899 = vpop.permute.xlu0 %5898
    %5900 = vrot.lane.b32.xlu0 %v5889, 122
    %v5901 = vpop.permute.xlu0 %5900
    %5902 = vrot.lane.b32.xlu0 %v5891, 122
    %v5903 = vpop.permute.xlu0 %5902
    %5904 = vrot.lane.b32.xlu0 %v5893, 122
    %v5905 = vpop.permute.xlu0 %5904
    %v5912 = vadd.f32 %v5859, %v5895
    %v5913 = vadd.f32 %v5860, %v5895
    %v5914 = vadd.f32 %v5861, %v5897
    %v5915 = vadd.f32 %v5862, %v5897
    %v5916 = vadd.f32 %v5863, %v5899
    %v5917 = vadd.f32 %v5864, %v5899
    %v5918 = vadd.f32 %v5865, %v5901
    %v5919 = vadd.f32 %v5866, %v5901
    %v5920 = vadd.f32 %v5867, %v5903
    %v5921 = vadd.f32 %v5868, %v5903
    %v5922 = vadd.f32 %v5869, %v5905
    %v5923 = vadd.f32 %v5870, %v5905
    %s5924 = sld [smem:[#allocation4 + $0x29]]
    %s5925 = sld [smem:[#allocation4 + $0x5a]]
    %v5926 = vstv %s5924
    %v5927 = vmul.f32 %v5926, %v130
    %v5928 = vmul.f32 %v5926, %v132
    %v5929 = vmul.f32 %v5926, %v134
    %v5930 = vmul.f32 %v5926, %v138
    %v5931 = vmul.f32 %v5926, %v140
    %v5932 = vmul.f32 %v5926, %v142
    %v5939 = vrot.slane %v5927, 2
    %v5940 = vrot.slane %v5928, 2
    %v5941 = vsel %vm2464, %v5939, %v5940
    %v5942 = vrot.slane %v5929, 2
    %v5943 = vsel %vm2464, %v5940, %v5942
    %v5944 = vrot.slane %v5930, 2
    %v5945 = vrot.slane %v5931, 2
    %v5946 = vsel %vm2464, %v5944, %v5945
    %v5947 = vrot.slane %v5932, 2
    %v5948 = vsel %vm2464, %v5945, %v5947
    %5949 = vrot.lane.b32.xlu0 %v5941, 122
    %v5950 = vpop.permute.xlu0 %5949
    %5951 = vrot.lane.b32.xlu0 %v5943, 122
    %v5952 = vpop.permute.xlu0 %5951
    %5953 = vrot.lane.b32.xlu0 %v5946, 122
    %v5954 = vpop.permute.xlu0 %5953
    %5955 = vrot.lane.b32.xlu0 %v5948, 122
    %v5956 = vpop.permute.xlu0 %5955
    %v5961 = vadd.f32 %v5608, %v5950
    %v5962 = vadd.f32 %v5609, %v5950
    %v5963 = vadd.f32 %v5610, %v5952
    %v5964 = vadd.f32 %v5611, %v5952
    %v5965 = vadd.f32 %v5612, %v5954
    %v5966 = vadd.f32 %v5613, %v5954
    %v5967 = vadd.f32 %v5614, %v5956
    %v5968 = vadd.f32 %v5615, %v5956
    %v5969 = vstv %s5925
    %v5970 = vmul.f32 %v5969, %v146
    %v5971 = vmul.f32 %v5969, %v148
    %v5972 = vmul.f32 %v5969, %v150
    %v5973 = vmul.f32 %v5969, %v154
    %v5974 = vmul.f32 %v5969, %v156
    %v5975 = vmul.f32 %v5969, %v158
    %v5982 = vrot.slane %v5970, 2
    %v5983 = vrot.slane %v5971, 2
    %v5984 = vsel %vm2464, %v5982, %v5983
    %v5985 = vrot.slane %v5972, 2
    %v5986 = vsel %vm2464, %v5983, %v5985
    %v5987 = vrot.slane %v5973, 2
    %v5988 = vrot.slane %v5974, 2
    %v5989 = vsel %vm2464, %v5987, %v5988
    %v5990 = vrot.slane %v5975, 2
    %v5991 = vsel %vm2464, %v5988, %v5990
    %5992 = vrot.lane.b32.xlu0 %v5984, 122
    %v5993 = vpop.permute.xlu0 %5992
    %5994 = vrot.lane.b32.xlu0 %v5986, 122
    %v5995 = vpop.permute.xlu0 %5994
    %5996 = vrot.lane.b32.xlu0 %v5989, 122
    %v5997 = vpop.permute.xlu0 %5996
    %5998 = vrot.lane.b32.xlu0 %v5991, 122
    %v5999 = vpop.permute.xlu0 %5998
    %v6004 = vadd.f32 %v5961, %v5993
    %v6005 = vadd.f32 %v5962, %v5993
    %v6006 = vadd.f32 %v5963, %v5995
    %v6007 = vadd.f32 %v5964, %v5995
    %v6008 = vadd.f32 %v5965, %v5997
    %v6009 = vadd.f32 %v5966, %v5997
    %v6010 = vadd.f32 %v5967, %v5999
    %v6011 = vadd.f32 %v5968, %v5999
    %s6012 = sld [smem:[#allocation4 + $0x30]]
    %s6013 = sld [smem:[#allocation4 + $0x61]]
    %v6014 = vstv %s6012
    %v6015 = vmul.f32 %v6014, %v130
    %v6016 = vmul.f32 %v6014, %v132
    %v6017 = vmul.f32 %v6014, %v134
    %v6018 = vmul.f32 %v6014, %v138
    %v6019 = vmul.f32 %v6014, %v140
    %v6020 = vmul.f32 %v6014, %v142
    %v6027 = vrot.slane %v6015, 6
    %v6028 = vrot.slane %v6016, 6
    %v6029 = vsel %vm2098, %v6027, %v6028
    %v6030 = vrot.slane %v6017, 6
    %v6031 = vsel %vm2098, %v6028, %v6030
    %v6032 = vrot.slane %v6018, 6
    %v6033 = vrot.slane %v6019, 6
    %v6034 = vsel %vm2098, %v6032, %v6033
    %v6035 = vrot.slane %v6020, 6
    %v6036 = vsel %vm2098, %v6033, %v6035
    %6037 = vrot.lane.b32.xlu0 %v6027, 122
    %v6038 = vpop.permute.xlu0 %6037
    %6039 = vrot.lane.b32.xlu0 %v6029, 122
    %v6040 = vpop.permute.xlu0 %6039
    %6041 = vrot.lane.b32.xlu0 %v6031, 122
    %v6042 = vpop.permute.xlu0 %6041
    %6043 = vrot.lane.b32.xlu0 %v6032, 122
    %v6044 = vpop.permute.xlu0 %6043
    %6045 = vrot.lane.b32.xlu0 %v6034, 122
    %v6046 = vpop.permute.xlu0 %6045
    %6047 = vrot.lane.b32.xlu0 %v6036, 122
    %v6048 = vpop.permute.xlu0 %6047
    %v6055 = vadd.f32 %v5712, %v6038
    %v6056 = vadd.f32 %v5713, %v6038
    %v6057 = vadd.f32 %v5714, %v6040
    %v6058 = vadd.f32 %v5715, %v6040
    %v6059 = vadd.f32 %v5716, %v6042
    %v6060 = vadd.f32 %v5717, %v6042
    %v6061 = vadd.f32 %v5718, %v6044
    %v6062 = vadd.f32 %v5719, %v6044
    %v6063 = vadd.f32 %v5720, %v6046
    %v6064 = vadd.f32 %v5721, %v6046
    %v6065 = vadd.f32 %v5722, %v6048
    %v6066 = vadd.f32 %v5723, %v6048
    %v6067 = vstv %s6013
    %v6068 = vmul.f32 %v6067, %v146
    %v6069 = vmul.f32 %v6067, %v148
    %v6070 = vmul.f32 %v6067, %v150
    %v6071 = vmul.f32 %v6067, %v154
    %v6072 = vmul.f32 %v6067, %v156
    %v6073 = vmul.f32 %v6067, %v158
    %v6080 = vrot.slane %v6068, 6
    %v6081 = vrot.slane %v6069, 6
    %v6082 = vsel %vm2098, %v6080, %v6081
    %v6083 = vrot.slane %v6070, 6
    %v6084 = vsel %vm2098, %v6081, %v6083
    %v6085 = vrot.slane %v6071, 6
    %v6086 = vrot.slane %v6072, 6
    %v6087 = vsel %vm2098, %v6085, %v6086
    %v6088 = vrot.slane %v6073, 6
    %v6089 = vsel %vm2098, %v6086, %v6088
    %6090 = vrot.lane.b32.xlu0 %v6080, 122
    %v6091 = vpop.permute.xlu0 %6090
    %6092 = vrot.lane.b32.xlu0 %v6082, 122
    %v6093 = vpop.permute.xlu0 %6092
    %6094 = vrot.lane.b32.xlu0 %v6084, 122
    %v6095 = vpop.permute.xlu0 %6094
    %6096 = vrot.lane.b32.xlu0 %v6085, 122
    %v6097 = vpop.permute.xlu0 %6096
    %6098 = vrot.lane.b32.xlu0 %v6087, 122
    %v6099 = vpop.permute.xlu0 %6098
    %6100 = vrot.lane.b32.xlu0 %v6089, 122
    %v6101 = vpop.permute.xlu0 %6100
    %v6108 = vadd.f32 %v6055, %v6091
    %v6109 = vadd.f32 %v6056, %v6091
    %v6110 = vadd.f32 %v6057, %v6093
    %v6111 = vadd.f32 %v6058, %v6093
    %v6112 = vadd.f32 %v6059, %v6095
    %v6113 = vadd.f32 %v6060, %v6095
    %v6114 = vadd.f32 %v6061, %v6097
    %v6115 = vadd.f32 %v6062, %v6097
    %v6116 = vadd.f32 %v6063, %v6099
    %v6117 = vadd.f32 %v6064, %v6099
    %v6118 = vadd.f32 %v6065, %v6101
    %v6119 = vadd.f32 %v6066, %v6101
    %v6132 = vrot.slane %v5804, 1
    %v6133 = vrot.slane %v5806, 1
    %v6134 = vsel %vm965, %v6132, %v6133
    %v6135 = vrot.slane %v5805, 1
    %v6136 = vrot.slane %v5807, 1
    %v6137 = vsel %vm965, %v6135, %v6136
    %v6138 = vrot.slane %v5808, 1
    %v6139 = vsel %vm965, %v6133, %v6138
    %v6140 = vrot.slane %v5809, 1
    %v6141 = vsel %vm965, %v6136, %v6140
    %v6142 = vrot.slane %v5810, 1
    %v6143 = vrot.slane %v5812, 1
    %v6144 = vsel %vm965, %v6142, %v6143
    %v6145 = vrot.slane %v5811, 1
    %v6146 = vrot.slane %v5813, 1
    %v6147 = vsel %vm965, %v6145, %v6146
    %v6148 = vrot.slane %v5814, 1
    %v6149 = vsel %vm965, %v6143, %v6148
    %v6150 = vrot.slane %v5815, 1
    %v6151 = vsel %vm965, %v6146, %v6150
    %v6164 = vadd.f32 %v6108, %v6134
    %v6165 = vadd.f32 %v6109, %v6137
    %v6166 = vadd.f32 %v6110, %v6139
    %v6167 = vadd.f32 %v6111, %v6141
    %v6168 = vadd.f32 %v6112, %v6138
    %v6169 = vadd.f32 %v6113, %v6140
    %v6170 = vadd.f32 %v6114, %v6144
    %v6171 = vadd.f32 %v6115, %v6147
    %v6172 = vadd.f32 %v6116, %v6149
    %v6173 = vadd.f32 %v6117, %v6151
    %v6174 = vadd.f32 %v6118, %v6148
    %v6175 = vadd.f32 %v6119, %v6150
    %v6188 = vrot.slane %v5912, 2
    %v6189 = vrot.slane %v5914, 2
    %v6190 = vsel %vm2464, %v6188, %v6189
    %v6191 = vrot.slane %v5913, 2
    %v6192 = vrot.slane %v5915, 2
    %v6193 = vsel %vm2464, %v6191, %v6192
    %v6194 = vrot.slane %v5916, 2
    %v6195 = vsel %vm2464, %v6189, %v6194
    %v6196 = vrot.slane %v5917, 2
    %v6197 = vsel %vm2464, %v6192, %v6196
    %v6198 = vrot.slane %v5918, 2
    %v6199 = vrot.slane %v5920, 2
    %v6200 = vsel %vm2464, %v6198, %v6199
    %v6201 = vrot.slane %v5919, 2
    %v6202 = vrot.slane %v5921, 2
    %v6203 = vsel %vm2464, %v6201, %v6202
    %v6204 = vrot.slane %v5922, 2
    %v6205 = vsel %vm2464, %v6199, %v6204
    %v6206 = vrot.slane %v5923, 2
    %v6207 = vsel %vm2464, %v6202, %v6206
    %v6220 = vadd.f32 %v6164, %v6190
    %v6221 = vadd.f32 %v6165, %v6193
    %v6222 = vadd.f32 %v6166, %v6195
    %v6223 = vadd.f32 %v6167, %v6197
    %v6224 = vadd.f32 %v6168, %v6194
    %v6225 = vadd.f32 %v6169, %v6196
    %v6226 = vadd.f32 %v6170, %v6200
    %v6227 = vadd.f32 %v6171, %v6203
    %v6228 = vadd.f32 %v6172, %v6205
    %v6229 = vadd.f32 %v6173, %v6207
    %v6230 = vadd.f32 %v6174, %v6204
    %v6231 = vadd.f32 %v6175, %v6206
    %v6240 = vrot.slane %v6004, 3
    %v6241 = vrot.slane %v6005, 3
    %v6242 = vrot.slane %v6006, 3
    %v6243 = vsel %vm3686, %v6240, %v6242
    %v6244 = vrot.slane %v6007, 3
    %v6245 = vsel %vm3686, %v6241, %v6244
    %v6246 = vrot.slane %v6008, 3
    %v6247 = vrot.slane %v6009, 3
    %v6248 = vrot.slane %v6010, 3
    %v6249 = vsel %vm3686, %v6246, %v6248
    %v6250 = vrot.slane %v6011, 3
    %v6251 = vsel %vm3686, %v6247, %v6250
    %v6264 = vadd.f32 %v6220, %v6240
    %v6265 = vadd.f32 %v6221, %v6241
    %v6266 = vadd.f32 %v6222, %v6243
    %v6267 = vadd.f32 %v6223, %v6245
    %v6268 = vadd.f32 %v6224, %v6242
    %v6269 = vadd.f32 %v6225, %v6244
    %v6270 = vadd.f32 %v6226, %v6246
    %v6271 = vadd.f32 %v6227, %v6247
    %v6272 = vadd.f32 %v6228, %v6249
    %v6273 = vadd.f32 %v6229, %v6251
    %v6274 = vadd.f32 %v6230, %v6248
    %v6275 = vadd.f32 %v6231, %v6250
    %v6276 = vxor.u32 %v6264, 2147483648
    %v6277 = vxor.u32 %v6265, 2147483648
    %v6278 = vxor.u32 %v6266, 2147483648
    %v6279 = vxor.u32 %v6267, 2147483648
    %v6280 = vxor.u32 %v6268, 2147483648
    %v6281 = vxor.u32 %v6269, 2147483648
    %v6282 = vxor.u32 %v6270, 2147483648
    %v6283 = vxor.u32 %v6271, 2147483648
    %v6284 = vxor.u32 %v6272, 2147483648
    %v6285 = vxor.u32 %v6273, 2147483648
    %v6286 = vxor.u32 %v6274, 2147483648
    %v6287 = vxor.u32 %v6275, 2147483648
    %v6288 = vmul.f32 %v6276, 1.442695
    %v6289 = vpow.pop %v6288
    %v6290 = vmul.f32 %v6277, 1.442695
    %v6291 = vpow.pop %v6290
    %v6292 = vmul.f32 %v6278, 1.442695
    %v6293 = vpow.pop %v6292
    %v6294 = vmul.f32 %v6279, 1.442695
    %v6295 = vpow.pop %v6294
    %v6296 = vmul.f32 %v6280, 1.442695
    %v6297 = vpow.pop %v6296
    %v6298 = vmul.f32 %v6281, 1.442695
    %v6299 = vpow.pop %v6298
    %v6300 = vmul.f32 %v6282, 1.442695
    %v6301 = vpow.pop %v6300
    %v6302 = vmul.f32 %v6283, 1.442695
    %v6303 = vpow.pop %v6302
    %v6304 = vmul.f32 %v6284, 1.442695
    %v6305 = vpow.pop %v6304
    %v6306 = vmul.f32 %v6285, 1.442695
    %v6307 = vpow.pop %v6306
    %v6308 = vmul.f32 %v6286, 1.442695
    %v6309 = vpow.pop %v6308
    %v6310 = vmul.f32 %v6287, 1.442695
    %v6311 = vpow.pop %v6310
    %v6312 = vadd.f32 %v6289, 1.0
    %v6313 = vadd.f32 %v6291, 1.0
    %v6314 = vadd.f32 %v6293, 1.0
    %v6315 = vadd.f32 %v6295, 1.0
    %v6316 = vadd.f32 %v6297, 1.0
    %v6317 = vadd.f32 %v6299, 1.0
    %v6318 = vadd.f32 %v6301, 1.0
    %v6319 = vadd.f32 %v6303, 1.0
    %v6320 = vadd.f32 %v6305, 1.0
    %v6321 = vadd.f32 %v6307, 1.0
    %v6322 = vadd.f32 %v6309, 1.0
    %v6323 = vadd.f32 %v6311, 1.0
    %v6324 = vrcp.pop %v6312
    %v6325 = vmul.f32 1.0, %v6324
    %v6326 = vrcp.pop %v6313
    %v6327 = vmul.f32 1.0, %v6326
    %v6328 = vrcp.pop %v6314
    %v6329 = vmul.f32 1.0, %v6328
    %v6330 = vrcp.pop %v6315
    %v6331 = vmul.f32 1.0, %v6330
    %v6332 = vrcp.pop %v6316
    %v6333 = vmul.f32 1.0, %v6332
    %v6334 = vrcp.pop %v6317
    %v6335 = vmul.f32 1.0, %v6334
    %v6336 = vrcp.pop %v6318
    %v6337 = vmul.f32 1.0, %v6336
    %v6338 = vrcp.pop %v6319
    %v6339 = vmul.f32 1.0, %v6338
    %v6340 = vrcp.pop %v6320
    %v6341 = vmul.f32 1.0, %v6340
    %v6342 = vrcp.pop %v6321
    %v6343 = vmul.f32 1.0, %v6342
    %v6344 = vrcp.pop %v6322
    %v6345 = vmul.f32 1.0, %v6344
    %v6346 = vrcp.pop %v6323
    %v6347 = vmul.f32 1.0, %v6346
    %6360 = vrot.lane.b32.xlu0 %v6325, 3
    %v6361 = vpop.permute.xlu0 %6360
    %6362 = vrot.lane.b32.xlu0 %v6327, 3
    %v6363 = vpop.permute.xlu0 %6362
    %6364 = vrot.lane.b32.xlu0 %v6329, 3
    %v6365 = vpop.permute.xlu0 %6364
    %6366 = vrot.lane.b32.xlu0 %v6331, 3
    %v6367 = vpop.permute.xlu0 %6366
    %6368 = vrot.lane.b32.xlu0 %v6333, 3
    %v6369 = vpop.permute.xlu0 %6368
    %6370 = vrot.lane.b32.xlu0 %v6335, 3
    %v6371 = vpop.permute.xlu0 %6370
    %6372 = vrot.lane.b32.xlu0 %v6337, 3
    %v6373 = vpop.permute.xlu0 %6372
    %6374 = vrot.lane.b32.xlu0 %v6339, 3
    %v6375 = vpop.permute.xlu0 %6374
    %6376 = vrot.lane.b32.xlu0 %v6341, 3
    %v6377 = vpop.permute.xlu0 %6376
    %6378 = vrot.lane.b32.xlu0 %v6343, 3
    %v6379 = vpop.permute.xlu0 %6378
    %6380 = vrot.lane.b32.xlu0 %v6345, 3
    %v6381 = vpop.permute.xlu0 %6380
    %6382 = vrot.lane.b32.xlu0 %v6347, 3
    %v6383 = vpop.permute.xlu0 %6382
    %vm6384 = vcmask 23552
    %v6385 = vsel %vm6384, %v6361, %v6363
    %v6386 = vsel %vm6384, %v6365, %v6367
    %v6387 = vsel %vm6384, %v6369, %v6371
    %v6388 = vsel %vm6384, %v6373, %v6375
    %v6389 = vsel %vm6384, %v6377, %v6379
    %v6390 = vsel %vm6384, %v6381, %v6383
    %vm6397 = vcmask 130053
    %6398 = vst.msk [vmem:[#allocation9 - $0x5] sm:$0xe0] %vm6397, %v6385
    %6399 = vst.msk [vmem:[#allocation9 + $0x3] sm:$0xff] %vm118, %v6386
    %vm6400 = vcmask 126976
    %6401 = vst.msk [vmem:[#allocation9 + $0xb] sm:$0x1f] %vm6400, %v6387
    %6402 = vst.msk [vmem:[#allocation9 + $0xb] sm:$0xe0] %vm6397, %v6388
    %6403 = vst.msk [vmem:[#allocation9 + $0x13] sm:$0xff] %vm118, %v6389
    %6404 = vst.msk [vmem:[#allocation9 + $0x1b] sm:$0x1f] %vm6400, %v6390
    // Predicated region
    $region18: #{tpu_custom_call.1} parent=1 // pred_check
      _
    $region19: #{tpu_custom_call.1} parent=1 // pred_check_branch
      %6406 = sbr.rel (0) target = $region21
    $region20: #{tpu_custom_call.1} parent=1 // pred_region
      %s6408 = ssub.s32 512, 512
      %6409 = vsyncadd [#allocation6], %s6408
      %s6410 = sshll.u32 [#allocation9], 4
      %s6411 = int_to_ptr.vmem [resolvable:$true] %s6410
      %6416 = dma.vmem_to_hbm [thread:$0]  %s6411, 512, %s2, [#allocation6], 128, 128, 8
    $region21: #{tpu_custom_call.1} parent=1 // pred_fallthru
      _
    // Predicated region
    $region22: #{tpu_custom_call.1} parent=1 // pred_check
      _
    $region23: #{tpu_custom_call.1} parent=1 // pred_check_branch
      %6418 = sbr.rel (0) target = $region25
    $region24: #{tpu_custom_call.1} parent=1 // pred_region
      %6419 = dma.done [#allocation6], 512
    $region25: #{tpu_custom_call.1} parent=1 // pred_fallthru
      _
    %6420 = vsyncpa [#allocation5], 1
    %6421 = vsyncpa [#allocation6], 1
    %6422 = vsyncpa [#allocation7], 1

</llo_original>
